<compile_context>
chip_gen: v7x
topology: tpu7x:2x2x1
jax: 0.10.0
libtpu: 0.0.40
codegen_flags: <defaults>
</compile_context>

<pallas_src>
import jax
import jax.numpy as jnp
from jax.experimental import pallas as pl
from jax.experimental.pallas import tpu as pltpu

_BN_EPS = 1e-5
_OUT_PAD = 128   # lane-dense padded width of the 9-element output


# ----------------------------------------------------------------------------
# Fused kernel: per-point MLP (conv1/2/3 + folded BN) -> max pool over points
# -> FC head (fc1/fc2 + folded BN, fc3 + identity folded into the bias).
# Grid = (B, num_point_blocks).  gmax_ref (VMEM scratch) holds the running
# max-pooled feature; re-initialised at the first point block of each batch
# element, consumed by the head at the last one.
# ----------------------------------------------------------------------------
def _stn3d_kernel(x_ref,
                  w1_ref, b1_ref, w2_ref, b2_ref, w3_ref, b3_ref,
                  w4_ref, b4_ref, w5_ref, b5_ref, w6_ref, b6_ref,
                  o_ref, gmax_ref):
    n = pl.program_id(1)
    n_last = pl.num_programs(1) - 1

    @pl.when(n == 0)
    def _():
        gmax_ref[...] = jnp.full(gmax_ref.shape, -jnp.inf, jnp.float32)

    x = x_ref[0]                                         # (TILE_N, C) f32

    # conv1 + bn1 + relu.  K = C (3) is far too small to feed the MXU
    # efficiently (push count scales with M regardless of K), so run it as C
    # broadcast multiply-adds on the VPU instead.
    w1 = w1_ref[...]                                     # (C, 64) f32
    c_in = x.shape[1]
    if c_in <= 8:
        h = x[:, 0:1] * w1[0:1, :]
        for c in range(1, c_in):
            h = h + x[:, c:c + 1] * w1[c:c + 1, :]
    else:                                                # generic fallback
        h = jnp.dot(x, w1, preferred_element_type=jnp.float32)
    h = jnp.maximum(h + b1_ref[...], 0.0)

    # conv2 / conv3 + bn + relu: bf16 MXU inputs, f32 accumulation,
    # f32 bias add / ReLU.
    h = jnp.dot(h.astype(jnp.bfloat16), w2_ref[...],
                preferred_element_type=jnp.float32)
    h = jnp.maximum(h + b2_ref[...], 0.0)
    h = jnp.dot(h.astype(jnp.bfloat16), w3_ref[...],
                preferred_element_type=jnp.float32)
    h = jnp.maximum(h + b3_ref[...], 0.0)

    # Running max over the point axis.
    gmax_ref[...] = jnp.maximum(gmax_ref[...],
                                jnp.max(h, axis=0, keepdims=True))

    # FC head fused into the last point block.  M == 1 -> negligible FLOPs,
    # kept in f32 for accuracy.
    @pl.when(n == n_last)
    def _():
        g = gmax_ref[...]                                # (1, out_dim)
        t = jnp.dot(g, w4_ref[...], preferred_element_type=jnp.float32)
        t = jnp.maximum(t + b4_ref[...], 0.0)            # fc1 + bn4 + relu
        t = jnp.dot(t, w5_ref[...], preferred_element_type=jnp.float32)
        t = jnp.maximum(t + b5_ref[...], 0.0)            # fc2 + bn5 + relu
        out = jnp.dot(t, w6_ref[...], preferred_element_type=jnp.float32)
        out = out + b6_ref[...]                          # fc3 + identity (padded)
        o_ref[...] = out.astype(o_ref.dtype)[None]       # (1, 1, 128) lane-dense


def _const_spec(arr):
    nd = arr.ndim
    return pl.BlockSpec(arr.shape, lambda b, n, _nd=nd: (0,) * _nd)


def _pick_tile_n(n_points):
    """Biggest point tile that fits comfortably: amortises per-grid-step
    overhead and maximises the MXU M dimension.  VMEM is not the constraint
    (largest intermediate at TILE_N=2048 is a 4 MiB f32 (2048, 512) block)."""
    if n_points <= 2048:
        return n_points                       # single full-extent block
    for t in (2048, 1024, 512, 256, 128):
        if n_points % t == 0:
            return t
    for t in range(2048, 8, -8):              # largest multiple-of-8 divisor
        if n_points % t == 0:
            return t
    return n_points                           # full extent (sublane-padded)


_PARAM_ORDER = ("w1t", "b1", "w2t", "b2", "w3t", "b3",
                "w4t", "b4", "w5t", "b5", "w6t", "b6")


def stn3d_forward(x_ncw, params):
    """x_ncw: (B, channel, N) float32.  Returns (B, 3, 3) float32."""
    B, C, N = x_ncw.shape
    out_dim = params["w3t"].shape[1]

    # Channels-last so every 1x1 conv is a (rows, Cin) @ (Cin, Cout) matmul.
    x = jnp.transpose(x_ncw, (0, 2, 1))                  # (B, N, C)

    tile_n = _pick_tile_n(N)
    nb = N // tile_n

    out_pad = pl.pallas_call(
        _stn3d_kernel,
        out_shape=jax.ShapeDtypeStruct((B, 1, _OUT_PAD), jnp.float32),
        grid=(B, nb),
        in_specs=[pl.BlockSpec((1, tile_n, C), lambda b, n: (b, n, 0))] +
                 [_const_spec(params[k]) for k in _PARAM_ORDER],
        out_specs=pl.BlockSpec((1, 1, _OUT_PAD), lambda b, n: (b, 0, 0)),
        scratch_shapes=[pltpu.VMEM((1, out_dim), jnp.float32)],
        compiler_params=pltpu.CompilerParams(
            # batch axis -> both v7x TCs; point-block axis is the max-pool
            # reduction (scratch/output resident across it).
            dimension_semantics=("parallel", "arbitrary"),
            # Explicit budget (x tile double-buffered + (TILE_N, 512) f32
            # intermediates + all weights) — safe on v5e/v6e/v7x.
            vmem_limit_bytes=32 * 1024 * 1024),
    )(x, *(params[k] for k in _PARAM_ORDER))

    return out_pad[:, 0, :9].reshape(B, 3, 3)


# ----------------------------------------------------------------------------
# Parameters: raw (PyTorch-like) parameters + one-time folding for the kernel.
# ----------------------------------------------------------------------------
def init_raw_params(key, channel, out_dim):
    ks = iter(jax.random.split(key, 32))

    def conv(cout, cin):
        w = 0.1 * jax.random.normal(next(ks), (cout, cin), jnp.float32)
        b = 0.05 * jax.random.normal(next(ks), (cout,), jnp.float32)
        return w, b

    def bn(c):
        gamma = 1.0 + 0.1 * jax.random.normal(next(ks), (c,), jnp.float32)
        beta = 0.1 * jax.random.normal(next(ks), (c,), jnp.float32)
        mean = 0.1 * jax.random.normal(next(ks), (c,), jnp.float32)
        var = 1.0 + 0.2 * jax.random.uniform(next(ks), (c,), jnp.float32)
        return gamma, beta, mean, var

    raw = {}
    raw["conv1"], raw["bn1"] = conv(64, channel), bn(64)
    raw["conv2"], raw["bn2"] = conv(128, 64), bn(128)
    raw["conv3"], raw["bn3"] = conv(out_dim, 128), bn(out_dim)
    raw["fc1"], raw["bn4"] = conv(512, out_dim), bn(512)
    raw["fc2"], raw["bn5"] = conv(256, 512), bn(256)
    raw["fc3"] = conv(9, 256)
    return raw


def fold_params(raw):
    """Fold eval-mode BN into weights/biases, transpose weights to (Cin, Cout),
    cast the FLOP-dominant conv2/conv3 weights to bf16, fold the identity into
    the fc3 bias and lane-pad the 9-wide fc3 output to 128 columns."""
    def fold(wb, bn, w_dtype=jnp.float32):
        w, b = wb
        gamma, beta, mean, var = bn
        s = gamma / jnp.sqrt(var + _BN_EPS)
        wt = (w * s[:, None]).T                          # (cin, cout)
        bias = (b - mean) * s + beta
        return wt.astype(w_dtype), bias[None, :].astype(jnp.float32)

    p = {}
    p["w1t"], p["b1"] = fold(raw["conv1"], raw["bn1"])                 # VPU, f32
    p["w2t"], p["b2"] = fold(raw["conv2"], raw["bn2"], jnp.bfloat16)   # MXU, bf16
    p["w3t"], p["b3"] = fold(raw["conv3"], raw["bn3"], jnp.bfloat16)   # MXU, bf16
    p["w4t"], p["b4"] = fold(raw["fc1"], raw["bn4"])                   # head, f32
    p["w5t"], p["b5"] = fold(raw["fc2"], raw["bn5"])
    w6, b6 = raw["fc3"]
    iden = jnp.array([1, 0, 0, 0, 1, 0, 0, 0, 1], jnp.float32)
    w6t = jnp.zeros((w6.shape[1], _OUT_PAD), jnp.float32).at[:, :9].set(w6.T)
    b6p = jnp.zeros((1, _OUT_PAD), jnp.float32).at[0, :9].set(b6 + iden)
    p["w6t"], p["b6"] = w6t, b6p
    return p


# ----------------------------------------------------------------------------
# Pure-JAX reference mirroring the PyTorch forward (eval-mode BN, all f32).
# ----------------------------------------------------------------------------
def reference_forward(x_ncw, raw):
    B = x_ncw.shape[0]

    def conv_bn_relu(x, wb, bn):
        w, b = wb
        gamma, beta, mean, var = bn
        y = jnp.einsum("oc,bcn->bon", w, x) + b[None, :, None]
        y = (y - mean[None, :, None]) / jnp.sqrt(var[None, :, None] + _BN_EPS)
        y = y * gamma[None, :, None] + beta[None, :, None]
        return jnp.maximum(y, 0.0)

    def fc_bn_relu(x, wb, bn):
        w, b = wb
        gamma, beta, mean, var = bn
        y = x @ w.T + b
        y = (y - mean) / jnp.sqrt(var + _BN_EPS) * gamma + beta
        return jnp.maximum(y, 0.0)

    h = conv_bn_relu(x_ncw, raw["conv1"], raw["bn1"])
    h = conv_bn_relu(h, raw["conv2"], raw["bn2"])
    h = conv_bn_relu(h, raw["conv3"], raw["bn3"])
    g = jnp.max(h, axis=2)                               # (B, out_dim)
    h = fc_bn_relu(g, raw["fc1"], raw["bn4"])
    h = fc_bn_relu(h, raw["fc2"], raw["bn5"])
    w6, b6 = raw["fc3"]
    out = h @ w6.T + b6
    iden = jnp.array([1, 0, 0, 0, 1, 0, 0, 0, 1], jnp.float32)
    out = out + iden[None, :]
    return out.reshape(B, 3, 3)


if __name__ == "__main__":
    # STN3d(channel=3, out_dim=512) on a small point cloud: B=2, N=512 points.
    B, channel, N, out_dim = 2, 3, 512, 512

    key = jax.random.PRNGKey(0)
    kx, kp = jax.random.split(key)
    x = jax.random.normal(kx, (B, channel, N), jnp.float32)
    raw = init_raw_params(kp, channel, out_dim)
    params = fold_params(raw)

    out = stn3d_forward(x, params)
    out = jax.block_until_ready(out)

    ref = reference_forward(x, raw)
    assert out.shape == (B, 3, 3), out.shape
    max_err = float(jnp.max(jnp.abs(out - ref)))
    # conv2/conv3 run with bf16 MXU inputs (f32 accumulation), so allow a
    # slightly looser tolerance than pure f32.
    assert jnp.allclose(out, ref, atol=5e-2, rtol=5e-2), max_err

    print("KERNEL_OK")
</pallas_src>

<mosaic_0001>
module attributes {stable_mosaic.version = 11 : i64} {
  func.func @_stn3d_kernel(%arg0: i32, %arg1: i32, %arg2: memref<1x512x3xf32, #tpu.memory_space<vmem>>, %arg3: memref<3x64xf32, #tpu.memory_space<vmem>>, %arg4: memref<1x64xf32, #tpu.memory_space<vmem>>, %arg5: memref<64x128xbf16, #tpu.memory_space<vmem>>, %arg6: memref<1x128xf32, #tpu.memory_space<vmem>>, %arg7: memref<128x512xbf16, #tpu.memory_space<vmem>>, %arg8: memref<1x512xf32, #tpu.memory_space<vmem>>, %arg9: memref<512x512xf32, #tpu.memory_space<vmem>>, %arg10: memref<1x512xf32, #tpu.memory_space<vmem>>, %arg11: memref<512x256xf32, #tpu.memory_space<vmem>>, %arg12: memref<1x256xf32, #tpu.memory_space<vmem>>, %arg13: memref<256x128xf32, #tpu.memory_space<vmem>>, %arg14: memref<1x128xf32, #tpu.memory_space<vmem>>, %arg15: memref<1x1x128xf32, #tpu.memory_space<vmem>>, %arg16: memref<1x512xf32, #tpu.memory_space<vmem>>) attributes {dimension_semantics = [#tpu.dimension_semantics<parallel>, #tpu.dimension_semantics<arbitrary>], iteration_bounds = array<i64: 2, 1>, scalar_prefetch = 0 : i64, scratch_operands = 1 : i64, tpu.core_type = #tpu.core_type<tc>, window_params = [{transform_indices = @transform_0, window_bounds = array<i64: 1, 512, 3>}, {pipeline_mode = #tpu.pipeline_mode<synchronous>, transform_indices = @transform_1, window_bounds = array<i64: 3, 64>}, {pipeline_mode = #tpu.pipeline_mode<synchronous>, transform_indices = @transform_2, window_bounds = array<i64: 1, 64>}, {pipeline_mode = #tpu.pipeline_mode<synchronous>, transform_indices = @transform_3, window_bounds = array<i64: 64, 128>}, {pipeline_mode = #tpu.pipeline_mode<synchronous>, transform_indices = @transform_4, window_bounds = array<i64: 1, 128>}, {pipeline_mode = #tpu.pipeline_mode<synchronous>, transform_indices = @transform_5, window_bounds = array<i64: 128, 512>}, {pipeline_mode = #tpu.pipeline_mode<synchronous>, transform_indices = @transform_6, window_bounds = array<i64: 1, 512>}, {pipeline_mode = #tpu.pipeline_mode<synchronous>, transform_indices = @transform_7, window_bounds = array<i64: 512, 512>}, {pipeline_mode = #tpu.pipeline_mode<synchronous>, transform_indices = @transform_8, window_bounds = array<i64: 1, 512>}, {pipeline_mode = #tpu.pipeline_mode<synchronous>, transform_indices = @transform_9, window_bounds = array<i64: 512, 256>}, {pipeline_mode = #tpu.pipeline_mode<synchronous>, transform_indices = @transform_10, window_bounds = array<i64: 1, 256>}, {pipeline_mode = #tpu.pipeline_mode<synchronous>, transform_indices = @transform_11, window_bounds = array<i64: 256, 128>}, {pipeline_mode = #tpu.pipeline_mode<synchronous>, transform_indices = @transform_12, window_bounds = array<i64: 1, 128>}, {transform_indices = @transform_13, window_bounds = array<i64: 1, 1, 128>}]} {
    %c0_i32 = arith.constant 0 : i32
    %0 = arith.cmpi eq, %arg1, %c0_i32 : i32
    %1 = arith.extui %0 : i1 to i32
    %c0_i32_0 = arith.constant 0 : i32
    %2 = arith.cmpi ne, %1, %c0_i32_0 : i32
    scf.if %2 {
      %cst_26 = arith.constant 0xFF800000 : f32
      %52 = vector.broadcast %cst_26 : f32 to vector<1x512xf32>
      %c0_27 = arith.constant 0 : index
      %c0_28 = arith.constant 0 : index
      %53 = vector.load %arg16[%c0_27, %c0_28] : memref<1x512xf32, #tpu.memory_space<vmem>>, vector<1x512xf32>
      tpu.vector_store %arg16[%c0_27, %c0_28], %52 {strides = array<i32>} : memref<1x512xf32, #tpu.memory_space<vmem>>, vector<1x512xf32>,
    } else {
    }
    %c0 = arith.constant 0 : index
    %c0_1 = arith.constant 0 : index
    %c0_2 = arith.constant 0 : index
    %3 = vector.load %arg2[%c0, %c0_1, %c0_2] : memref<1x512x3xf32, #tpu.memory_space<vmem>>, vector<1x512x3xf32>
    %4 = vector.shape_cast %3 : vector<1x512x3xf32> to vector<512x3xf32>
    %c0_3 = arith.constant 0 : index
    %c0_4 = arith.constant 0 : index
    %5 = vector.load %arg3[%c0_3, %c0_4] : memref<3x64xf32, #tpu.memory_space<vmem>>, vector<3x64xf32>
    %6 = vector.extract_strided_slice %4 {offsets = [0, 0], sizes = [512, 1], strides = [1, 1]} : vector<512x3xf32> to vector<512x1xf32>
    %7 = vector.extract_strided_slice %5 {offsets = [0, 0], sizes = [1, 64], strides = [1, 1]} : vector<3x64xf32> to vector<1x64xf32>
    %8 = vector.broadcast %6 : vector<512x1xf32> to vector<512x64xf32>
    %9 = vector.broadcast %7 : vector<1x64xf32> to vector<512x64xf32>
    %10 = arith.mulf %8, %9 : vector<512x64xf32>
    %11 = vector.extract_strided_slice %4 {offsets = [0, 1], sizes = [512, 1], strides = [1, 1]} : vector<512x3xf32> to vector<512x1xf32>
    %12 = vector.extract_strided_slice %5 {offsets = [1, 0], sizes = [1, 64], strides = [1, 1]} : vector<3x64xf32> to vector<1x64xf32>
    %13 = vector.broadcast %11 : vector<512x1xf32> to vector<512x64xf32>
    %14 = vector.broadcast %12 : vector<1x64xf32> to vector<512x64xf32>
    %15 = arith.mulf %13, %14 : vector<512x64xf32>
    %16 = arith.addf %10, %15 : vector<512x64xf32>
    %17 = vector.extract_strided_slice %4 {offsets = [0, 2], sizes = [512, 1], strides = [1, 1]} : vector<512x3xf32> to vector<512x1xf32>
    %18 = vector.extract_strided_slice %5 {offsets = [2, 0], sizes = [1, 64], strides = [1, 1]} : vector<3x64xf32> to vector<1x64xf32>
    %19 = vector.broadcast %17 : vector<512x1xf32> to vector<512x64xf32>
    %20 = vector.broadcast %18 : vector<1x64xf32> to vector<512x64xf32>
    %21 = arith.mulf %19, %20 : vector<512x64xf32>
    %22 = arith.addf %16, %21 : vector<512x64xf32>
    %c0_5 = arith.constant 0 : index
    %c0_6 = arith.constant 0 : index
    %23 = vector.load %arg4[%c0_5, %c0_6] : memref<1x64xf32, #tpu.memory_space<vmem>>, vector<1x64xf32>
    %24 = vector.broadcast %23 : vector<1x64xf32> to vector<512x64xf32>
    %25 = arith.addf %22, %24 : vector<512x64xf32>
    %cst = arith.constant 0.000000e+00 : f32
    %26 = vector.broadcast %cst : f32 to vector<512x64xf32>
    %27 = arith.maximumf %25, %26 : vector<512x64xf32>
    %28 = arith.truncf %27 : vector<512x64xf32> to vector<512x64xbf16>
    %c0_7 = arith.constant 0 : index
    %c0_8 = arith.constant 0 : index
    %29 = vector.load %arg5[%c0_7, %c0_8] : memref<64x128xbf16, #tpu.memory_space<vmem>>, vector<64x128xbf16>
    %cst_9 = arith.constant dense<0.000000e+00> : vector<512x128xf32>
    %30 = tpu.matmul %28, %29, %cst_9 {dimension_numbers = #tpu.dot_dimension_numbers<[1], [0], [0], [1], [0, 0, 1, 1], [], []>} : vector<512x64xbf16>, vector<64x128xbf16>, vector<512x128xf32> -> vector<512x128xf32>
    %c0_10 = arith.constant 0 : index
    %c0_11 = arith.constant 0 : index
    %31 = vector.load %arg6[%c0_10, %c0_11] : memref<1x128xf32, #tpu.memory_space<vmem>>, vector<1x128xf32>
    %32 = vector.broadcast %31 : vector<1x128xf32> to vector<512x128xf32>
    %33 = arith.addf %30, %32 : vector<512x128xf32>
    %cst_12 = arith.constant 0.000000e+00 : f32
    %34 = vector.broadcast %cst_12 : f32 to vector<512x128xf32>
    %35 = arith.maximumf %33, %34 : vector<512x128xf32>
    %36 = arith.truncf %35 : vector<512x128xf32> to vector<512x128xbf16>
    %c0_13 = arith.constant 0 : index
    %c0_14 = arith.constant 0 : index
    %37 = vector.load %arg7[%c0_13, %c0_14] : memref<128x512xbf16, #tpu.memory_space<vmem>>, vector<128x512xbf16>
    %cst_15 = arith.constant dense<0.000000e+00> : vector<512x512xf32>
    %38 = tpu.matmul %36, %37, %cst_15 {dimension_numbers = #tpu.dot_dimension_numbers<[1], [0], [0], [1], [0, 0, 1, 1], [], []>} : vector<512x128xbf16>, vector<128x512xbf16>, vector<512x512xf32> -> vector<512x512xf32>
    %c0_16 = arith.constant 0 : index
    %c0_17 = arith.constant 0 : index
    %39 = vector.load %arg8[%c0_16, %c0_17] : memref<1x512xf32, #tpu.memory_space<vmem>>, vector<1x512xf32>
    %40 = vector.broadcast %39 : vector<1x512xf32> to vector<512x512xf32>
    %41 = arith.addf %38, %40 : vector<512x512xf32>
    %cst_18 = arith.constant 0.000000e+00 : f32
    %42 = vector.broadcast %cst_18 : f32 to vector<512x512xf32>
    %43 = arith.maximumf %41, %42 : vector<512x512xf32>
    %c0_19 = arith.constant 0 : index
    %c0_20 = arith.constant 0 : index
    %44 = vector.load %arg16[%c0_19, %c0_20] : memref<1x512xf32, #tpu.memory_space<vmem>>, vector<1x512xf32>
    %cst_21 = arith.constant dense<0xFF800000> : vector<512xf32>
    %45 = vector.multi_reduction <maximumf>, %43, %cst_21 [0] : vector<512x512xf32> to vector<512xf32>
    %46 = vector.shape_cast %45 : vector<512xf32> to vector<1x512xf32>
    %47 = arith.maximumf %44, %46 : vector<1x512xf32>
    %c0_22 = arith.constant 0 : index
    %c0_23 = arith.constant 0 : index
    %48 = vector.load %arg16[%c0_22, %c0_23] : memref<1x512xf32, #tpu.memory_space<vmem>>, vector<1x512xf32>
    tpu.vector_store %arg16[%c0_22, %c0_23], %47 {strides = array<i32>} : memref<1x512xf32, #tpu.memory_space<vmem>>, vector<1x512xf32>,
    %c0_i32_24 = arith.constant 0 : i32
    %49 = arith.cmpi eq, %arg1, %c0_i32_24 : i32
    %50 = arith.extui %49 : i1 to i32
    %c0_i32_25 = arith.constant 0 : i32
    %51 = arith.cmpi ne, %50, %c0_i32_25 : i32
    scf.if %51 {
      %c0_26 = arith.constant 0 : index
      %c0_27 = arith.constant 0 : index
      %52 = vector.load %arg16[%c0_26, %c0_27] : memref<1x512xf32, #tpu.memory_space<vmem>>, vector<1x512xf32>
      %c0_28 = arith.constant 0 : index
      %c0_29 = arith.constant 0 : index
      %53 = vector.load %arg9[%c0_28, %c0_29] : memref<512x512xf32, #tpu.memory_space<vmem>>, vector<512x512xf32>
      %cst_30 = arith.constant dense<0.000000e+00> : vector<1x512xf32>
      %54 = tpu.matmul %52, %53, %cst_30 {dimension_numbers = #tpu.dot_dimension_numbers<[1], [0], [0], [1], [0, 0, 1, 1], [], []>} : vector<1x512xf32>, vector<512x512xf32>, vector<1x512xf32> -> vector<1x512xf32>
      %c0_31 = arith.constant 0 : index
      %c0_32 = arith.constant 0 : index
      %55 = vector.load %arg10[%c0_31, %c0_32] : memref<1x512xf32, #tpu.memory_space<vmem>>, vector<1x512xf32>
      %56 = arith.addf %54, %55 : vector<1x512xf32>
      %cst_33 = arith.constant 0.000000e+00 : f32
      %57 = vector.broadcast %cst_33 : f32 to vector<1x512xf32>
      %58 = arith.maximumf %56, %57 : vector<1x512xf32>
      %c0_34 = arith.constant 0 : index
      %c0_35 = arith.constant 0 : index
      %59 = vector.load %arg11[%c0_34, %c0_35] : memref<512x256xf32, #tpu.memory_space<vmem>>, vector<512x256xf32>
      %cst_36 = arith.constant dense<0.000000e+00> : vector<1x256xf32>
      %60 = tpu.matmul %58, %59, %cst_36 {dimension_numbers = #tpu.dot_dimension_numbers<[1], [0], [0], [1], [0, 0, 1, 1], [], []>} : vector<1x512xf32>, vector<512x256xf32>, vector<1x256xf32> -> vector<1x256xf32>
      %c0_37 = arith.constant 0 : index
      %c0_38 = arith.constant 0 : index
      %61 = vector.load %arg12[%c0_37, %c0_38] : memref<1x256xf32, #tpu.memory_space<vmem>>, vector<1x256xf32>
      %62 = arith.addf %60, %61 : vector<1x256xf32>
      %cst_39 = arith.constant 0.000000e+00 : f32
      %63 = vector.broadcast %cst_39 : f32 to vector<1x256xf32>
      %64 = arith.maximumf %62, %63 : vector<1x256xf32>
      %c0_40 = arith.constant 0 : index
      %c0_41 = arith.constant 0 : index
      %65 = vector.load %arg13[%c0_40, %c0_41] : memref<256x128xf32, #tpu.memory_space<vmem>>, vector<256x128xf32>
      %cst_42 = arith.constant dense<0.000000e+00> : vector<1x128xf32>
      %66 = tpu.matmul %64, %65, %cst_42 {dimension_numbers = #tpu.dot_dimension_numbers<[1], [0], [0], [1], [0, 0, 1, 1], [], []>} : vector<1x256xf32>, vector<256x128xf32>, vector<1x128xf32> -> vector<1x128xf32>
      %c0_43 = arith.constant 0 : index
      %c0_44 = arith.constant 0 : index
      %67 = vector.load %arg14[%c0_43, %c0_44] : memref<1x128xf32, #tpu.memory_space<vmem>>, vector<1x128xf32>
      %68 = arith.addf %66, %67 : vector<1x128xf32>
      %69 = vector.shape_cast %68 : vector<1x128xf32> to vector<1x1x128xf32>
      %c0_45 = arith.constant 0 : index
      %c0_46 = arith.constant 0 : index
      %c0_47 = arith.constant 0 : index
      %70 = vector.load %arg15[%c0_45, %c0_46, %c0_47] : memref<1x1x128xf32, #tpu.memory_space<vmem>>, vector<1x1x128xf32>
      tpu.vector_store %arg15[%c0_45, %c0_46, %c0_47], %69 {strides = array<i32>} : memref<1x1x128xf32, #tpu.memory_space<vmem>>, vector<1x1x128xf32>,
    } else {
    }
    return
  }
  func.func @transform_0(%arg0: i32, %arg1: i32) -> (i32, i32, i32) {
    %c0_i32 = arith.constant 0 : i32
    %c0_i32_0 = arith.constant 0 : i32
    return %arg0, %arg1, %c0_i32 : i32, i32, i32
  }
  func.func @transform_1(%arg0: i32, %arg1: i32) -> (i32, i32) {
    %c0_i32 = arith.constant 0 : i32
    %c0_i32_0 = arith.constant 0 : i32
    %c0_i32_1 = arith.constant 0 : i32
    return %c0_i32, %c0_i32_0 : i32, i32
  }
  func.func @transform_2(%arg0: i32, %arg1: i32) -> (i32, i32) {
    %c0_i32 = arith.constant 0 : i32
    %c0_i32_0 = arith.constant 0 : i32
    %c0_i32_1 = arith.constant 0 : i32
    return %c0_i32, %c0_i32_0 : i32, i32
  }
  func.func @transform_3(%arg0: i32, %arg1: i32) -> (i32, i32) {
    %c0_i32 = arith.constant 0 : i32
    %c0_i32_0 = arith.constant 0 : i32
    %c0_i32_1 = arith.constant 0 : i32
    return %c0_i32, %c0_i32_0 : i32, i32
  }
  func.func @transform_4(%arg0: i32, %arg1: i32) -> (i32, i32) {
    %c0_i32 = arith.constant 0 : i32
    %c0_i32_0 = arith.constant 0 : i32
    %c0_i32_1 = arith.constant 0 : i32
    return %c0_i32, %c0_i32_0 : i32, i32
  }
  func.func @transform_5(%arg0: i32, %arg1: i32) -> (i32, i32) {
    %c0_i32 = arith.constant 0 : i32
    %c0_i32_0 = arith.constant 0 : i32
    %c0_i32_1 = arith.constant 0 : i32
    return %c0_i32, %c0_i32_0 : i32, i32
  }
  func.func @transform_6(%arg0: i32, %arg1: i32) -> (i32, i32) {
    %c0_i32 = arith.constant 0 : i32
    %c0_i32_0 = arith.constant 0 : i32
    %c0_i32_1 = arith.constant 0 : i32
    return %c0_i32, %c0_i32_0 : i32, i32
  }
  func.func @transform_7(%arg0: i32, %arg1: i32) -> (i32, i32) {
    %c0_i32 = arith.constant 0 : i32
    %c0_i32_0 = arith.constant 0 : i32
    %c0_i32_1 = arith.constant 0 : i32
    return %c0_i32, %c0_i32_0 : i32, i32
  }
  func.func @transform_8(%arg0: i32, %arg1: i32) -> (i32, i32) {
    %c0_i32 = arith.constant 0 : i32
    %c0_i32_0 = arith.constant 0 : i32
    %c0_i32_1 = arith.constant 0 : i32
    return %c0_i32, %c0_i32_0 : i32, i32
  }
  func.func @transform_9(%arg0: i32, %arg1: i32) -> (i32, i32) {
    %c0_i32 = arith.constant 0 : i32
    %c0_i32_0 = arith.constant 0 : i32
    %c0_i32_1 = arith.constant 0 : i32
    return %c0_i32, %c0_i32_0 : i32, i32
  }
  func.func @transform_10(%arg0: i32, %arg1: i32) -> (i32, i32) {
    %c0_i32 = arith.constant 0 : i32
    %c0_i32_0 = arith.constant 0 : i32
    %c0_i32_1 = arith.constant 0 : i32
    return %c0_i32, %c0_i32_0 : i32, i32
  }
  func.func @transform_11(%arg0: i32, %arg1: i32) -> (i32, i32) {
    %c0_i32 = arith.constant 0 : i32
    %c0_i32_0 = arith.constant 0 : i32
    %c0_i32_1 = arith.constant 0 : i32
    return %c0_i32, %c0_i32_0 : i32, i32
  }
  func.func @transform_12(%arg0: i32, %arg1: i32) -> (i32, i32) {
    %c0_i32 = arith.constant 0 : i32
    %c0_i32_0 = arith.constant 0 : i32
    %c0_i32_1 = arith.constant 0 : i32
    return %c0_i32, %c0_i32_0 : i32, i32
  }
  func.func @transform_13(%arg0: i32, %arg1: i32) -> (i32, i32, i32) {
    %c0_i32 = arith.constant 0 : i32
    %c0_i32_0 = arith.constant 0 : i32
    %c0_i32_1 = arith.constant 0 : i32
    return %arg0, %c0_i32, %c0_i32_0 : i32, i32, i32
  }
}

</mosaic_0001>

<llo_original>
// kernel: tpu_custom_call.1
$region0: #{tpu_custom_call.1}
  #allocation0 [shape = 'u32[]', space=smem, size = 0x4, offset = 0x4, fixed_abs, tag = 'smem constant byte address 0x4 - core index']
  #allocation1 [shape = 'u32[144,128]{1,0:T(1,128)}', space=vmem, size = 0x12000, scoped, tag = 'internal scratch']
  #allocation2 [shape = 'f32[1,512]{1,0:T(1,128)}', space=vmem, size = 0x800, scoped, tag = 'scratch operand']
  %s0 = inlined_call_operand.vmem [shape: f32[2,512,3], index: 0, kind: input, shape index: {}]
  %s1 = inlined_call_operand.vmem [shape: f32[3,64], index: 1, kind: input, shape index: {}]
  %s2 = inlined_call_operand.vmem [shape: f32[1,64], index: 2, kind: input, shape index: {}]
  %s3 = inlined_call_operand.vmem [shape: bf16[64,128], index: 3, kind: input, shape index: {}]
  %s4 = inlined_call_operand.vmem [shape: f32[1,128], index: 4, kind: input, shape index: {}]
  %s5 = inlined_call_operand.hbm [shape: bf16[128,512], index: 5, kind: input, shape index: {}]
  %s6 = inlined_call_operand.vmem [shape: f32[1,512], index: 6, kind: input, shape index: {}]
  %s7 = inlined_call_operand.hbm [shape: f32[512,512], index: 7, kind: input, shape index: {}]
  %s8 = inlined_call_operand.vmem [shape: f32[1,512], index: 8, kind: input, shape index: {}]
  %s9 = inlined_call_operand.vmem [shape: f32[512,256], index: 9, kind: input, shape index: {}]
  %s10 = inlined_call_operand.vmem [shape: f32[1,256], index: 10, kind: input, shape index: {}]
  %s11 = inlined_call_operand.hbm [shape: f32[256,128], index: 11, kind: input, shape index: {}]
  %s12 = inlined_call_operand.vmem [shape: f32[1,128], index: 12, kind: input, shape index: {}]
  %s13 = inlined_call_operand.hbm [shape: f32[2,1,128], index: 13, kind: output, shape index: {}]
  %s14 = sld [smem:[#allocation0]]
  $region105: #{tpu_custom_call.1} parent=0
    _
  %s16 = ssub.s32 1, %s14
  %s17 = scalar_select 0, %s16, %s14
  $region1: #{tpu_custom_call.1} parent=0
    #allocation3 [shape = 'u8[131072]{0}', space=vmem, size = 0x20000, scoped, tag = 'input window, operand 5, single buffered']
    #allocation4 [shape = 's32[2]{0}', space=sflag, size = 0x8, scoped, tag = 'scoped memory for tpu_custom_call.1']
    #allocation5 [shape = 's32[2]{0}', space=sflag, size = 0x8, scoped, tag = 'scoped memory for tpu_custom_call.1']
    #allocation6 [shape = 'u8[1048576]{0}', space=vmem, size = 0x100000, scoped, tag = 'input window, operand 7, single buffered']
    #allocation7 [shape = 's32[1]{0}', space=sflag, size = 0x4, scoped, tag = 'scoped memory for tpu_custom_call.1']
    #allocation8 [shape = 'u8[131072]{0}', space=vmem, size = 0x20000, scoped, tag = 'input window, operand 11, single buffered']
    #allocation9 [shape = 'u8[1024]{0}', space=vmem, size = 0x400, scoped, tag = 'output window, operand 0']
    %18 = vsyncpa [#allocation4], 0
    %19 = vsyncpa [#allocation7], 0
    %20 = vsyncpa [#allocation5], 0
    %s21 = scalar_lea.sflag [#allocation5], 1
    %22 = vsyncpa %s21, 0
    loop: start=0, step=1, limit=4
    $region2: #{tpu_custom_call.1} parent=1 // loop_pre_header
      _
    $region3: #{tpu_custom_call.1} parent=1 // loop_header
      %s24 = sphi 0, %s28
      %p25 = scmp.ge.s32.totalorder %s24, 4
      %s31 = sphi 0, %s43
      %s32 = sphi 0, %s39
      %s33 = sphi 0, %s31
      %s34 = sphi 0, %s32
      %s35 = sphi 0, %s33
      %s36 = sphi 0, %s34
      %s48 = sphi 0, %s50
      %s51 = sphi 0, %s48
      %s52 = sphi 0, %s51
      %s68 = sphi 0, %s52
      %s72 = sphi 0, %s72
      %s74 = sphi 0, %s72
      %s75 = sphi 0, %s74
      %s89 = sphi 0, %s75
      %s93 = sphi 0, %s93
      %s95 = sphi 0, %s93
      %s96 = sphi 0, %s95
      %s110 = sphi 0, %s96
      %s114 = sphi 0, %s114
      %s116 = sphi 0, %s114
      %s117 = sphi 0, %s116
      %s131 = sphi 0, %s117
      %s135 = sphi 0, %s135
      %s137 = sphi 0, %s135
      %s138 = sphi 0, %s137
      %s152 = sphi 0, %s138
      %s156 = sphi 0, %s156
      %s158 = sphi 0, %s156
      %s159 = sphi 0, %s158
      %s173 = sphi 0, %s159
      %s177 = sphi 0, %s177
      %s179 = sphi 0, %s177
      %s180 = sphi 0, %s179
      %s194 = sphi 0, %s180
      %s198 = sphi 0, %s198
      %s200 = sphi 0, %s198
      %s201 = sphi 0, %s200
      %s215 = sphi 0, %s201
      %s219 = sphi 0, %s219
      %s221 = sphi 0, %s219
      %s222 = sphi 0, %s221
      %s236 = sphi 0, %s222
      %s240 = sphi 0, %s240
      %s242 = sphi 0, %s240
      %s243 = sphi 0, %s242
      %s257 = sphi 0, %s243
      %s261 = sphi 0, %s261
      %s263 = sphi 0, %s261
      %s264 = sphi 0, %s263
      %s278 = sphi 0, %s264
      %s282 = sphi 0, %s282
      %s284 = sphi 0, %s282
      %s285 = sphi 0, %s284
      %s299 = sphi 0, %s285
      %s303 = sphi 0, %s303
      %s305 = sphi 0, %s303
      %s306 = sphi 0, %s305
      %s320 = sphi 0, %s306
      %s326 = sphi 0, %s328
      %s329 = sphi 0, %s326
      %s330 = sphi 0, %s329
      %s346 = sphi 0, %s330
    $region4: #{tpu_custom_call.1} parent=1 // loop_header_branch
      %27 = sbr.rel (%p25) target = $region8
    $region5: #{tpu_custom_call.1} parent=1 // loop_body
      %s29 = ssub.s32 %s24, 1
      %s30 = ssub.s32 %s24, 2
      %s37 = sadd.s32 1, %s32
      %p38 = scmp.ge.s32.totalorder %s37, 1
      %s39 = scalar_select %p38, 0, %s37
      %s40 = sadd.s32 1, %s31
      %s41 = scalar_select %p38, %s40, %s31
      %p42 = scmp.ge.s32.totalorder %s41, 2
      %s43 = scalar_select %p42, 0, %s41
      %s44 = ssub.s32 %s31, %s43
      %s45 = ssub.s32 %s32, %s39
      %s46 = sor.u32 %s44, %s45
      %p47 = scmp.eq.s32.totalorder %s46, 0
      %s49 = sadd.s32 %s48, 1
      %s50 = scalar_select %p47, %s48, %s49
      %p53 = pneg %p47
      %p54 = scmp.eq.s32.totalorder %s24, 1
      %p55 = por %p53, %p54
      %p56 = scmp.ne.s32.totalorder %s48, %s51
      %p57 = scmp.eq.s32.totalorder %s24, 0
      %p58 = por %p56, %p57
      %p59 = scmp.ne.s32.totalorder %s48, %s51
      %p60 = scmp.eq.s32.totalorder %s29, 1
      %p61 = por %p59, %p60
      %p62 = scmp.ne.s32.totalorder %s51, %s52
      %p63 = scmp.eq.s32.totalorder %s29, 0
      %p64 = por %p62, %p63
      %p65 = scmp.ne.s32.totalorder %s51, %s52
      %p66 = scmp.eq.s32.totalorder %s30, 1
      %p67 = por %p65, %p66
      %p69 = scmp.ne.s32.totalorder %s52, %s68
      %p70 = scmp.eq.s32.totalorder %s30, 0
      %p71 = por %p69, %p70
      %s73 = sadd.s32 %s72, 1
      %p76 = scmp.eq.s32.totalorder %s24, 1
      %p77 = scmp.ne.s32.totalorder %s72, %s74
      %p78 = scmp.eq.s32.totalorder %s24, 0
      %p79 = por %p77, %p78
      %p80 = scmp.ne.s32.totalorder %s72, %s74
      %p81 = scmp.eq.s32.totalorder %s29, 1
      %p82 = por %p80, %p81
      %p83 = scmp.ne.s32.totalorder %s74, %s75
      %p84 = scmp.eq.s32.totalorder %s29, 0
      %p85 = por %p83, %p84
      %p86 = scmp.ne.s32.totalorder %s74, %s75
      %p87 = scmp.eq.s32.totalorder %s30, 1
      %p88 = por %p86, %p87
      %p90 = scmp.ne.s32.totalorder %s75, %s89
      %p91 = scmp.eq.s32.totalorder %s30, 0
      %p92 = por %p90, %p91
      %s94 = sadd.s32 %s93, 1
      %p97 = scmp.eq.s32.totalorder %s24, 1
      %p98 = scmp.ne.s32.totalorder %s93, %s95
      %p99 = scmp.eq.s32.totalorder %s24, 0
      %p100 = por %p98, %p99
      %p101 = scmp.ne.s32.totalorder %s93, %s95
      %p102 = scmp.eq.s32.totalorder %s29, 1
      %p103 = por %p101, %p102
      %p104 = scmp.ne.s32.totalorder %s95, %s96
      %p105 = scmp.eq.s32.totalorder %s29, 0
      %p106 = por %p104, %p105
      %p107 = scmp.ne.s32.totalorder %s95, %s96
      %p108 = scmp.eq.s32.totalorder %s30, 1
      %p109 = por %p107, %p108
      %p111 = scmp.ne.s32.totalorder %s96, %s110
      %p112 = scmp.eq.s32.totalorder %s30, 0
      %p113 = por %p111, %p112
      %s115 = sadd.s32 %s114, 1
      %p118 = scmp.eq.s32.totalorder %s24, 1
      %p119 = scmp.ne.s32.totalorder %s114, %s116
      %p120 = scmp.eq.s32.totalorder %s24, 0
      %p121 = por %p119, %p120
      %p122 = scmp.ne.s32.totalorder %s114, %s116
      %p123 = scmp.eq.s32.totalorder %s29, 1
      %p124 = por %p122, %p123
      %p125 = scmp.ne.s32.totalorder %s116, %s117
      %p126 = scmp.eq.s32.totalorder %s29, 0
      %p127 = por %p125, %p126
      %p128 = scmp.ne.s32.totalorder %s116, %s117
      %p129 = scmp.eq.s32.totalorder %s30, 1
      %p130 = por %p128, %p129
      %p132 = scmp.ne.s32.totalorder %s117, %s131
      %p133 = scmp.eq.s32.totalorder %s30, 0
      %p134 = por %p132, %p133
      %s136 = sadd.s32 %s135, 1
      %p139 = scmp.eq.s32.totalorder %s24, 1
      %p140 = scmp.ne.s32.totalorder %s135, %s137
      %p141 = scmp.eq.s32.totalorder %s24, 0
      %p142 = por %p140, %p141
      %p143 = scmp.ne.s32.totalorder %s135, %s137
      %p144 = scmp.eq.s32.totalorder %s29, 1
      %p145 = por %p143, %p144
      %p146 = scmp.ne.s32.totalorder %s137, %s138
      %p147 = scmp.eq.s32.totalorder %s29, 0
      %p148 = por %p146, %p147
      %p149 = scmp.ne.s32.totalorder %s137, %s138
      %p150 = scmp.eq.s32.totalorder %s30, 1
      %p151 = por %p149, %p150
      %p153 = scmp.ne.s32.totalorder %s138, %s152
      %p154 = scmp.eq.s32.totalorder %s30, 0
      %p155 = por %p153, %p154
      %s157 = sadd.s32 %s156, 1
      %p160 = scmp.eq.s32.totalorder %s24, 1
      %p161 = scmp.ne.s32.totalorder %s156, %s158
      %p162 = scmp.eq.s32.totalorder %s24, 0
      %p163 = por %p161, %p162
      %p164 = scmp.ne.s32.totalorder %s156, %s158
      %p165 = scmp.eq.s32.totalorder %s29, 1
      %p166 = por %p164, %p165
      %p167 = scmp.ne.s32.totalorder %s158, %s159
      %p168 = scmp.eq.s32.totalorder %s29, 0
      %p169 = por %p167, %p168
      %p170 = scmp.ne.s32.totalorder %s158, %s159
      %p171 = scmp.eq.s32.totalorder %s30, 1
      %p172 = por %p170, %p171
      %p174 = scmp.ne.s32.totalorder %s159, %s173
      %p175 = scmp.eq.s32.totalorder %s30, 0
      %p176 = por %p174, %p175
      %s178 = sadd.s32 %s177, 1
      %p181 = scmp.eq.s32.totalorder %s24, 1
      %p182 = scmp.ne.s32.totalorder %s177, %s179
      %p183 = scmp.eq.s32.totalorder %s24, 0
      %p184 = por %p182, %p183
      %p185 = scmp.ne.s32.totalorder %s177, %s179
      %p186 = scmp.eq.s32.totalorder %s29, 1
      %p187 = por %p185, %p186
      %p188 = scmp.ne.s32.totalorder %s179, %s180
      %p189 = scmp.eq.s32.totalorder %s29, 0
      %p190 = por %p188, %p189
      %p191 = scmp.ne.s32.totalorder %s179, %s180
      %p192 = scmp.eq.s32.totalorder %s30, 1
      %p193 = por %p191, %p192
      %p195 = scmp.ne.s32.totalorder %s180, %s194
      %p196 = scmp.eq.s32.totalorder %s30, 0
      %p197 = por %p195, %p196
      %s199 = sadd.s32 %s198, 1
      %p202 = scmp.eq.s32.totalorder %s24, 1
      %p203 = scmp.ne.s32.totalorder %s198, %s200
      %p204 = scmp.eq.s32.totalorder %s24, 0
      %p205 = por %p203, %p204
      %p206 = scmp.ne.s32.totalorder %s198, %s200
      %p207 = scmp.eq.s32.totalorder %s29, 1
      %p208 = por %p206, %p207
      %p209 = scmp.ne.s32.totalorder %s200, %s201
      %p210 = scmp.eq.s32.totalorder %s29, 0
      %p211 = por %p209, %p210
      %p212 = scmp.ne.s32.totalorder %s200, %s201
      %p213 = scmp.eq.s32.totalorder %s30, 1
      %p214 = por %p212, %p213
      %p216 = scmp.ne.s32.totalorder %s201, %s215
      %p217 = scmp.eq.s32.totalorder %s30, 0
      %p218 = por %p216, %p217
      %s220 = sadd.s32 %s219, 1
      %p223 = scmp.eq.s32.totalorder %s24, 1
      %p224 = scmp.ne.s32.totalorder %s219, %s221
      %p225 = scmp.eq.s32.totalorder %s24, 0
      %p226 = por %p224, %p225
      %p227 = scmp.ne.s32.totalorder %s219, %s221
      %p228 = scmp.eq.s32.totalorder %s29, 1
      %p229 = por %p227, %p228
      %p230 = scmp.ne.s32.totalorder %s221, %s222
      %p231 = scmp.eq.s32.totalorder %s29, 0
      %p232 = por %p230, %p231
      %p233 = scmp.ne.s32.totalorder %s221, %s222
      %p234 = scmp.eq.s32.totalorder %s30, 1
      %p235 = por %p233, %p234
      %p237 = scmp.ne.s32.totalorder %s222, %s236
      %p238 = scmp.eq.s32.totalorder %s30, 0
      %p239 = por %p237, %p238
      %s241 = sadd.s32 %s240, 1
      %p244 = scmp.eq.s32.totalorder %s24, 1
      %p245 = scmp.ne.s32.totalorder %s240, %s242
      %p246 = scmp.eq.s32.totalorder %s24, 0
      %p247 = por %p245, %p246
      %p248 = scmp.ne.s32.totalorder %s240, %s242
      %p249 = scmp.eq.s32.totalorder %s29, 1
      %p250 = por %p248, %p249
      %p251 = scmp.ne.s32.totalorder %s242, %s243
      %p252 = scmp.eq.s32.totalorder %s29, 0
      %p253 = por %p251, %p252
      %p254 = scmp.ne.s32.totalorder %s242, %s243
      %p255 = scmp.eq.s32.totalorder %s30, 1
      %p256 = por %p254, %p255
      %p258 = scmp.ne.s32.totalorder %s243, %s257
      %p259 = scmp.eq.s32.totalorder %s30, 0
      %p260 = por %p258, %p259
      %s262 = sadd.s32 %s261, 1
      %p265 = scmp.eq.s32.totalorder %s24, 1
      %p266 = scmp.ne.s32.totalorder %s261, %s263
      %p267 = scmp.eq.s32.totalorder %s24, 0
      %p268 = por %p266, %p267
      %p269 = scmp.ne.s32.totalorder %s261, %s263
      %p270 = scmp.eq.s32.totalorder %s29, 1
      %p271 = por %p269, %p270
      %p272 = scmp.ne.s32.totalorder %s263, %s264
      %p273 = scmp.eq.s32.totalorder %s29, 0
      %p274 = por %p272, %p273
      %p275 = scmp.ne.s32.totalorder %s263, %s264
      %p276 = scmp.eq.s32.totalorder %s30, 1
      %p277 = por %p275, %p276
      %p279 = scmp.ne.s32.totalorder %s264, %s278
      %p280 = scmp.eq.s32.totalorder %s30, 0
      %p281 = por %p279, %p280
      %s283 = sadd.s32 %s282, 1
      %p286 = scmp.eq.s32.totalorder %s24, 1
      %p287 = scmp.ne.s32.totalorder %s282, %s284
      %p288 = scmp.eq.s32.totalorder %s24, 0
      %p289 = por %p287, %p288
      %p290 = scmp.ne.s32.totalorder %s282, %s284
      %p291 = scmp.eq.s32.totalorder %s29, 1
      %p292 = por %p290, %p291
      %p293 = scmp.ne.s32.totalorder %s284, %s285
      %p294 = scmp.eq.s32.totalorder %s29, 0
      %p295 = por %p293, %p294
      %p296 = scmp.ne.s32.totalorder %s284, %s285
      %p297 = scmp.eq.s32.totalorder %s30, 1
      %p298 = por %p296, %p297
      %p300 = scmp.ne.s32.totalorder %s285, %s299
      %p301 = scmp.eq.s32.totalorder %s30, 0
      %p302 = por %p300, %p301
      %s304 = sadd.s32 %s303, 1
      %p307 = scmp.eq.s32.totalorder %s24, 1
      %p308 = scmp.ne.s32.totalorder %s303, %s305
      %p309 = scmp.eq.s32.totalorder %s24, 0
      %p310 = por %p308, %p309
      %p311 = scmp.ne.s32.totalorder %s303, %s305
      %p312 = scmp.eq.s32.totalorder %s29, 1
      %p313 = por %p311, %p312
      %p314 = scmp.ne.s32.totalorder %s305, %s306
      %p315 = scmp.eq.s32.totalorder %s29, 0
      %p316 = por %p314, %p315
      %p317 = scmp.ne.s32.totalorder %s305, %s306
      %p318 = scmp.eq.s32.totalorder %s30, 1
      %p319 = por %p317, %p318
      %p321 = scmp.ne.s32.totalorder %s306, %s320
      %p322 = scmp.eq.s32.totalorder %s30, 0
      %p323 = por %p321, %p322
      %s324 = ssub.s32 %s31, %s43
      %p325 = scmp.eq.s32.totalorder %s324, 0
      %s327 = sadd.s32 %s326, 1
      %s328 = scalar_select %p325, %s326, %s327
      %p331 = pneg %p325
      %p332 = scmp.eq.s32.totalorder %s24, 1
      %p333 = por %p331, %p332
      %p334 = scmp.ne.s32.totalorder %s326, %s329
      %p335 = scmp.eq.s32.totalorder %s24, 0
      %p336 = por %p334, %p335
      %p337 = scmp.ne.s32.totalorder %s326, %s329
      %p338 = scmp.eq.s32.totalorder %s29, 1
      %p339 = por %p337, %p338
      %p340 = scmp.ne.s32.totalorder %s329, %s330
      %p341 = scmp.eq.s32.totalorder %s29, 0
      %p342 = por %p340, %p341
      %p343 = scmp.ne.s32.totalorder %s329, %s330
      %p344 = scmp.eq.s32.totalorder %s30, 1
      %p345 = por %p343, %p344
      %p347 = scmp.ne.s32.totalorder %s330, %s346
      %p348 = scmp.eq.s32.totalorder %s30, 0
      %p349 = por %p347, %p348
      %p350 = scmp.le.s32.totalorder 1, %s24
      %p351 = scmp.lt.s32.totalorder %s24, 3
      %p352 = pnand %p350, %p351
      %p353 = pneg %p352
      // Predicated region
      $region9: #{tpu_custom_call.1} parent=5 // pred_check
        _
      $region10: #{tpu_custom_call.1} parent=5 // pred_check_branch
        %355 = sbr.rel (%p352) target = $region12
      $region11: #{tpu_custom_call.1} parent=5 // pred_region
        %s356 = ssub.s32 %s24, 1
        // Predicated region
        $region13: #{tpu_custom_call.1} parent=11 // pred_check
          %p357 = pneg %p85
        $region14: #{tpu_custom_call.1} parent=11 // pred_check_branch
          %359 = sbr.rel (%p357) target = $region16
        $region15: #{tpu_custom_call.1} parent=11 // pred_region
          _
        $region16: #{tpu_custom_call.1} parent=11 // pred_fallthru
          _
        // Predicated region
        $region17: #{tpu_custom_call.1} parent=11 // pred_check
          %p360 = pneg %p106
        $region18: #{tpu_custom_call.1} parent=11 // pred_check_branch
          %362 = sbr.rel (%p360) target = $region20
        $region19: #{tpu_custom_call.1} parent=11 // pred_region
          _
        $region20: #{tpu_custom_call.1} parent=11 // pred_fallthru
          _
        // Predicated region
        $region21: #{tpu_custom_call.1} parent=11 // pred_check
          %p363 = pneg %p127
        $region22: #{tpu_custom_call.1} parent=11 // pred_check_branch
          %365 = sbr.rel (%p363) target = $region24
        $region23: #{tpu_custom_call.1} parent=11 // pred_region
          _
        $region24: #{tpu_custom_call.1} parent=11 // pred_fallthru
          _
        // Predicated region
        $region25: #{tpu_custom_call.1} parent=11 // pred_check
          %p366 = pneg %p148
        $region26: #{tpu_custom_call.1} parent=11 // pred_check_branch
          %368 = sbr.rel (%p366) target = $region28
        $region27: #{tpu_custom_call.1} parent=11 // pred_region
          _
        $region28: #{tpu_custom_call.1} parent=11 // pred_fallthru
          _
        // Predicated region
        $region29: #{tpu_custom_call.1} parent=11 // pred_check
          %p369 = pneg %p169
        $region30: #{tpu_custom_call.1} parent=11 // pred_check_branch
          %371 = sbr.rel (%p369) target = $region32
        $region31: #{tpu_custom_call.1} parent=11 // pred_region
          %s373 = ssub.s32 4096, 4096
          %374 = vsyncadd [#allocation4], %s373
          %s375 = sshll.u32 [#allocation3], 4
          %s376 = int_to_ptr.vmem [resolvable:$true] %s375
          %381 = dma.hbm_to_vmem [thread:$0]  %s5, 4096, %s376, [#allocation4], 256, 256, 16
        $region32: #{tpu_custom_call.1} parent=11 // pred_fallthru
          _
        // Predicated region
        $region33: #{tpu_custom_call.1} parent=11 // pred_check
          %p382 = pneg %p190
        $region34: #{tpu_custom_call.1} parent=11 // pred_check_branch
          %384 = sbr.rel (%p382) target = $region36
        $region35: #{tpu_custom_call.1} parent=11 // pred_region
          _
        $region36: #{tpu_custom_call.1} parent=11 // pred_fallthru
          _
        // Predicated region
        $region37: #{tpu_custom_call.1} parent=11 // pred_check
          %p385 = pneg %p211
        $region38: #{tpu_custom_call.1} parent=11 // pred_check_branch
          %387 = sbr.rel (%p385) target = $region40
        $region39: #{tpu_custom_call.1} parent=11 // pred_region
          %s389 = ssub.s32 32768, 32768
          %390 = vsyncadd [#allocation7], %s389
          %s391 = sshll.u32 [#allocation6], 4
          %s392 = int_to_ptr.vmem [resolvable:$true] %s391
          %397 = dma.hbm_to_vmem [thread:$0]  %s7, 32768, %s392, [#allocation7], 512, 512, 32
        $region40: #{tpu_custom_call.1} parent=11 // pred_fallthru
          _
        // Predicated region
        $region41: #{tpu_custom_call.1} parent=11 // pred_check
          %p398 = pneg %p232
        $region42: #{tpu_custom_call.1} parent=11 // pred_check_branch
          %400 = sbr.rel (%p398) target = $region44
        $region43: #{tpu_custom_call.1} parent=11 // pred_region
          _
        $region44: #{tpu_custom_call.1} parent=11 // pred_fallthru
          _
        // Predicated region
        $region45: #{tpu_custom_call.1} parent=11 // pred_check
          %p401 = pneg %p253
        $region46: #{tpu_custom_call.1} parent=11 // pred_check_branch
          %403 = sbr.rel (%p401) target = $region48
        $region47: #{tpu_custom_call.1} parent=11 // pred_region
          _
        $region48: #{tpu_custom_call.1} parent=11 // pred_fallthru
          _
        // Predicated region
        $region49: #{tpu_custom_call.1} parent=11 // pred_check
          %p404 = pneg %p274
        $region50: #{tpu_custom_call.1} parent=11 // pred_check_branch
          %406 = sbr.rel (%p404) target = $region52
        $region51: #{tpu_custom_call.1} parent=11 // pred_region
          _
        $region52: #{tpu_custom_call.1} parent=11 // pred_fallthru
          _
        // Predicated region
        $region53: #{tpu_custom_call.1} parent=11 // pred_check
          %p407 = pneg %p295
        $region54: #{tpu_custom_call.1} parent=11 // pred_check_branch
          %409 = sbr.rel (%p407) target = $region56
        $region55: #{tpu_custom_call.1} parent=11 // pred_region
          %s411 = ssub.s32 4096, 4096
          %412 = vsyncadd [#allocation7], %s411
          %s413 = sshll.u32 [#allocation8], 4
          %s414 = int_to_ptr.vmem [resolvable:$true] %s413
          %419 = dma.hbm_to_vmem [thread:$0]  %s11, 4096, %s414, [#allocation7], 128, 128, 8
        $region56: #{tpu_custom_call.1} parent=11 // pred_fallthru
          _
        // Predicated region
        $region57: #{tpu_custom_call.1} parent=11 // pred_check
          %p420 = pneg %p316
        $region58: #{tpu_custom_call.1} parent=11 // pred_check_branch
          %422 = sbr.rel (%p420) target = $region60
        $region59: #{tpu_custom_call.1} parent=11 // pred_region
          _
        $region60: #{tpu_custom_call.1} parent=11 // pred_fallthru
          _
      $region12: #{tpu_custom_call.1} parent=5 // pred_fallthru
        _
      %p423 = scmp.lt.s32.totalorder %s24, 2
      // Predicated region
      $region61: #{tpu_custom_call.1} parent=5 // pred_check
        %p424 = pneg %p423
      $region62: #{tpu_custom_call.1} parent=5 // pred_check_branch
        %426 = sbr.rel (%p424) target = $region64
      $region63: #{tpu_custom_call.1} parent=5 // pred_region
        // Predicated region
        $region65: #{tpu_custom_call.1} parent=63 // pred_check
          %p427 = pneg %p58
        $region66: #{tpu_custom_call.1} parent=63 // pred_check_branch
          %429 = sbr.rel (%p427) target = $region68
        $region67: #{tpu_custom_call.1} parent=63 // pred_region
          %s430 = smul.u32 64, %s32
          %p431 = scmp.lt.s32.totalorder %s31, 1
          %s432 = scalar_select %p431, %s31, 1
          %p433 = scmp.lt.s32.totalorder %s430, 63
          %s434 = scalar_select %p433, %s430, 63
          %s435 = smul.addr %s432, 64
          %s436 = sadd.s32 %s434, %s435
          %s437 = smul.addr %s436, 8
          %s438 = scalar_lea.vmem %s0, %s437
          %s439 = smul.u32 64, %s32
        $region68: #{tpu_custom_call.1} parent=63 // pred_fallthru
          _
      $region64: #{tpu_custom_call.1} parent=5 // pred_fallthru
        _
      %p440 = scmp.le.s32.totalorder 1, %s24
      %p441 = scmp.lt.s32.totalorder %s24, 3
      %p442 = pnand %p440, %p441
      %p443 = pneg %p442
      // Predicated region
      $region69: #{tpu_custom_call.1} parent=5 // pred_check
        _
      $region70: #{tpu_custom_call.1} parent=5 // pred_check_branch
        %445 = sbr.rel (%p442) target = $region72
      $region71: #{tpu_custom_call.1} parent=5 // pred_region
        %s446 = ssub.s32 %s24, 1
        // Predicated region
        $region73: #{tpu_custom_call.1} parent=71 // pred_check
          %p447 = pneg %p169
        $region74: #{tpu_custom_call.1} parent=71 // pred_check_branch
          %449 = sbr.rel (%p447) target = $region76
        $region75: #{tpu_custom_call.1} parent=71 // pred_region
          %450 = dma.done [#allocation4], 4096
        $region76: #{tpu_custom_call.1} parent=71 // pred_fallthru
          _
        // Predicated region
        $region77: #{tpu_custom_call.1} parent=71 // pred_check
          %p451 = pneg %p211
        $region78: #{tpu_custom_call.1} parent=71 // pred_check_branch
          %453 = sbr.rel (%p451) target = $region80
        $region79: #{tpu_custom_call.1} parent=71 // pred_region
          %454 = dma.done [#allocation7], 32768
        $region80: #{tpu_custom_call.1} parent=71 // pred_fallthru
          _
        // Predicated region
        $region81: #{tpu_custom_call.1} parent=71 // pred_check
          %p455 = pneg %p295
        $region82: #{tpu_custom_call.1} parent=71 // pred_check_branch
          %457 = sbr.rel (%p455) target = $region84
        $region83: #{tpu_custom_call.1} parent=71 // pred_region
          %458 = dma.done [#allocation7], 4096
        $region84: #{tpu_custom_call.1} parent=71 // pred_fallthru
          _
        %s459 = smul.u32 64, %s34
        %p460 = scmp.lt.s32.totalorder %s33, 1
        %s461 = scalar_select %p460, %s33, 1
        %p462 = scmp.lt.s32.totalorder %s459, 63
        %s463 = scalar_select %p462, %s459, 63
        %s464 = smul.addr %s461, 64
        %s465 = sadd.s32 %s463, %s464
        %s466 = smul.addr %s465, 8
        %s467 = scalar_lea.vmem %s0, %s466
        %p468 = pneg %p64
        %p469 = pneg %p61
        %p470 = pneg %p85
        %p471 = pneg %p82
        %p472 = pneg %p106
        %p473 = pneg %p103
        %p474 = pneg %p127
        %p475 = pneg %p124
        %p476 = pneg %p148
        %p477 = pneg %p145
        %p478 = pneg %p169
        %p479 = pneg %p166
        %p480 = pneg %p190
        %p481 = pneg %p187
        %p482 = pneg %p211
        %p483 = pneg %p208
        %p484 = pneg %p232
        %p485 = pneg %p229
        %p486 = pneg %p253
        %p487 = pneg %p250
        %p488 = pneg %p274
        %p489 = pneg %p271
        %p490 = pneg %p295
        %p491 = pneg %p292
        %p492 = pneg %p316
        %p493 = pneg %p313
        %p494 = pneg %p342
        %p495 = pneg %p339
        %s496 = sand.u32 %s329, 1
        %s497 = scalar_lea.sflag [#allocation5], %s496
        %s498 = sand.u32 %s329, 1
        %s499 = scalar_lea.vmem [#allocation9], %s498
        %s500 = smul.u32 64, %s34
        %p501 = scmp.lt.s32.totalorder %s33, 1
        %s502 = scalar_select %p501, %s33, 1
        %p503 = scmp.lt.s32.totalorder %s500, 63
        %s504 = scalar_select %p503, %s500, 63
        %s505 = smul.addr %s502, 64
        %s506 = sadd.s32 %s504, %s505
        %s507 = smul.addr %s506, 8
        %s508 = scalar_lea.vmem %s0, %s507
        %s509 = smul.u32 64, %s34
        %p511 = scmp.eq.s32.totalorder %s34, 0
        // Predicated region
        $region85: #{tpu_custom_call.1} parent=71 // pred_check
          %p512 = pneg %p511
        $region86: #{tpu_custom_call.1} parent=71 // pred_check_branch
          %514 = sbr.rel (%p512) target = $region88
        $region87: #{tpu_custom_call.1} parent=71 // pred_region
          %v515 = vlaneseq
          %vm516 = vcmp.ge.s32.totalorder %v515, 0
          %vm517 = vcmp.lt.s32.totalorder %v515, 512
          %vm518 = vmand %vm516, %vm517
          %519 = vst.msk [vmem:[#allocation2] sm:$0xf] %vm518, -inf
        $region88: #{tpu_custom_call.1} parent=71 // pred_fallthru
          _
        %v520 = vld [vmem:[%s508] sm:$0xff]
        %v521 = vld [vmem:[%s508 + $0x8] sm:$0xff]
        %v522 = vld [vmem:[%s508 + $0x10] sm:$0xff]
        %v523 = vld [vmem:[%s508 + $0x18] sm:$0xff]
        %v524 = vld [vmem:[%s508 + $0x20] sm:$0xff]
        %v525 = vld [vmem:[%s508 + $0x28] sm:$0xff]
        %v526 = vld [vmem:[%s508 + $0x30] sm:$0xff]
        %v527 = vld [vmem:[%s508 + $0x38] sm:$0xff]
        %v528 = vld [vmem:[%s508 + $0x40] sm:$0xff]
        %v529 = vld [vmem:[%s508 + $0x48] sm:$0xff]
        %v530 = vld [vmem:[%s508 + $0x50] sm:$0xff]
        %v531 = vld [vmem:[%s508 + $0x58] sm:$0xff]
        %v532 = vld [vmem:[%s508 + $0x60] sm:$0xff]
        %v533 = vld [vmem:[%s508 + $0x68] sm:$0xff]
        %v534 = vld [vmem:[%s508 + $0x70] sm:$0xff]
        %v535 = vld [vmem:[%s508 + $0x78] sm:$0xff]
        %v536 = vld [vmem:[%s508 + $0x80] sm:$0xff]
        %v537 = vld [vmem:[%s508 + $0x88] sm:$0xff]
        %v538 = vld [vmem:[%s508 + $0x90] sm:$0xff]
        %v539 = vld [vmem:[%s508 + $0x98] sm:$0xff]
        %v540 = vld [vmem:[%s508 + $0xa0] sm:$0xff]
        %v541 = vld [vmem:[%s508 + $0xa8] sm:$0xff]
        %v542 = vld [vmem:[%s508 + $0xb0] sm:$0xff]
        %v543 = vld [vmem:[%s508 + $0xb8] sm:$0xff]
        %v544 = vld [vmem:[%s508 + $0xc0] sm:$0xff]
        %v545 = vld [vmem:[%s508 + $0xc8] sm:$0xff]
        %v546 = vld [vmem:[%s508 + $0xd0] sm:$0xff]
        %v547 = vld [vmem:[%s508 + $0xd8] sm:$0xff]
        %v548 = vld [vmem:[%s508 + $0xe0] sm:$0xff]
        %v549 = vld [vmem:[%s508 + $0xe8] sm:$0xff]
        %v550 = vld [vmem:[%s508 + $0xf0] sm:$0xff]
        %v551 = vld [vmem:[%s508 + $0xf8] sm:$0xff]
        %v552 = vld [vmem:[%s508 + $0x100] sm:$0xff]
        %v553 = vld [vmem:[%s508 + $0x108] sm:$0xff]
        %v554 = vld [vmem:[%s508 + $0x110] sm:$0xff]
        %v555 = vld [vmem:[%s508 + $0x118] sm:$0xff]
        %v556 = vld [vmem:[%s508 + $0x120] sm:$0xff]
        %v557 = vld [vmem:[%s508 + $0x128] sm:$0xff]
        %v558 = vld [vmem:[%s508 + $0x130] sm:$0xff]
        %v559 = vld [vmem:[%s508 + $0x138] sm:$0xff]
        %v560 = vld [vmem:[%s508 + $0x140] sm:$0xff]
        %v561 = vld [vmem:[%s508 + $0x148] sm:$0xff]
        %v562 = vld [vmem:[%s508 + $0x150] sm:$0xff]
        %v563 = vld [vmem:[%s508 + $0x158] sm:$0xff]
        %v564 = vld [vmem:[%s508 + $0x160] sm:$0xff]
        %v565 = vld [vmem:[%s508 + $0x168] sm:$0xff]
        %v566 = vld [vmem:[%s508 + $0x170] sm:$0xff]
        %v567 = vld [vmem:[%s508 + $0x178] sm:$0xff]
        %v568 = vld [vmem:[%s508 + $0x180] sm:$0xff]
        %v569 = vld [vmem:[%s508 + $0x188] sm:$0xff]
        %v570 = vld [vmem:[%s508 + $0x190] sm:$0xff]
        %v571 = vld [vmem:[%s508 + $0x198] sm:$0xff]
        %v572 = vld [vmem:[%s508 + $0x1a0] sm:$0xff]
        %v573 = vld [vmem:[%s508 + $0x1a8] sm:$0xff]
        %v574 = vld [vmem:[%s508 + $0x1b0] sm:$0xff]
        %v575 = vld [vmem:[%s508 + $0x1b8] sm:$0xff]
        %v576 = vld [vmem:[%s508 + $0x1c0] sm:$0xff]
        %v577 = vld [vmem:[%s508 + $0x1c8] sm:$0xff]
        %v578 = vld [vmem:[%s508 + $0x1d0] sm:$0xff]
        %v579 = vld [vmem:[%s508 + $0x1d8] sm:$0xff]
        %v580 = vld [vmem:[%s508 + $0x1e0] sm:$0xff]
        %v581 = vld [vmem:[%s508 + $0x1e8] sm:$0xff]
        %v582 = vld [vmem:[%s508 + $0x1f0] sm:$0xff]
        %v583 = vld [vmem:[%s508 + $0x1f8] sm:$0xff]
        %v584 = vld [vmem:[%s1] sm:$0x7]
        %586 = vset.pattern.permute.xlu0 0
        %587 = vperm.xlu0 %586, %v520
        %v588 = vpop.permute.xlu0 %587
        %591 = vset.pattern.permute.xlu0 0
        %592 = vperm.xlu0 %591, %v521
        %v593 = vpop.permute.xlu0 %592
        %596 = vset.pattern.permute.xlu0 0
        %597 = vperm.xlu0 %596, %v522
        %v598 = vpop.permute.xlu0 %597
        %601 = vset.pattern.permute.xlu0 0
        %602 = vperm.xlu0 %601, %v523
        %v603 = vpop.permute.xlu0 %602
        %606 = vset.pattern.permute.xlu0 0
        %607 = vperm.xlu0 %606, %v524
        %v608 = vpop.permute.xlu0 %607
        %611 = vset.pattern.permute.xlu0 0
        %612 = vperm.xlu0 %611, %v525
        %v613 = vpop.permute.xlu0 %612
        %616 = vset.pattern.permute.xlu0 0
        %617 = vperm.xlu0 %616, %v526
        %v618 = vpop.permute.xlu0 %617
        %621 = vset.pattern.permute.xlu0 0
        %622 = vperm.xlu0 %621, %v527
        %v623 = vpop.permute.xlu0 %622
        %626 = vset.pattern.permute.xlu0 0
        %627 = vperm.xlu0 %626, %v528
        %v628 = vpop.permute.xlu0 %627
        %631 = vset.pattern.permute.xlu0 0
        %632 = vperm.xlu0 %631, %v529
        %v633 = vpop.permute.xlu0 %632
        %636 = vset.pattern.permute.xlu0 0
        %637 = vperm.xlu0 %636, %v530
        %v638 = vpop.permute.xlu0 %637
        %641 = vset.pattern.permute.xlu0 0
        %642 = vperm.xlu0 %641, %v531
        %v643 = vpop.permute.xlu0 %642
        %646 = vset.pattern.permute.xlu0 0
        %647 = vperm.xlu0 %646, %v532
        %v648 = vpop.permute.xlu0 %647
        %651 = vset.pattern.permute.xlu0 0
        %652 = vperm.xlu0 %651, %v533
        %v653 = vpop.permute.xlu0 %652
        %656 = vset.pattern.permute.xlu0 0
        %657 = vperm.xlu0 %656, %v534
        %v658 = vpop.permute.xlu0 %657
        %661 = vset.pattern.permute.xlu0 0
        %662 = vperm.xlu0 %661, %v535
        %v663 = vpop.permute.xlu0 %662
        %666 = vset.pattern.permute.xlu0 0
        %667 = vperm.xlu0 %666, %v536
        %v668 = vpop.permute.xlu0 %667
        %671 = vset.pattern.permute.xlu0 0
        %672 = vperm.xlu0 %671, %v537
        %v673 = vpop.permute.xlu0 %672
        %676 = vset.pattern.permute.xlu0 0
        %677 = vperm.xlu0 %676, %v538
        %v678 = vpop.permute.xlu0 %677
        %681 = vset.pattern.permute.xlu0 0
        %682 = vperm.xlu0 %681, %v539
        %v683 = vpop.permute.xlu0 %682
        %686 = vset.pattern.permute.xlu0 0
        %687 = vperm.xlu0 %686, %v540
        %v688 = vpop.permute.xlu0 %687
        %691 = vset.pattern.permute.xlu0 0
        %692 = vperm.xlu0 %691, %v541
        %v693 = vpop.permute.xlu0 %692
        %696 = vset.pattern.permute.xlu0 0
        %697 = vperm.xlu0 %696, %v542
        %v698 = vpop.permute.xlu0 %697
        %701 = vset.pattern.permute.xlu0 0
        %702 = vperm.xlu0 %701, %v543
        %v703 = vpop.permute.xlu0 %702
        %706 = vset.pattern.permute.xlu0 0
        %707 = vperm.xlu0 %706, %v544
        %v708 = vpop.permute.xlu0 %707
        %711 = vset.pattern.permute.xlu0 0
        %712 = vperm.xlu0 %711, %v545
        %v713 = vpop.permute.xlu0 %712
        %716 = vset.pattern.permute.xlu0 0
        %717 = vperm.xlu0 %716, %v546
        %v718 = vpop.permute.xlu0 %717
        %721 = vset.pattern.permute.xlu0 0
        %722 = vperm.xlu0 %721, %v547
        %v723 = vpop.permute.xlu0 %722
        %726 = vset.pattern.permute.xlu0 0
        %727 = vperm.xlu0 %726, %v548
        %v728 = vpop.permute.xlu0 %727
        %731 = vset.pattern.permute.xlu0 0
        %732 = vperm.xlu0 %731, %v549
        %v733 = vpop.permute.xlu0 %732
        %736 = vset.pattern.permute.xlu0 0
        %737 = vperm.xlu0 %736, %v550
        %v738 = vpop.permute.xlu0 %737
        %741 = vset.pattern.permute.xlu0 0
        %742 = vperm.xlu0 %741, %v551
        %v743 = vpop.permute.xlu0 %742
        %746 = vset.pattern.permute.xlu0 0
        %747 = vperm.xlu0 %746, %v552
        %v748 = vpop.permute.xlu0 %747
        %751 = vset.pattern.permute.xlu0 0
        %752 = vperm.xlu0 %751, %v553
        %v753 = vpop.permute.xlu0 %752
        %756 = vset.pattern.permute.xlu0 0
        %757 = vperm.xlu0 %756, %v554
        %v758 = vpop.permute.xlu0 %757
        %761 = vset.pattern.permute.xlu0 0
        %762 = vperm.xlu0 %761, %v555
        %v763 = vpop.permute.xlu0 %762
        %766 = vset.pattern.permute.xlu0 0
        %767 = vperm.xlu0 %766, %v556
        %v768 = vpop.permute.xlu0 %767
        %771 = vset.pattern.permute.xlu0 0
        %772 = vperm.xlu0 %771, %v557
        %v773 = vpop.permute.xlu0 %772
        %776 = vset.pattern.permute.xlu0 0
        %777 = vperm.xlu0 %776, %v558
        %v778 = vpop.permute.xlu0 %777
        %781 = vset.pattern.permute.xlu0 0
        %782 = vperm.xlu0 %781, %v559
        %v783 = vpop.permute.xlu0 %782
        %786 = vset.pattern.permute.xlu0 0
        %787 = vperm.xlu0 %786, %v560
        %v788 = vpop.permute.xlu0 %787
        %791 = vset.pattern.permute.xlu0 0
        %792 = vperm.xlu0 %791, %v561
        %v793 = vpop.permute.xlu0 %792
        %796 = vset.pattern.permute.xlu0 0
        %797 = vperm.xlu0 %796, %v562
        %v798 = vpop.permute.xlu0 %797
        %801 = vset.pattern.permute.xlu0 0
        %802 = vperm.xlu0 %801, %v563
        %v803 = vpop.permute.xlu0 %802
        %806 = vset.pattern.permute.xlu0 0
        %807 = vperm.xlu0 %806, %v564
        %v808 = vpop.permute.xlu0 %807
        %811 = vset.pattern.permute.xlu0 0
        %812 = vperm.xlu0 %811, %v565
        %v813 = vpop.permute.xlu0 %812
        %816 = vset.pattern.permute.xlu0 0
        %817 = vperm.xlu0 %816, %v566
        %v818 = vpop.permute.xlu0 %817
        %821 = vset.pattern.permute.xlu0 0
        %822 = vperm.xlu0 %821, %v567
        %v823 = vpop.permute.xlu0 %822
        %826 = vset.pattern.permute.xlu0 0
        %827 = vperm.xlu0 %826, %v568
        %v828 = vpop.permute.xlu0 %827
        %831 = vset.pattern.permute.xlu0 0
        %832 = vperm.xlu0 %831, %v569
        %v833 = vpop.permute.xlu0 %832
        %836 = vset.pattern.permute.xlu0 0
        %837 = vperm.xlu0 %836, %v570
        %v838 = vpop.permute.xlu0 %837
        %841 = vset.pattern.permute.xlu0 0
        %842 = vperm.xlu0 %841, %v571
        %v843 = vpop.permute.xlu0 %842
        %846 = vset.pattern.permute.xlu0 0
        %847 = vperm.xlu0 %846, %v572
        %v848 = vpop.permute.xlu0 %847
        %851 = vset.pattern.permute.xlu0 0
        %852 = vperm.xlu0 %851, %v573
        %v853 = vpop.permute.xlu0 %852
        %856 = vset.pattern.permute.xlu0 0
        %857 = vperm.xlu0 %856, %v574
        %v858 = vpop.permute.xlu0 %857
        %861 = vset.pattern.permute.xlu0 0
        %862 = vperm.xlu0 %861, %v575
        %v863 = vpop.permute.xlu0 %862
        %866 = vset.pattern.permute.xlu0 0
        %867 = vperm.xlu0 %866, %v576
        %v868 = vpop.permute.xlu0 %867
        %871 = vset.pattern.permute.xlu0 0
        %872 = vperm.xlu0 %871, %v577
        %v873 = vpop.permute.xlu0 %872
        %876 = vset.pattern.permute.xlu0 0
        %877 = vperm.xlu0 %876, %v578
        %v878 = vpop.permute.xlu0 %877
        %881 = vset.pattern.permute.xlu0 0
        %882 = vperm.xlu0 %881, %v579
        %v883 = vpop.permute.xlu0 %882
        %886 = vset.pattern.permute.xlu0 0
        %887 = vperm.xlu0 %886, %v580
        %v888 = vpop.permute.xlu0 %887
        %891 = vset.pattern.permute.xlu0 0
        %892 = vperm.xlu0 %891, %v581
        %v893 = vpop.permute.xlu0 %892
        %896 = vset.pattern.permute.xlu0 0
        %897 = vperm.xlu0 %896, %v582
        %v898 = vpop.permute.xlu0 %897
        %901 = vset.pattern.permute.xlu0 0
        %902 = vperm.xlu0 %901, %v583
        %v903 = vpop.permute.xlu0 %902
        %v905 = vlaneseq
        %v906 = vshrl.u32 %v905, 7
        %v907 = vsub.s32 0, %v906
        %v908 = vrot.slane %v584, %v907
        %v909 = vmul.f32 %v588, %v908
        %v910 = vmul.f32 %v593, %v908
        %v911 = vmul.f32 %v598, %v908
        %v912 = vmul.f32 %v603, %v908
        %v913 = vmul.f32 %v608, %v908
        %v914 = vmul.f32 %v613, %v908
        %v915 = vmul.f32 %v618, %v908
        %v916 = vmul.f32 %v623, %v908
        %v917 = vmul.f32 %v628, %v908
        %v918 = vmul.f32 %v633, %v908
        %v919 = vmul.f32 %v638, %v908
        %v920 = vmul.f32 %v643, %v908
        %v921 = vmul.f32 %v648, %v908
        %v922 = vmul.f32 %v653, %v908
        %v923 = vmul.f32 %v658, %v908
        %v924 = vmul.f32 %v663, %v908
        %v925 = vmul.f32 %v668, %v908
        %v926 = vmul.f32 %v673, %v908
        %v927 = vmul.f32 %v678, %v908
        %v928 = vmul.f32 %v683, %v908
        %v929 = vmul.f32 %v688, %v908
        %v930 = vmul.f32 %v693, %v908
        %v931 = vmul.f32 %v698, %v908
        %v932 = vmul.f32 %v703, %v908
        %v933 = vmul.f32 %v708, %v908
        %v934 = vmul.f32 %v713, %v908
        %v935 = vmul.f32 %v718, %v908
        %v936 = vmul.f32 %v723, %v908
        %v937 = vmul.f32 %v728, %v908
        %v938 = vmul.f32 %v733, %v908
        %v939 = vmul.f32 %v738, %v908
        %v940 = vmul.f32 %v743, %v908
        %v941 = vmul.f32 %v748, %v908
        %v942 = vmul.f32 %v753, %v908
        %v943 = vmul.f32 %v758, %v908
        %v944 = vmul.f32 %v763, %v908
        %v945 = vmul.f32 %v768, %v908
        %v946 = vmul.f32 %v773, %v908
        %v947 = vmul.f32 %v778, %v908
        %v948 = vmul.f32 %v783, %v908
        %v949 = vmul.f32 %v788, %v908
        %v950 = vmul.f32 %v793, %v908
        %v951 = vmul.f32 %v798, %v908
        %v952 = vmul.f32 %v803, %v908
        %v953 = vmul.f32 %v808, %v908
        %v954 = vmul.f32 %v813, %v908
        %v955 = vmul.f32 %v818, %v908
        %v956 = vmul.f32 %v823, %v908
        %v957 = vmul.f32 %v828, %v908
        %v958 = vmul.f32 %v833, %v908
        %v959 = vmul.f32 %v838, %v908
        %v960 = vmul.f32 %v843, %v908
        %v961 = vmul.f32 %v848, %v908
        %v962 = vmul.f32 %v853, %v908
        %v963 = vmul.f32 %v858, %v908
        %v964 = vmul.f32 %v863, %v908
        %v965 = vmul.f32 %v868, %v908
        %v966 = vmul.f32 %v873, %v908
        %v967 = vmul.f32 %v878, %v908
        %v968 = vmul.f32 %v883, %v908
        %v969 = vmul.f32 %v888, %v908
        %v970 = vmul.f32 %v893, %v908
        %v971 = vmul.f32 %v898, %v908
        %v972 = vmul.f32 %v903, %v908
        %973 = vset.pattern.permute.xlu0 1
        %974 = vperm.xlu0 %973, %v520
        %v975 = vpop.permute.xlu0 %974
        %977 = vset.pattern.permute.xlu0 1
        %978 = vperm.xlu0 %977, %v521
        %v979 = vpop.permute.xlu0 %978
        %981 = vset.pattern.permute.xlu0 1
        %982 = vperm.xlu0 %981, %v522
        %v983 = vpop.permute.xlu0 %982
        %985 = vset.pattern.permute.xlu0 1
        %986 = vperm.xlu0 %985, %v523
        %v987 = vpop.permute.xlu0 %986
        %989 = vset.pattern.permute.xlu0 1
        %990 = vperm.xlu0 %989, %v524
        %v991 = vpop.permute.xlu0 %990
        %993 = vset.pattern.permute.xlu0 1
        %994 = vperm.xlu0 %993, %v525
        %v995 = vpop.permute.xlu0 %994
        %997 = vset.pattern.permute.xlu0 1
        %998 = vperm.xlu0 %997, %v526
        %v999 = vpop.permute.xlu0 %998
        %1001 = vset.pattern.permute.xlu0 1
        %1002 = vperm.xlu0 %1001, %v527
        %v1003 = vpop.permute.xlu0 %1002
        %1005 = vset.pattern.permute.xlu0 1
        %1006 = vperm.xlu0 %1005, %v528
        %v1007 = vpop.permute.xlu0 %1006
        %1009 = vset.pattern.permute.xlu0 1
        %1010 = vperm.xlu0 %1009, %v529
        %v1011 = vpop.permute.xlu0 %1010
        %1013 = vset.pattern.permute.xlu0 1
        %1014 = vperm.xlu0 %1013, %v530
        %v1015 = vpop.permute.xlu0 %1014
        %1017 = vset.pattern.permute.xlu0 1
        %1018 = vperm.xlu0 %1017, %v531
        %v1019 = vpop.permute.xlu0 %1018
        %1021 = vset.pattern.permute.xlu0 1
        %1022 = vperm.xlu0 %1021, %v532
        %v1023 = vpop.permute.xlu0 %1022
        %1025 = vset.pattern.permute.xlu0 1
        %1026 = vperm.xlu0 %1025, %v533
        %v1027 = vpop.permute.xlu0 %1026
        %1029 = vset.pattern.permute.xlu0 1
        %1030 = vperm.xlu0 %1029, %v534
        %v1031 = vpop.permute.xlu0 %1030
        %1033 = vset.pattern.permute.xlu0 1
        %1034 = vperm.xlu0 %1033, %v535
        %v1035 = vpop.permute.xlu0 %1034
        %1037 = vset.pattern.permute.xlu0 1
        %1038 = vperm.xlu0 %1037, %v536
        %v1039 = vpop.permute.xlu0 %1038
        %1041 = vset.pattern.permute.xlu0 1
        %1042 = vperm.xlu0 %1041, %v537
        %v1043 = vpop.permute.xlu0 %1042
        %1045 = vset.pattern.permute.xlu0 1
        %1046 = vperm.xlu0 %1045, %v538
        %v1047 = vpop.permute.xlu0 %1046
        %1049 = vset.pattern.permute.xlu0 1
        %1050 = vperm.xlu0 %1049, %v539
        %v1051 = vpop.permute.xlu0 %1050
        %1053 = vset.pattern.permute.xlu0 1
        %1054 = vperm.xlu0 %1053, %v540
        %v1055 = vpop.permute.xlu0 %1054
        %1057 = vset.pattern.permute.xlu0 1
        %1058 = vperm.xlu0 %1057, %v541
        %v1059 = vpop.permute.xlu0 %1058
        %1061 = vset.pattern.permute.xlu0 1
        %1062 = vperm.xlu0 %1061, %v542
        %v1063 = vpop.permute.xlu0 %1062
        %1065 = vset.pattern.permute.xlu0 1
        %1066 = vperm.xlu0 %1065, %v543
        %v1067 = vpop.permute.xlu0 %1066
        %1069 = vset.pattern.permute.xlu0 1
        %1070 = vperm.xlu0 %1069, %v544
        %v1071 = vpop.permute.xlu0 %1070
        %1073 = vset.pattern.permute.xlu0 1
        %1074 = vperm.xlu0 %1073, %v545
        %v1075 = vpop.permute.xlu0 %1074
        %1077 = vset.pattern.permute.xlu0 1
        %1078 = vperm.xlu0 %1077, %v546
        %v1079 = vpop.permute.xlu0 %1078
        %1081 = vset.pattern.permute.xlu0 1
        %1082 = vperm.xlu0 %1081, %v547
        %v1083 = vpop.permute.xlu0 %1082
        %1085 = vset.pattern.permute.xlu0 1
        %1086 = vperm.xlu0 %1085, %v548
        %v1087 = vpop.permute.xlu0 %1086
        %1089 = vset.pattern.permute.xlu0 1
        %1090 = vperm.xlu0 %1089, %v549
        %v1091 = vpop.permute.xlu0 %1090
        %1093 = vset.pattern.permute.xlu0 1
        %1094 = vperm.xlu0 %1093, %v550
        %v1095 = vpop.permute.xlu0 %1094
        %1097 = vset.pattern.permute.xlu0 1
        %1098 = vperm.xlu0 %1097, %v551
        %v1099 = vpop.permute.xlu0 %1098
        %1101 = vset.pattern.permute.xlu0 1
        %1102 = vperm.xlu0 %1101, %v552
        %v1103 = vpop.permute.xlu0 %1102
        %1105 = vset.pattern.permute.xlu0 1
        %1106 = vperm.xlu0 %1105, %v553
        %v1107 = vpop.permute.xlu0 %1106
        %1109 = vset.pattern.permute.xlu0 1
        %1110 = vperm.xlu0 %1109, %v554
        %v1111 = vpop.permute.xlu0 %1110
        %1113 = vset.pattern.permute.xlu0 1
        %1114 = vperm.xlu0 %1113, %v555
        %v1115 = vpop.permute.xlu0 %1114
        %1117 = vset.pattern.permute.xlu0 1
        %1118 = vperm.xlu0 %1117, %v556
        %v1119 = vpop.permute.xlu0 %1118
        %1121 = vset.pattern.permute.xlu0 1
        %1122 = vperm.xlu0 %1121, %v557
        %v1123 = vpop.permute.xlu0 %1122
        %1125 = vset.pattern.permute.xlu0 1
        %1126 = vperm.xlu0 %1125, %v558
        %v1127 = vpop.permute.xlu0 %1126
        %1129 = vset.pattern.permute.xlu0 1
        %1130 = vperm.xlu0 %1129, %v559
        %v1131 = vpop.permute.xlu0 %1130
        %1133 = vset.pattern.permute.xlu0 1
        %1134 = vperm.xlu0 %1133, %v560
        %v1135 = vpop.permute.xlu0 %1134
        %1137 = vset.pattern.permute.xlu0 1
        %1138 = vperm.xlu0 %1137, %v561
        %v1139 = vpop.permute.xlu0 %1138
        %1141 = vset.pattern.permute.xlu0 1
        %1142 = vperm.xlu0 %1141, %v562
        %v1143 = vpop.permute.xlu0 %1142
        %1145 = vset.pattern.permute.xlu0 1
        %1146 = vperm.xlu0 %1145, %v563
        %v1147 = vpop.permute.xlu0 %1146
        %1149 = vset.pattern.permute.xlu0 1
        %1150 = vperm.xlu0 %1149, %v564
        %v1151 = vpop.permute.xlu0 %1150
        %1153 = vset.pattern.permute.xlu0 1
        %1154 = vperm.xlu0 %1153, %v565
        %v1155 = vpop.permute.xlu0 %1154
        %1157 = vset.pattern.permute.xlu0 1
        %1158 = vperm.xlu0 %1157, %v566
        %v1159 = vpop.permute.xlu0 %1158
        %1161 = vset.pattern.permute.xlu0 1
        %1162 = vperm.xlu0 %1161, %v567
        %v1163 = vpop.permute.xlu0 %1162
        %1165 = vset.pattern.permute.xlu0 1
        %1166 = vperm.xlu0 %1165, %v568
        %v1167 = vpop.permute.xlu0 %1166
        %1169 = vset.pattern.permute.xlu0 1
        %1170 = vperm.xlu0 %1169, %v569
        %v1171 = vpop.permute.xlu0 %1170
        %1173 = vset.pattern.permute.xlu0 1
        %1174 = vperm.xlu0 %1173, %v570
        %v1175 = vpop.permute.xlu0 %1174
        %1177 = vset.pattern.permute.xlu0 1
        %1178 = vperm.xlu0 %1177, %v571
        %v1179 = vpop.permute.xlu0 %1178
        %1181 = vset.pattern.permute.xlu0 1
        %1182 = vperm.xlu0 %1181, %v572
        %v1183 = vpop.permute.xlu0 %1182
        %1185 = vset.pattern.permute.xlu0 1
        %1186 = vperm.xlu0 %1185, %v573
        %v1187 = vpop.permute.xlu0 %1186
        %1189 = vset.pattern.permute.xlu0 1
        %1190 = vperm.xlu0 %1189, %v574
        %v1191 = vpop.permute.xlu0 %1190
        %1193 = vset.pattern.permute.xlu0 1
        %1194 = vperm.xlu0 %1193, %v575
        %v1195 = vpop.permute.xlu0 %1194
        %1197 = vset.pattern.permute.xlu0 1
        %1198 = vperm.xlu0 %1197, %v576
        %v1199 = vpop.permute.xlu0 %1198
        %1201 = vset.pattern.permute.xlu0 1
        %1202 = vperm.xlu0 %1201, %v577
        %v1203 = vpop.permute.xlu0 %1202
        %1205 = vset.pattern.permute.xlu0 1
        %1206 = vperm.xlu0 %1205, %v578
        %v1207 = vpop.permute.xlu0 %1206
        %1209 = vset.pattern.permute.xlu0 1
        %1210 = vperm.xlu0 %1209, %v579
        %v1211 = vpop.permute.xlu0 %1210
        %1213 = vset.pattern.permute.xlu0 1
        %1214 = vperm.xlu0 %1213, %v580
        %v1215 = vpop.permute.xlu0 %1214
        %1217 = vset.pattern.permute.xlu0 1
        %1218 = vperm.xlu0 %1217, %v581
        %v1219 = vpop.permute.xlu0 %1218
        %1221 = vset.pattern.permute.xlu0 1
        %1222 = vperm.xlu0 %1221, %v582
        %v1223 = vpop.permute.xlu0 %1222
        %1225 = vset.pattern.permute.xlu0 1
        %1226 = vperm.xlu0 %1225, %v583
        %v1227 = vpop.permute.xlu0 %1226
        %v1229 = vlaneseq
        %v1230 = vshrl.u32 %v1229, 7
        %v1231 = vsub.s32 1, %v1230
        %v1232 = vrot.slane %v584, %v1231
        %v1233 = vmul.f32 %v975, %v1232
        %v1234 = vmul.f32 %v979, %v1232
        %v1235 = vmul.f32 %v983, %v1232
        %v1236 = vmul.f32 %v987, %v1232
        %v1237 = vmul.f32 %v991, %v1232
        %v1238 = vmul.f32 %v995, %v1232
        %v1239 = vmul.f32 %v999, %v1232
        %v1240 = vmul.f32 %v1003, %v1232
        %v1241 = vmul.f32 %v1007, %v1232
        %v1242 = vmul.f32 %v1011, %v1232
        %v1243 = vmul.f32 %v1015, %v1232
        %v1244 = vmul.f32 %v1019, %v1232
        %v1245 = vmul.f32 %v1023, %v1232
        %v1246 = vmul.f32 %v1027, %v1232
        %v1247 = vmul.f32 %v1031, %v1232
        %v1248 = vmul.f32 %v1035, %v1232
        %v1249 = vmul.f32 %v1039, %v1232
        %v1250 = vmul.f32 %v1043, %v1232
        %v1251 = vmul.f32 %v1047, %v1232
        %v1252 = vmul.f32 %v1051, %v1232
        %v1253 = vmul.f32 %v1055, %v1232
        %v1254 = vmul.f32 %v1059, %v1232
        %v1255 = vmul.f32 %v1063, %v1232
        %v1256 = vmul.f32 %v1067, %v1232
        %v1257 = vmul.f32 %v1071, %v1232
        %v1258 = vmul.f32 %v1075, %v1232
        %v1259 = vmul.f32 %v1079, %v1232
        %v1260 = vmul.f32 %v1083, %v1232
        %v1261 = vmul.f32 %v1087, %v1232
        %v1262 = vmul.f32 %v1091, %v1232
        %v1263 = vmul.f32 %v1095, %v1232
        %v1264 = vmul.f32 %v1099, %v1232
        %v1265 = vmul.f32 %v1103, %v1232
        %v1266 = vmul.f32 %v1107, %v1232
        %v1267 = vmul.f32 %v1111, %v1232
        %v1268 = vmul.f32 %v1115, %v1232
        %v1269 = vmul.f32 %v1119, %v1232
        %v1270 = vmul.f32 %v1123, %v1232
        %v1271 = vmul.f32 %v1127, %v1232
        %v1272 = vmul.f32 %v1131, %v1232
        %v1273 = vmul.f32 %v1135, %v1232
        %v1274 = vmul.f32 %v1139, %v1232
        %v1275 = vmul.f32 %v1143, %v1232
        %v1276 = vmul.f32 %v1147, %v1232
        %v1277 = vmul.f32 %v1151, %v1232
        %v1278 = vmul.f32 %v1155, %v1232
        %v1279 = vmul.f32 %v1159, %v1232
        %v1280 = vmul.f32 %v1163, %v1232
        %v1281 = vmul.f32 %v1167, %v1232
        %v1282 = vmul.f32 %v1171, %v1232
        %v1283 = vmul.f32 %v1175, %v1232
        %v1284 = vmul.f32 %v1179, %v1232
        %v1285 = vmul.f32 %v1183, %v1232
        %v1286 = vmul.f32 %v1187, %v1232
        %v1287 = vmul.f32 %v1191, %v1232
        %v1288 = vmul.f32 %v1195, %v1232
        %v1289 = vmul.f32 %v1199, %v1232
        %v1290 = vmul.f32 %v1203, %v1232
        %v1291 = vmul.f32 %v1207, %v1232
        %v1292 = vmul.f32 %v1211, %v1232
        %v1293 = vmul.f32 %v1215, %v1232
        %v1294 = vmul.f32 %v1219, %v1232
        %v1295 = vmul.f32 %v1223, %v1232
        %v1296 = vmul.f32 %v1227, %v1232
        %v1297 = vadd.f32 %v909, %v1233
        %v1298 = vadd.f32 %v910, %v1234
        %v1299 = vadd.f32 %v911, %v1235
        %v1300 = vadd.f32 %v912, %v1236
        %v1301 = vadd.f32 %v913, %v1237
        %v1302 = vadd.f32 %v914, %v1238
        %v1303 = vadd.f32 %v915, %v1239
        %v1304 = vadd.f32 %v916, %v1240
        %v1305 = vadd.f32 %v917, %v1241
        %v1306 = vadd.f32 %v918, %v1242
        %v1307 = vadd.f32 %v919, %v1243
        %v1308 = vadd.f32 %v920, %v1244
        %v1309 = vadd.f32 %v921, %v1245
        %v1310 = vadd.f32 %v922, %v1246
        %v1311 = vadd.f32 %v923, %v1247
        %v1312 = vadd.f32 %v924, %v1248
        %v1313 = vadd.f32 %v925, %v1249
        %v1314 = vadd.f32 %v926, %v1250
        %v1315 = vadd.f32 %v927, %v1251
        %v1316 = vadd.f32 %v928, %v1252
        %v1317 = vadd.f32 %v929, %v1253
        %v1318 = vadd.f32 %v930, %v1254
        %v1319 = vadd.f32 %v931, %v1255
        %v1320 = vadd.f32 %v932, %v1256
        %v1321 = vadd.f32 %v933, %v1257
        %v1322 = vadd.f32 %v934, %v1258
        %v1323 = vadd.f32 %v935, %v1259
        %v1324 = vadd.f32 %v936, %v1260
        %v1325 = vadd.f32 %v937, %v1261
        %v1326 = vadd.f32 %v938, %v1262
        %v1327 = vadd.f32 %v939, %v1263
        %v1328 = vadd.f32 %v940, %v1264
        %v1329 = vadd.f32 %v941, %v1265
        %v1330 = vadd.f32 %v942, %v1266
        %v1331 = vadd.f32 %v943, %v1267
        %v1332 = vadd.f32 %v944, %v1268
        %v1333 = vadd.f32 %v945, %v1269
        %v1334 = vadd.f32 %v946, %v1270
        %v1335 = vadd.f32 %v947, %v1271
        %v1336 = vadd.f32 %v948, %v1272
        %v1337 = vadd.f32 %v949, %v1273
        %v1338 = vadd.f32 %v950, %v1274
        %v1339 = vadd.f32 %v951, %v1275
        %v1340 = vadd.f32 %v952, %v1276
        %v1341 = vadd.f32 %v953, %v1277
        %v1342 = vadd.f32 %v954, %v1278
        %v1343 = vadd.f32 %v955, %v1279
        %v1344 = vadd.f32 %v956, %v1280
        %v1345 = vadd.f32 %v957, %v1281
        %v1346 = vadd.f32 %v958, %v1282
        %v1347 = vadd.f32 %v959, %v1283
        %v1348 = vadd.f32 %v960, %v1284
        %v1349 = vadd.f32 %v961, %v1285
        %v1350 = vadd.f32 %v962, %v1286
        %v1351 = vadd.f32 %v963, %v1287
        %v1352 = vadd.f32 %v964, %v1288
        %v1353 = vadd.f32 %v965, %v1289
        %v1354 = vadd.f32 %v966, %v1290
        %v1355 = vadd.f32 %v967, %v1291
        %v1356 = vadd.f32 %v968, %v1292
        %v1357 = vadd.f32 %v969, %v1293
        %v1358 = vadd.f32 %v970, %v1294
        %v1359 = vadd.f32 %v971, %v1295
        %v1360 = vadd.f32 %v972, %v1296
        %1361 = vset.pattern.permute.xlu0 2
        %1362 = vperm.xlu0 %1361, %v520
        %v1363 = vpop.permute.xlu0 %1362
        %1365 = vset.pattern.permute.xlu0 2
        %1366 = vperm.xlu0 %1365, %v521
        %v1367 = vpop.permute.xlu0 %1366
        %1369 = vset.pattern.permute.xlu0 2
        %1370 = vperm.xlu0 %1369, %v522
        %v1371 = vpop.permute.xlu0 %1370
        %1373 = vset.pattern.permute.xlu0 2
        %1374 = vperm.xlu0 %1373, %v523
        %v1375 = vpop.permute.xlu0 %1374
        %1377 = vset.pattern.permute.xlu0 2
        %1378 = vperm.xlu0 %1377, %v524
        %v1379 = vpop.permute.xlu0 %1378
        %1381 = vset.pattern.permute.xlu0 2
        %1382 = vperm.xlu0 %1381, %v525
        %v1383 = vpop.permute.xlu0 %1382
        %1385 = vset.pattern.permute.xlu0 2
        %1386 = vperm.xlu0 %1385, %v526
        %v1387 = vpop.permute.xlu0 %1386
        %1389 = vset.pattern.permute.xlu0 2
        %1390 = vperm.xlu0 %1389, %v527
        %v1391 = vpop.permute.xlu0 %1390
        %1393 = vset.pattern.permute.xlu0 2
        %1394 = vperm.xlu0 %1393, %v528
        %v1395 = vpop.permute.xlu0 %1394
        %1397 = vset.pattern.permute.xlu0 2
        %1398 = vperm.xlu0 %1397, %v529
        %v1399 = vpop.permute.xlu0 %1398
        %1401 = vset.pattern.permute.xlu0 2
        %1402 = vperm.xlu0 %1401, %v530
        %v1403 = vpop.permute.xlu0 %1402
        %1405 = vset.pattern.permute.xlu0 2
        %1406 = vperm.xlu0 %1405, %v531
        %v1407 = vpop.permute.xlu0 %1406
        %1409 = vset.pattern.permute.xlu0 2
        %1410 = vperm.xlu0 %1409, %v532
        %v1411 = vpop.permute.xlu0 %1410
        %1413 = vset.pattern.permute.xlu0 2
        %1414 = vperm.xlu0 %1413, %v533
        %v1415 = vpop.permute.xlu0 %1414
        %1417 = vset.pattern.permute.xlu0 2
        %1418 = vperm.xlu0 %1417, %v534
        %v1419 = vpop.permute.xlu0 %1418
        %1421 = vset.pattern.permute.xlu0 2
        %1422 = vperm.xlu0 %1421, %v535
        %v1423 = vpop.permute.xlu0 %1422
        %1425 = vset.pattern.permute.xlu0 2
        %1426 = vperm.xlu0 %1425, %v536
        %v1427 = vpop.permute.xlu0 %1426
        %1429 = vset.pattern.permute.xlu0 2
        %1430 = vperm.xlu0 %1429, %v537
        %v1431 = vpop.permute.xlu0 %1430
        %1433 = vset.pattern.permute.xlu0 2
        %1434 = vperm.xlu0 %1433, %v538
        %v1435 = vpop.permute.xlu0 %1434
        %1437 = vset.pattern.permute.xlu0 2
        %1438 = vperm.xlu0 %1437, %v539
        %v1439 = vpop.permute.xlu0 %1438
        %1441 = vset.pattern.permute.xlu0 2
        %1442 = vperm.xlu0 %1441, %v540
        %v1443 = vpop.permute.xlu0 %1442
        %1445 = vset.pattern.permute.xlu0 2
        %1446 = vperm.xlu0 %1445, %v541
        %v1447 = vpop.permute.xlu0 %1446
        %1449 = vset.pattern.permute.xlu0 2
        %1450 = vperm.xlu0 %1449, %v542
        %v1451 = vpop.permute.xlu0 %1450
        %1453 = vset.pattern.permute.xlu0 2
        %1454 = vperm.xlu0 %1453, %v543
        %v1455 = vpop.permute.xlu0 %1454
        %1457 = vset.pattern.permute.xlu0 2
        %1458 = vperm.xlu0 %1457, %v544
        %v1459 = vpop.permute.xlu0 %1458
        %1461 = vset.pattern.permute.xlu0 2
        %1462 = vperm.xlu0 %1461, %v545
        %v1463 = vpop.permute.xlu0 %1462
        %1465 = vset.pattern.permute.xlu0 2
        %1466 = vperm.xlu0 %1465, %v546
        %v1467 = vpop.permute.xlu0 %1466
        %1469 = vset.pattern.permute.xlu0 2
        %1470 = vperm.xlu0 %1469, %v547
        %v1471 = vpop.permute.xlu0 %1470
        %1473 = vset.pattern.permute.xlu0 2
        %1474 = vperm.xlu0 %1473, %v548
        %v1475 = vpop.permute.xlu0 %1474
        %1477 = vset.pattern.permute.xlu0 2
        %1478 = vperm.xlu0 %1477, %v549
        %v1479 = vpop.permute.xlu0 %1478
        %1481 = vset.pattern.permute.xlu0 2
        %1482 = vperm.xlu0 %1481, %v550
        %v1483 = vpop.permute.xlu0 %1482
        %1485 = vset.pattern.permute.xlu0 2
        %1486 = vperm.xlu0 %1485, %v551
        %v1487 = vpop.permute.xlu0 %1486
        %1489 = vset.pattern.permute.xlu0 2
        %1490 = vperm.xlu0 %1489, %v552
        %v1491 = vpop.permute.xlu0 %1490
        %1493 = vset.pattern.permute.xlu0 2
        %1494 = vperm.xlu0 %1493, %v553
        %v1495 = vpop.permute.xlu0 %1494
        %1497 = vset.pattern.permute.xlu0 2
        %1498 = vperm.xlu0 %1497, %v554
        %v1499 = vpop.permute.xlu0 %1498
        %1501 = vset.pattern.permute.xlu0 2
        %1502 = vperm.xlu0 %1501, %v555
        %v1503 = vpop.permute.xlu0 %1502
        %1505 = vset.pattern.permute.xlu0 2
        %1506 = vperm.xlu0 %1505, %v556
        %v1507 = vpop.permute.xlu0 %1506
        %1509 = vset.pattern.permute.xlu0 2
        %1510 = vperm.xlu0 %1509, %v557
        %v1511 = vpop.permute.xlu0 %1510
        %1513 = vset.pattern.permute.xlu0 2
        %1514 = vperm.xlu0 %1513, %v558
        %v1515 = vpop.permute.xlu0 %1514
        %1517 = vset.pattern.permute.xlu0 2
        %1518 = vperm.xlu0 %1517, %v559
        %v1519 = vpop.permute.xlu0 %1518
        %1521 = vset.pattern.permute.xlu0 2
        %1522 = vperm.xlu0 %1521, %v560
        %v1523 = vpop.permute.xlu0 %1522
        %1525 = vset.pattern.permute.xlu0 2
        %1526 = vperm.xlu0 %1525, %v561
        %v1527 = vpop.permute.xlu0 %1526
        %1529 = vset.pattern.permute.xlu0 2
        %1530 = vperm.xlu0 %1529, %v562
        %v1531 = vpop.permute.xlu0 %1530
        %1533 = vset.pattern.permute.xlu0 2
        %1534 = vperm.xlu0 %1533, %v563
        %v1535 = vpop.permute.xlu0 %1534
        %1537 = vset.pattern.permute.xlu0 2
        %1538 = vperm.xlu0 %1537, %v564
        %v1539 = vpop.permute.xlu0 %1538
        %1541 = vset.pattern.permute.xlu0 2
        %1542 = vperm.xlu0 %1541, %v565
        %v1543 = vpop.permute.xlu0 %1542
        %1545 = vset.pattern.permute.xlu0 2
        %1546 = vperm.xlu0 %1545, %v566
        %v1547 = vpop.permute.xlu0 %1546
        %1549 = vset.pattern.permute.xlu0 2
        %1550 = vperm.xlu0 %1549, %v567
        %v1551 = vpop.permute.xlu0 %1550
        %1553 = vset.pattern.permute.xlu0 2
        %1554 = vperm.xlu0 %1553, %v568
        %v1555 = vpop.permute.xlu0 %1554
        %1557 = vset.pattern.permute.xlu0 2
        %1558 = vperm.xlu0 %1557, %v569
        %v1559 = vpop.permute.xlu0 %1558
        %1561 = vset.pattern.permute.xlu0 2
        %1562 = vperm.xlu0 %1561, %v570
        %v1563 = vpop.permute.xlu0 %1562
        %1565 = vset.pattern.permute.xlu0 2
        %1566 = vperm.xlu0 %1565, %v571
        %v1567 = vpop.permute.xlu0 %1566
        %1569 = vset.pattern.permute.xlu0 2
        %1570 = vperm.xlu0 %1569, %v572
        %v1571 = vpop.permute.xlu0 %1570
        %1573 = vset.pattern.permute.xlu0 2
        %1574 = vperm.xlu0 %1573, %v573
        %v1575 = vpop.permute.xlu0 %1574
        %1577 = vset.pattern.permute.xlu0 2
        %1578 = vperm.xlu0 %1577, %v574
        %v1579 = vpop.permute.xlu0 %1578
        %1581 = vset.pattern.permute.xlu0 2
        %1582 = vperm.xlu0 %1581, %v575
        %v1583 = vpop.permute.xlu0 %1582
        %1585 = vset.pattern.permute.xlu0 2
        %1586 = vperm.xlu0 %1585, %v576
        %v1587 = vpop.permute.xlu0 %1586
        %1589 = vset.pattern.permute.xlu0 2
        %1590 = vperm.xlu0 %1589, %v577
        %v1591 = vpop.permute.xlu0 %1590
        %1593 = vset.pattern.permute.xlu0 2
        %1594 = vperm.xlu0 %1593, %v578
        %v1595 = vpop.permute.xlu0 %1594
        %1597 = vset.pattern.permute.xlu0 2
        %1598 = vperm.xlu0 %1597, %v579
        %v1599 = vpop.permute.xlu0 %1598
        %1601 = vset.pattern.permute.xlu0 2
        %1602 = vperm.xlu0 %1601, %v580
        %v1603 = vpop.permute.xlu0 %1602
        %1605 = vset.pattern.permute.xlu0 2
        %1606 = vperm.xlu0 %1605, %v581
        %v1607 = vpop.permute.xlu0 %1606
        %1609 = vset.pattern.permute.xlu0 2
        %1610 = vperm.xlu0 %1609, %v582
        %v1611 = vpop.permute.xlu0 %1610
        %1613 = vset.pattern.permute.xlu0 2
        %1614 = vperm.xlu0 %1613, %v583
        %v1615 = vpop.permute.xlu0 %1614
        %v1617 = vlaneseq
        %v1618 = vshrl.u32 %v1617, 7
        %v1619 = vsub.s32 2, %v1618
        %v1620 = vrot.slane %v584, %v1619
        %v1621 = vmul.f32 %v1363, %v1620
        %v1622 = vmul.f32 %v1367, %v1620
        %v1623 = vmul.f32 %v1371, %v1620
        %v1624 = vmul.f32 %v1375, %v1620
        %v1625 = vmul.f32 %v1379, %v1620
        %v1626 = vmul.f32 %v1383, %v1620
        %v1627 = vmul.f32 %v1387, %v1620
        %v1628 = vmul.f32 %v1391, %v1620
        %v1629 = vmul.f32 %v1395, %v1620
        %v1630 = vmul.f32 %v1399, %v1620
        %v1631 = vmul.f32 %v1403, %v1620
        %v1632 = vmul.f32 %v1407, %v1620
        %v1633 = vmul.f32 %v1411, %v1620
        %v1634 = vmul.f32 %v1415, %v1620
        %v1635 = vmul.f32 %v1419, %v1620
        %v1636 = vmul.f32 %v1423, %v1620
        %v1637 = vmul.f32 %v1427, %v1620
        %v1638 = vmul.f32 %v1431, %v1620
        %v1639 = vmul.f32 %v1435, %v1620
        %v1640 = vmul.f32 %v1439, %v1620
        %v1641 = vmul.f32 %v1443, %v1620
        %v1642 = vmul.f32 %v1447, %v1620
        %v1643 = vmul.f32 %v1451, %v1620
        %v1644 = vmul.f32 %v1455, %v1620
        %v1645 = vmul.f32 %v1459, %v1620
        %v1646 = vmul.f32 %v1463, %v1620
        %v1647 = vmul.f32 %v1467, %v1620
        %v1648 = vmul.f32 %v1471, %v1620
        %v1649 = vmul.f32 %v1475, %v1620
        %v1650 = vmul.f32 %v1479, %v1620
        %v1651 = vmul.f32 %v1483, %v1620
        %v1652 = vmul.f32 %v1487, %v1620
        %v1653 = vmul.f32 %v1491, %v1620
        %v1654 = vmul.f32 %v1495, %v1620
        %v1655 = vmul.f32 %v1499, %v1620
        %v1656 = vmul.f32 %v1503, %v1620
        %v1657 = vmul.f32 %v1507, %v1620
        %v1658 = vmul.f32 %v1511, %v1620
        %v1659 = vmul.f32 %v1515, %v1620
        %v1660 = vmul.f32 %v1519, %v1620
        %v1661 = vmul.f32 %v1523, %v1620
        %v1662 = vmul.f32 %v1527, %v1620
        %v1663 = vmul.f32 %v1531, %v1620
        %v1664 = vmul.f32 %v1535, %v1620
        %v1665 = vmul.f32 %v1539, %v1620
        %v1666 = vmul.f32 %v1543, %v1620
        %v1667 = vmul.f32 %v1547, %v1620
        %v1668 = vmul.f32 %v1551, %v1620
        %v1669 = vmul.f32 %v1555, %v1620
        %v1670 = vmul.f32 %v1559, %v1620
        %v1671 = vmul.f32 %v1563, %v1620
        %v1672 = vmul.f32 %v1567, %v1620
        %v1673 = vmul.f32 %v1571, %v1620
        %v1674 = vmul.f32 %v1575, %v1620
        %v1675 = vmul.f32 %v1579, %v1620
        %v1676 = vmul.f32 %v1583, %v1620
        %v1677 = vmul.f32 %v1587, %v1620
        %v1678 = vmul.f32 %v1591, %v1620
        %v1679 = vmul.f32 %v1595, %v1620
        %v1680 = vmul.f32 %v1599, %v1620
        %v1681 = vmul.f32 %v1603, %v1620
        %v1682 = vmul.f32 %v1607, %v1620
        %v1683 = vmul.f32 %v1611, %v1620
        %v1684 = vmul.f32 %v1615, %v1620
        %v1685 = vadd.f32 %v1297, %v1621
        %v1686 = vadd.f32 %v1298, %v1622
        %v1687 = vadd.f32 %v1299, %v1623
        %v1688 = vadd.f32 %v1300, %v1624
        %v1689 = vadd.f32 %v1301, %v1625
        %v1690 = vadd.f32 %v1302, %v1626
        %v1691 = vadd.f32 %v1303, %v1627
        %v1692 = vadd.f32 %v1304, %v1628
        %v1693 = vadd.f32 %v1305, %v1629
        %v1694 = vadd.f32 %v1306, %v1630
        %v1695 = vadd.f32 %v1307, %v1631
        %v1696 = vadd.f32 %v1308, %v1632
        %v1697 = vadd.f32 %v1309, %v1633
        %v1698 = vadd.f32 %v1310, %v1634
        %v1699 = vadd.f32 %v1311, %v1635
        %v1700 = vadd.f32 %v1312, %v1636
        %v1701 = vadd.f32 %v1313, %v1637
        %v1702 = vadd.f32 %v1314, %v1638
        %v1703 = vadd.f32 %v1315, %v1639
        %v1704 = vadd.f32 %v1316, %v1640
        %v1705 = vadd.f32 %v1317, %v1641
        %v1706 = vadd.f32 %v1318, %v1642
        %v1707 = vadd.f32 %v1319, %v1643
        %v1708 = vadd.f32 %v1320, %v1644
        %v1709 = vadd.f32 %v1321, %v1645
        %v1710 = vadd.f32 %v1322, %v1646
        %v1711 = vadd.f32 %v1323, %v1647
        %v1712 = vadd.f32 %v1324, %v1648
        %v1713 = vadd.f32 %v1325, %v1649
        %v1714 = vadd.f32 %v1326, %v1650
        %v1715 = vadd.f32 %v1327, %v1651
        %v1716 = vadd.f32 %v1328, %v1652
        %v1717 = vadd.f32 %v1329, %v1653
        %v1718 = vadd.f32 %v1330, %v1654
        %v1719 = vadd.f32 %v1331, %v1655
        %v1720 = vadd.f32 %v1332, %v1656
        %v1721 = vadd.f32 %v1333, %v1657
        %v1722 = vadd.f32 %v1334, %v1658
        %v1723 = vadd.f32 %v1335, %v1659
        %v1724 = vadd.f32 %v1336, %v1660
        %v1725 = vadd.f32 %v1337, %v1661
        %v1726 = vadd.f32 %v1338, %v1662
        %v1727 = vadd.f32 %v1339, %v1663
        %v1728 = vadd.f32 %v1340, %v1664
        %v1729 = vadd.f32 %v1341, %v1665
        %v1730 = vadd.f32 %v1342, %v1666
        %v1731 = vadd.f32 %v1343, %v1667
        %v1732 = vadd.f32 %v1344, %v1668
        %v1733 = vadd.f32 %v1345, %v1669
        %v1734 = vadd.f32 %v1346, %v1670
        %v1735 = vadd.f32 %v1347, %v1671
        %v1736 = vadd.f32 %v1348, %v1672
        %v1737 = vadd.f32 %v1349, %v1673
        %v1738 = vadd.f32 %v1350, %v1674
        %v1739 = vadd.f32 %v1351, %v1675
        %v1740 = vadd.f32 %v1352, %v1676
        %v1741 = vadd.f32 %v1353, %v1677
        %v1742 = vadd.f32 %v1354, %v1678
        %v1743 = vadd.f32 %v1355, %v1679
        %v1744 = vadd.f32 %v1356, %v1680
        %v1745 = vadd.f32 %v1357, %v1681
        %v1746 = vadd.f32 %v1358, %v1682
        %v1747 = vadd.f32 %v1359, %v1683
        %v1748 = vadd.f32 %v1360, %v1684
        %v1749 = vld [vmem:[%s2] sm:$0x1]
        %v1751 = vlaneseq
        %v1752 = vshrl.u32 %v1751, 7
        %v1753 = vsub.s32 0, %v1752
        %v1754 = vrot.slane %v1749, %v1753
        %v1756 = vadd.f32 %v1685, %v1754
        %v1757 = vadd.f32 %v1686, %v1754
        %v1758 = vadd.f32 %v1687, %v1754
        %v1759 = vadd.f32 %v1688, %v1754
        %v1760 = vadd.f32 %v1689, %v1754
        %v1761 = vadd.f32 %v1690, %v1754
        %v1762 = vadd.f32 %v1691, %v1754
        %v1763 = vadd.f32 %v1692, %v1754
        %v1764 = vadd.f32 %v1693, %v1754
        %v1765 = vadd.f32 %v1694, %v1754
        %v1766 = vadd.f32 %v1695, %v1754
        %v1767 = vadd.f32 %v1696, %v1754
        %v1768 = vadd.f32 %v1697, %v1754
        %v1769 = vadd.f32 %v1698, %v1754
        %v1770 = vadd.f32 %v1699, %v1754
        %v1771 = vadd.f32 %v1700, %v1754
        %v1772 = vadd.f32 %v1701, %v1754
        %v1773 = vadd.f32 %v1702, %v1754
        %v1774 = vadd.f32 %v1703, %v1754
        %v1775 = vadd.f32 %v1704, %v1754
        %v1776 = vadd.f32 %v1705, %v1754
        %v1777 = vadd.f32 %v1706, %v1754
        %v1778 = vadd.f32 %v1707, %v1754
        %v1779 = vadd.f32 %v1708, %v1754
        %v1780 = vadd.f32 %v1709, %v1754
        %v1781 = vadd.f32 %v1710, %v1754
        %v1782 = vadd.f32 %v1711, %v1754
        %v1783 = vadd.f32 %v1712, %v1754
        %v1784 = vadd.f32 %v1713, %v1754
        %v1785 = vadd.f32 %v1714, %v1754
        %v1786 = vadd.f32 %v1715, %v1754
        %v1787 = vadd.f32 %v1716, %v1754
        %v1788 = vadd.f32 %v1717, %v1754
        %v1789 = vadd.f32 %v1718, %v1754
        %v1790 = vadd.f32 %v1719, %v1754
        %v1791 = vadd.f32 %v1720, %v1754
        %v1792 = vadd.f32 %v1721, %v1754
        %v1793 = vadd.f32 %v1722, %v1754
        %v1794 = vadd.f32 %v1723, %v1754
        %v1795 = vadd.f32 %v1724, %v1754
        %v1796 = vadd.f32 %v1725, %v1754
        %v1797 = vadd.f32 %v1726, %v1754
        %v1798 = vadd.f32 %v1727, %v1754
        %v1799 = vadd.f32 %v1728, %v1754
        %v1800 = vadd.f32 %v1729, %v1754
        %v1801 = vadd.f32 %v1730, %v1754
        %v1802 = vadd.f32 %v1731, %v1754
        %v1803 = vadd.f32 %v1732, %v1754
        %v1804 = vadd.f32 %v1733, %v1754
        %v1805 = vadd.f32 %v1734, %v1754
        %v1806 = vadd.f32 %v1735, %v1754
        %v1807 = vadd.f32 %v1736, %v1754
        %v1808 = vadd.f32 %v1737, %v1754
        %v1809 = vadd.f32 %v1738, %v1754
        %v1810 = vadd.f32 %v1739, %v1754
        %v1811 = vadd.f32 %v1740, %v1754
        %v1812 = vadd.f32 %v1741, %v1754
        %v1813 = vadd.f32 %v1742, %v1754
        %v1814 = vadd.f32 %v1743, %v1754
        %v1815 = vadd.f32 %v1744, %v1754
        %v1816 = vadd.f32 %v1745, %v1754
        %v1817 = vadd.f32 %v1746, %v1754
        %v1818 = vadd.f32 %v1747, %v1754
        %v1819 = vadd.f32 %v1748, %v1754
        %v1820 = vmax.f32 %v1756, 0.0
        %v1821 = vmax.f32 %v1757, 0.0
        %v1822 = vmax.f32 %v1758, 0.0
        %v1823 = vmax.f32 %v1759, 0.0
        %v1824 = vmax.f32 %v1760, 0.0
        %v1825 = vmax.f32 %v1761, 0.0
        %v1826 = vmax.f32 %v1762, 0.0
        %v1827 = vmax.f32 %v1763, 0.0
        %v1828 = vmax.f32 %v1764, 0.0
        %v1829 = vmax.f32 %v1765, 0.0
        %v1830 = vmax.f32 %v1766, 0.0
        %v1831 = vmax.f32 %v1767, 0.0
        %v1832 = vmax.f32 %v1768, 0.0
        %v1833 = vmax.f32 %v1769, 0.0
        %v1834 = vmax.f32 %v1770, 0.0
        %v1835 = vmax.f32 %v1771, 0.0
        %v1836 = vmax.f32 %v1772, 0.0
        %v1837 = vmax.f32 %v1773, 0.0
        %v1838 = vmax.f32 %v1774, 0.0
        %v1839 = vmax.f32 %v1775, 0.0
        %v1840 = vmax.f32 %v1776, 0.0
        %v1841 = vmax.f32 %v1777, 0.0
        %v1842 = vmax.f32 %v1778, 0.0
        %v1843 = vmax.f32 %v1779, 0.0
        %v1844 = vmax.f32 %v1780, 0.0
        %v1845 = vmax.f32 %v1781, 0.0
        %v1846 = vmax.f32 %v1782, 0.0
        %v1847 = vmax.f32 %v1783, 0.0
        %v1848 = vmax.f32 %v1784, 0.0
        %v1849 = vmax.f32 %v1785, 0.0
        %v1850 = vmax.f32 %v1786, 0.0
        %v1851 = vmax.f32 %v1787, 0.0
        %v1852 = vmax.f32 %v1788, 0.0
        %v1853 = vmax.f32 %v1789, 0.0
        %v1854 = vmax.f32 %v1790, 0.0
        %v1855 = vmax.f32 %v1791, 0.0
        %v1856 = vmax.f32 %v1792, 0.0
        %v1857 = vmax.f32 %v1793, 0.0
        %v1858 = vmax.f32 %v1794, 0.0
        %v1859 = vmax.f32 %v1795, 0.0
        %v1860 = vmax.f32 %v1796, 0.0
        %v1861 = vmax.f32 %v1797, 0.0
        %v1862 = vmax.f32 %v1798, 0.0
        %v1863 = vmax.f32 %v1799, 0.0
        %v1864 = vmax.f32 %v1800, 0.0
        %v1865 = vmax.f32 %v1801, 0.0
        %v1866 = vmax.f32 %v1802, 0.0
        %v1867 = vmax.f32 %v1803, 0.0
        %v1868 = vmax.f32 %v1804, 0.0
        %v1869 = vmax.f32 %v1805, 0.0
        %v1870 = vmax.f32 %v1806, 0.0
        %v1871 = vmax.f32 %v1807, 0.0
        %v1872 = vmax.f32 %v1808, 0.0
        %v1873 = vmax.f32 %v1809, 0.0
        %v1874 = vmax.f32 %v1810, 0.0
        %v1875 = vmax.f32 %v1811, 0.0
        %v1876 = vmax.f32 %v1812, 0.0
        %v1877 = vmax.f32 %v1813, 0.0
        %v1878 = vmax.f32 %v1814, 0.0
        %v1879 = vmax.f32 %v1815, 0.0
        %v1880 = vmax.f32 %v1816, 0.0
        %v1881 = vmax.f32 %v1817, 0.0
        %v1882 = vmax.f32 %v1818, 0.0
        %v1883 = vmax.f32 %v1819, 0.0
        %v1884 = vpack.c.bf16 %v1821, %v1820
        %v1885 = vpack.c.bf16 %v1823, %v1822
        %v1886 = vpack.c.bf16 %v1825, %v1824
        %v1887 = vpack.c.bf16 %v1827, %v1826
        %v1888 = vpack.c.bf16 %v1829, %v1828
        %v1889 = vpack.c.bf16 %v1831, %v1830
        %v1890 = vpack.c.bf16 %v1833, %v1832
        %v1891 = vpack.c.bf16 %v1835, %v1834
        %v1892 = vpack.c.bf16 %v1837, %v1836
        %v1893 = vpack.c.bf16 %v1839, %v1838
        %v1894 = vpack.c.bf16 %v1841, %v1840
        %v1895 = vpack.c.bf16 %v1843, %v1842
        %v1896 = vpack.c.bf16 %v1845, %v1844
        %v1897 = vpack.c.bf16 %v1847, %v1846
        %v1898 = vpack.c.bf16 %v1849, %v1848
        %v1899 = vpack.c.bf16 %v1851, %v1850
        %v1900 = vpack.c.bf16 %v1853, %v1852
        %v1901 = vpack.c.bf16 %v1855, %v1854
        %v1902 = vpack.c.bf16 %v1857, %v1856
        %v1903 = vpack.c.bf16 %v1859, %v1858
        %v1904 = vpack.c.bf16 %v1861, %v1860
        %v1905 = vpack.c.bf16 %v1863, %v1862
        %v1906 = vpack.c.bf16 %v1865, %v1864
        %v1907 = vpack.c.bf16 %v1867, %v1866
        %v1908 = vpack.c.bf16 %v1869, %v1868
        %v1909 = vpack.c.bf16 %v1871, %v1870
        %v1910 = vpack.c.bf16 %v1873, %v1872
        %v1911 = vpack.c.bf16 %v1875, %v1874
        %v1912 = vpack.c.bf16 %v1877, %v1876
        %v1913 = vpack.c.bf16 %v1879, %v1878
        %v1914 = vpack.c.bf16 %v1881, %v1880
        %v1915 = vpack.c.bf16 %v1883, %v1882
        %v1916 = vld [vmem:[%s3] sm:$0xf]
        %v1917 = vld [vmem:[%s3 + $0x4] sm:$0xf]
        %v1918 = vld [vmem:[%s3 + $0x8] sm:$0xf]
        %v1919 = vld [vmem:[%s3 + $0xc] sm:$0xf]
        %v1920 = vld [vmem:[%s3 + $0x10] sm:$0xf]
        %v1921 = vld [vmem:[%s3 + $0x14] sm:$0xf]
        %v1922 = vld [vmem:[%s3 + $0x18] sm:$0xf]
        %v1923 = vld [vmem:[%s3 + $0x1c] sm:$0xf]
        %v1924 = vld [vmem:[%s4] sm:$0x1]
        %v1926 = vlaneseq
        %v1927 = vshrl.u32 %v1926, 7
        %v1928 = vsub.s32 0, %v1927
        %v1929 = vrot.slane %v1924, %v1928
        %v1939 = vunpack.c.l.b16 %v1916
        %v1940 = vunpack.c.l.b16 %v1917
        %v1941 = vunpack.c.l.b16 %v1918
        %v1942 = vunpack.c.l.b16 %v1919
        %v1943 = vunpack.c.l.b16 %v1920
        %v1944 = vunpack.c.l.b16 %v1921
        %v1945 = vunpack.c.l.b16 %v1922
        %v1946 = vunpack.c.l.b16 %v1923
        %v1947 = vpack.c.b16 %v1940, %v1939
        %v1948 = vpack.c.b16 %v1942, %v1941
        %v1949 = vpack.c.b16 %v1944, %v1943
        %v1950 = vpack.c.b16 %v1946, %v1945
        %vm1955 = vcmask 523264
        %v1957 = vsel %vm1955, %v1884, 0
        %v1960 = vsel %vm1955, %v1885, 0
        %v1963 = vsel %vm1955, %v1886, 0
        %v1966 = vsel %vm1955, %v1887, 0
        %v1969 = vsel %vm1955, %v1888, 0
        %v1972 = vsel %vm1955, %v1889, 0
        %v1975 = vsel %vm1955, %v1890, 0
        %v1978 = vsel %vm1955, %v1891, 0
        %v1981 = vsel %vm1955, %v1892, 0
        %v1984 = vsel %vm1955, %v1893, 0
        %v1987 = vsel %vm1955, %v1894, 0
        %v1990 = vsel %vm1955, %v1895, 0
        %v1993 = vsel %vm1955, %v1896, 0
        %v1996 = vsel %vm1955, %v1897, 0
        %v1999 = vsel %vm1955, %v1898, 0
        %v2002 = vsel %vm1955, %v1899, 0
        %v2005 = vsel %vm1955, %v1900, 0
        %v2008 = vsel %vm1955, %v1901, 0
        %v2011 = vsel %vm1955, %v1902, 0
        %v2014 = vsel %vm1955, %v1903, 0
        %v2017 = vsel %vm1955, %v1904, 0
        %v2020 = vsel %vm1955, %v1905, 0
        %v2023 = vsel %vm1955, %v1906, 0
        %v2026 = vsel %vm1955, %v1907, 0
        %v2029 = vsel %vm1955, %v1908, 0
        %v2032 = vsel %vm1955, %v1909, 0
        %v2035 = vsel %vm1955, %v1910, 0
        %v2038 = vsel %vm1955, %v1911, 0
        %v2041 = vsel %vm1955, %v1912, 0
        %v2044 = vsel %vm1955, %v1913, 0
        %v2047 = vsel %vm1955, %v1914, 0
        %v2050 = vsel %vm1955, %v1915, 0
        %2052 = vmatprep.subr.bf16.mxu0 0
        %2053 = vmatpush1.bf16.msra.mxu0 %v1947
        %2054 = vmatprep.subr.bf16.mxu0 0
        %2055 = vmatpush1.bf16.msra.mxu0 %v1948
        %2056 = vmatprep.subr.bf16.mxu0 0
        %2057 = vmatpush1.bf16.msra.mxu0 %v1949
        %2058 = vmatprep.subr.bf16.mxu0 0
        %2059 = vmatpush1.bf16.msra.mxu0 %v1950
        %2060 = vmatprep.subr.bf16.mxu0 0
        %2061 = vmatpush1.bf16.msra.mxu0 0
        %2062 = vmatprep.subr.bf16.mxu0 0
        %2063 = vmatpush1.bf16.msra.mxu0 0
        %2064 = vmatprep.subr.bf16.mxu0 0
        %2065 = vmatpush1.bf16.msra.mxu0 0
        %2066 = vmatprep.subr.bf16.mxu0 0
        %2067 = vmatpush1.bf16.msra.mxu0 0
        %2068 = vmatprep.subr.bf16.mxu0 0
        %2069 = vmatpush1.bf16.msra.mxu0 0
        %2070 = vmatprep.subr.bf16.mxu0 0
        %2071 = vmatpush1.bf16.msra.mxu0 0
        %2072 = vmatprep.subr.bf16.mxu0 0
        %2073 = vmatpush1.bf16.msra.mxu0 0
        %2074 = vmatprep.subr.bf16.mxu0 0
        %2075 = vmatpush1.bf16.msra.mxu0 0
        %2076 = vmatprep.subr.bf16.mxu0 0
        %2077 = vmatpush1.bf16.msra.mxu0 0
        %2078 = vmatprep.subr.bf16.mxu0 0
        %2079 = vmatpush1.bf16.msra.mxu0 0
        %2080 = vmatprep.subr.bf16.mxu0 0
        %2081 = vmatpush1.bf16.msra.mxu0 0
        %2082 = vmatprep.subr.bf16.mxu0 0
        %2083 = vmatpush1.bf16.msra.mxu0 0
        %2084 = vmatprep.mubr.bf16.mxu0 0
        %2085 = vmatmul.mubr.bf16.gmra.mrb[0].mxu0 %v1957
        %v2086 = vpop.f32.mrb[0].mxu0
        %v2087 = vadd.f32 %v1929, %v2086
        %v2088 = vpop.f32.mrb[0].mxu0
        %v2089 = vpop.f32.mrb[0].mxu0
        %v2090 = vadd.f32 %v1929, %v2089
        %v2091 = vpop.f32.mrb[0].mxu0
        %2092 = vmatprep.mubr.bf16.mxu0 0
        %2093 = vmatmul.mubr.bf16.gmra.mrb[0].mxu0 %v1960
        %v2094 = vpop.f32.mrb[0].mxu0
        %v2095 = vadd.f32 %v1929, %v2094
        %v2096 = vpop.f32.mrb[0].mxu0
        %v2097 = vpop.f32.mrb[0].mxu0
        %v2098 = vadd.f32 %v1929, %v2097
        %v2099 = vpop.f32.mrb[0].mxu0
        %2100 = vmatprep.mubr.bf16.mxu0 0
        %2101 = vmatmul.mubr.bf16.gmra.mrb[0].mxu0 %v1963
        %v2102 = vpop.f32.mrb[0].mxu0
        %v2103 = vadd.f32 %v1929, %v2102
        %v2104 = vpop.f32.mrb[0].mxu0
        %v2105 = vpop.f32.mrb[0].mxu0
        %v2106 = vadd.f32 %v1929, %v2105
        %v2107 = vpop.f32.mrb[0].mxu0
        %2108 = vmatprep.mubr.bf16.mxu0 0
        %2109 = vmatmul.mubr.bf16.gmra.mrb[0].mxu0 %v1966
        %v2110 = vpop.f32.mrb[0].mxu0
        %v2111 = vadd.f32 %v1929, %v2110
        %v2112 = vpop.f32.mrb[0].mxu0
        %v2113 = vpop.f32.mrb[0].mxu0
        %v2114 = vadd.f32 %v1929, %v2113
        %v2115 = vpop.f32.mrb[0].mxu0
        %2116 = vmatprep.mubr.bf16.mxu0 0
        %2117 = vmatmul.mubr.bf16.gmra.mrb[0].mxu0 %v1969
        %v2118 = vpop.f32.mrb[0].mxu0
        %v2119 = vadd.f32 %v1929, %v2118
        %v2120 = vpop.f32.mrb[0].mxu0
        %v2121 = vpop.f32.mrb[0].mxu0
        %v2122 = vadd.f32 %v1929, %v2121
        %v2123 = vpop.f32.mrb[0].mxu0
        %2124 = vmatprep.mubr.bf16.mxu0 0
        %2125 = vmatmul.mubr.bf16.gmra.mrb[0].mxu0 %v1972
        %v2126 = vpop.f32.mrb[0].mxu0
        %v2127 = vadd.f32 %v1929, %v2126
        %v2128 = vpop.f32.mrb[0].mxu0
        %v2129 = vpop.f32.mrb[0].mxu0
        %v2130 = vadd.f32 %v1929, %v2129
        %v2131 = vpop.f32.mrb[0].mxu0
        %2132 = vmatprep.mubr.bf16.mxu0 0
        %2133 = vmatmul.mubr.bf16.gmra.mrb[0].mxu0 %v1975
        %v2134 = vpop.f32.mrb[0].mxu0
        %v2135 = vadd.f32 %v1929, %v2134
        %v2136 = vpop.f32.mrb[0].mxu0
        %v2137 = vpop.f32.mrb[0].mxu0
        %v2138 = vadd.f32 %v1929, %v2137
        %v2139 = vpop.f32.mrb[0].mxu0
        %2140 = vmatprep.mubr.bf16.mxu0 0
        %2141 = vmatmul.mubr.bf16.gmra.mrb[0].mxu0 %v1978
        %v2142 = vpop.f32.mrb[0].mxu0
        %v2143 = vadd.f32 %v1929, %v2142
        %v2144 = vpop.f32.mrb[0].mxu0
        %v2145 = vpop.f32.mrb[0].mxu0
        %v2146 = vadd.f32 %v1929, %v2145
        %v2147 = vpop.f32.mrb[0].mxu0
        %2148 = vmatprep.mubr.bf16.mxu0 0
        %2149 = vmatmul.mubr.bf16.gmra.mrb[0].mxu0 %v1981
        %v2150 = vpop.f32.mrb[0].mxu0
        %v2151 = vadd.f32 %v1929, %v2150
        %v2152 = vpop.f32.mrb[0].mxu0
        %v2153 = vpop.f32.mrb[0].mxu0
        %v2154 = vadd.f32 %v1929, %v2153
        %v2155 = vpop.f32.mrb[0].mxu0
        %2156 = vmatprep.mubr.bf16.mxu0 0
        %2157 = vmatmul.mubr.bf16.gmra.mrb[0].mxu0 %v1984
        %v2158 = vpop.f32.mrb[0].mxu0
        %v2159 = vadd.f32 %v1929, %v2158
        %v2160 = vpop.f32.mrb[0].mxu0
        %v2161 = vpop.f32.mrb[0].mxu0
        %v2162 = vadd.f32 %v1929, %v2161
        %v2163 = vpop.f32.mrb[0].mxu0
        %2164 = vmatprep.mubr.bf16.mxu0 0
        %2165 = vmatmul.mubr.bf16.gmra.mrb[0].mxu0 %v1987
        %v2166 = vpop.f32.mrb[0].mxu0
        %v2167 = vadd.f32 %v1929, %v2166
        %v2168 = vpop.f32.mrb[0].mxu0
        %v2169 = vpop.f32.mrb[0].mxu0
        %v2170 = vadd.f32 %v1929, %v2169
        %v2171 = vpop.f32.mrb[0].mxu0
        %2172 = vmatprep.mubr.bf16.mxu0 0
        %2173 = vmatmul.mubr.bf16.gmra.mrb[0].mxu0 %v1990
        %v2174 = vpop.f32.mrb[0].mxu0
        %v2175 = vadd.f32 %v1929, %v2174
        %v2176 = vpop.f32.mrb[0].mxu0
        %v2177 = vpop.f32.mrb[0].mxu0
        %v2178 = vadd.f32 %v1929, %v2177
        %v2179 = vpop.f32.mrb[0].mxu0
        %2180 = vmatprep.mubr.bf16.mxu0 0
        %2181 = vmatmul.mubr.bf16.gmra.mrb[0].mxu0 %v1993
        %v2182 = vpop.f32.mrb[0].mxu0
        %v2183 = vadd.f32 %v1929, %v2182
        %v2184 = vpop.f32.mrb[0].mxu0
        %v2185 = vpop.f32.mrb[0].mxu0
        %v2186 = vadd.f32 %v1929, %v2185
        %v2187 = vpop.f32.mrb[0].mxu0
        %2188 = vmatprep.mubr.bf16.mxu0 0
        %2189 = vmatmul.mubr.bf16.gmra.mrb[0].mxu0 %v1996
        %v2190 = vpop.f32.mrb[0].mxu0
        %v2191 = vadd.f32 %v1929, %v2190
        %v2192 = vpop.f32.mrb[0].mxu0
        %v2193 = vpop.f32.mrb[0].mxu0
        %v2194 = vadd.f32 %v1929, %v2193
        %v2195 = vpop.f32.mrb[0].mxu0
        %2196 = vmatprep.mubr.bf16.mxu0 0
        %2197 = vmatmul.mubr.bf16.gmra.mrb[0].mxu0 %v1999
        %v2198 = vpop.f32.mrb[0].mxu0
        %v2199 = vadd.f32 %v1929, %v2198
        %v2200 = vpop.f32.mrb[0].mxu0
        %v2201 = vpop.f32.mrb[0].mxu0
        %v2202 = vadd.f32 %v1929, %v2201
        %v2203 = vpop.f32.mrb[0].mxu0
        %2204 = vmatprep.mubr.bf16.mxu0 0
        %2205 = vmatmul.mubr.bf16.gmra.mrb[0].mxu0 %v2002
        %v2206 = vpop.f32.mrb[0].mxu0
        %v2207 = vadd.f32 %v1929, %v2206
        %v2208 = vpop.f32.mrb[0].mxu0
        %v2209 = vpop.f32.mrb[0].mxu0
        %v2210 = vadd.f32 %v1929, %v2209
        %v2211 = vpop.f32.mrb[0].mxu0
        %2212 = vmatprep.mubr.bf16.mxu0 0
        %2213 = vmatmul.mubr.bf16.gmra.mrb[0].mxu0 %v2005
        %v2214 = vpop.f32.mrb[0].mxu0
        %v2215 = vadd.f32 %v1929, %v2214
        %v2216 = vpop.f32.mrb[0].mxu0
        %v2217 = vpop.f32.mrb[0].mxu0
        %v2218 = vadd.f32 %v1929, %v2217
        %v2219 = vpop.f32.mrb[0].mxu0
        %2220 = vmatprep.mubr.bf16.mxu0 0
        %2221 = vmatmul.mubr.bf16.gmra.mrb[0].mxu0 %v2008
        %v2222 = vpop.f32.mrb[0].mxu0
        %v2223 = vadd.f32 %v1929, %v2222
        %v2224 = vpop.f32.mrb[0].mxu0
        %v2225 = vpop.f32.mrb[0].mxu0
        %v2226 = vadd.f32 %v1929, %v2225
        %v2227 = vpop.f32.mrb[0].mxu0
        %2228 = vmatprep.mubr.bf16.mxu0 0
        %2229 = vmatmul.mubr.bf16.gmra.mrb[0].mxu0 %v2011
        %v2230 = vpop.f32.mrb[0].mxu0
        %v2231 = vadd.f32 %v1929, %v2230
        %v2232 = vpop.f32.mrb[0].mxu0
        %v2233 = vpop.f32.mrb[0].mxu0
        %v2234 = vadd.f32 %v1929, %v2233
        %v2235 = vpop.f32.mrb[0].mxu0
        %2236 = vmatprep.mubr.bf16.mxu0 0
        %2237 = vmatmul.mubr.bf16.gmra.mrb[0].mxu0 %v2014
        %v2238 = vpop.f32.mrb[0].mxu0
        %v2239 = vadd.f32 %v1929, %v2238
        %v2240 = vpop.f32.mrb[0].mxu0
        %v2241 = vpop.f32.mrb[0].mxu0
        %v2242 = vadd.f32 %v1929, %v2241
        %v2243 = vpop.f32.mrb[0].mxu0
        %2244 = vmatprep.mubr.bf16.mxu0 0
        %2245 = vmatmul.mubr.bf16.gmra.mrb[0].mxu0 %v2017
        %v2246 = vpop.f32.mrb[0].mxu0
        %v2247 = vadd.f32 %v1929, %v2246
        %v2248 = vpop.f32.mrb[0].mxu0
        %v2249 = vpop.f32.mrb[0].mxu0
        %v2250 = vadd.f32 %v1929, %v2249
        %v2251 = vpop.f32.mrb[0].mxu0
        %2252 = vmatprep.mubr.bf16.mxu0 0
        %2253 = vmatmul.mubr.bf16.gmra.mrb[0].mxu0 %v2020
        %v2254 = vpop.f32.mrb[0].mxu0
        %v2255 = vadd.f32 %v1929, %v2254
        %v2256 = vpop.f32.mrb[0].mxu0
        %v2257 = vpop.f32.mrb[0].mxu0
        %v2258 = vadd.f32 %v1929, %v2257
        %v2259 = vpop.f32.mrb[0].mxu0
        %2260 = vmatprep.mubr.bf16.mxu0 0
        %2261 = vmatmul.mubr.bf16.gmra.mrb[0].mxu0 %v2023
        %v2262 = vpop.f32.mrb[0].mxu0
        %v2263 = vadd.f32 %v1929, %v2262
        %v2264 = vpop.f32.mrb[0].mxu0
        %v2265 = vpop.f32.mrb[0].mxu0
        %v2266 = vadd.f32 %v1929, %v2265
        %v2267 = vpop.f32.mrb[0].mxu0
        %2268 = vmatprep.mubr.bf16.mxu0 0
        %2269 = vmatmul.mubr.bf16.gmra.mrb[0].mxu0 %v2026
        %v2270 = vpop.f32.mrb[0].mxu0
        %v2271 = vadd.f32 %v1929, %v2270
        %v2272 = vpop.f32.mrb[0].mxu0
        %v2273 = vpop.f32.mrb[0].mxu0
        %v2274 = vadd.f32 %v1929, %v2273
        %v2275 = vpop.f32.mrb[0].mxu0
        %2276 = vmatprep.mubr.bf16.mxu0 0
        %2277 = vmatmul.mubr.bf16.gmra.mrb[0].mxu0 %v2029
        %v2278 = vpop.f32.mrb[0].mxu0
        %v2279 = vadd.f32 %v1929, %v2278
        %v2280 = vpop.f32.mrb[0].mxu0
        %v2281 = vpop.f32.mrb[0].mxu0
        %v2282 = vadd.f32 %v1929, %v2281
        %v2283 = vpop.f32.mrb[0].mxu0
        %2284 = vmatprep.mubr.bf16.mxu0 0
        %2285 = vmatmul.mubr.bf16.gmra.mrb[0].mxu0 %v2032
        %v2286 = vpop.f32.mrb[0].mxu0
        %v2287 = vadd.f32 %v1929, %v2286
        %v2288 = vpop.f32.mrb[0].mxu0
        %v2289 = vpop.f32.mrb[0].mxu0
        %v2290 = vadd.f32 %v1929, %v2289
        %v2291 = vpop.f32.mrb[0].mxu0
        %2292 = vmatprep.mubr.bf16.mxu0 0
        %2293 = vmatmul.mubr.bf16.gmra.mrb[0].mxu0 %v2035
        %v2294 = vpop.f32.mrb[0].mxu0
        %v2295 = vadd.f32 %v1929, %v2294
        %v2296 = vpop.f32.mrb[0].mxu0
        %v2297 = vpop.f32.mrb[0].mxu0
        %v2298 = vadd.f32 %v1929, %v2297
        %v2299 = vpop.f32.mrb[0].mxu0
        %2300 = vmatprep.mubr.bf16.mxu0 0
        %2301 = vmatmul.mubr.bf16.gmra.mrb[0].mxu0 %v2038
        %v2302 = vpop.f32.mrb[0].mxu0
        %v2303 = vadd.f32 %v1929, %v2302
        %v2304 = vpop.f32.mrb[0].mxu0
        %v2305 = vpop.f32.mrb[0].mxu0
        %v2306 = vadd.f32 %v1929, %v2305
        %v2307 = vpop.f32.mrb[0].mxu0
        %2308 = vmatprep.mubr.bf16.mxu0 0
        %2309 = vmatmul.mubr.bf16.gmra.mrb[0].mxu0 %v2041
        %v2310 = vpop.f32.mrb[0].mxu0
        %v2311 = vadd.f32 %v1929, %v2310
        %v2312 = vpop.f32.mrb[0].mxu0
        %v2313 = vpop.f32.mrb[0].mxu0
        %v2314 = vadd.f32 %v1929, %v2313
        %v2315 = vpop.f32.mrb[0].mxu0
        %2316 = vmatprep.mubr.bf16.mxu0 0
        %2317 = vmatmul.mubr.bf16.gmra.mrb[0].mxu0 %v2044
        %v2318 = vpop.f32.mrb[0].mxu0
        %v2319 = vadd.f32 %v1929, %v2318
        %v2320 = vpop.f32.mrb[0].mxu0
        %v2321 = vpop.f32.mrb[0].mxu0
        %v2322 = vadd.f32 %v1929, %v2321
        %v2323 = vpop.f32.mrb[0].mxu0
        %2324 = vmatprep.mubr.bf16.mxu0 0
        %2325 = vmatmul.mubr.bf16.gmra.mrb[0].mxu0 %v2047
        %v2326 = vpop.f32.mrb[0].mxu0
        %v2327 = vadd.f32 %v1929, %v2326
        %v2328 = vpop.f32.mrb[0].mxu0
        %v2329 = vpop.f32.mrb[0].mxu0
        %v2330 = vadd.f32 %v1929, %v2329
        %v2331 = vpop.f32.mrb[0].mxu0
        %2332 = vmatprep.mubr.bf16.mxu0 0
        %2333 = vmatmul.mubr.bf16.gmra.mrb[0].mxu0 %v2050
        %v2334 = vpop.f32.mrb[0].mxu0
        %v2335 = vadd.f32 %v1929, %v2334
        %v2336 = vpop.f32.mrb[0].mxu0
        %v2337 = vpop.f32.mrb[0].mxu0
        %v2338 = vadd.f32 %v1929, %v2337
        %v2339 = vpop.f32.mrb[0].mxu0
        %2340 = vdwg.mxu0
        %v2341 = vmax.f32 %v2087, 0.0
        %v2342 = vmax.f32 %v2090, 0.0
        %v2343 = vmax.f32 %v2095, 0.0
        %v2344 = vmax.f32 %v2098, 0.0
        %v2345 = vmax.f32 %v2103, 0.0
        %v2346 = vmax.f32 %v2106, 0.0
        %v2347 = vmax.f32 %v2111, 0.0
        %v2348 = vmax.f32 %v2114, 0.0
        %v2349 = vmax.f32 %v2119, 0.0
        %v2350 = vmax.f32 %v2122, 0.0
        %v2351 = vmax.f32 %v2127, 0.0
        %v2352 = vmax.f32 %v2130, 0.0
        %v2353 = vmax.f32 %v2135, 0.0
        %v2354 = vmax.f32 %v2138, 0.0
        %v2355 = vmax.f32 %v2143, 0.0
        %v2356 = vmax.f32 %v2146, 0.0
        %v2357 = vmax.f32 %v2151, 0.0
        %v2358 = vmax.f32 %v2154, 0.0
        %v2359 = vmax.f32 %v2159, 0.0
        %v2360 = vmax.f32 %v2162, 0.0
        %v2361 = vmax.f32 %v2167, 0.0
        %v2362 = vmax.f32 %v2170, 0.0
        %v2363 = vmax.f32 %v2175, 0.0
        %v2364 = vmax.f32 %v2178, 0.0
        %v2365 = vmax.f32 %v2183, 0.0
        %v2366 = vmax.f32 %v2186, 0.0
        %v2367 = vmax.f32 %v2191, 0.0
        %v2368 = vmax.f32 %v2194, 0.0
        %v2369 = vmax.f32 %v2199, 0.0
        %v2370 = vmax.f32 %v2202, 0.0
        %v2371 = vmax.f32 %v2207, 0.0
        %v2372 = vmax.f32 %v2210, 0.0
        %v2373 = vmax.f32 %v2215, 0.0
        %v2374 = vmax.f32 %v2218, 0.0
        %v2375 = vmax.f32 %v2223, 0.0
        %v2376 = vmax.f32 %v2226, 0.0
        %v2377 = vmax.f32 %v2231, 0.0
        %v2378 = vmax.f32 %v2234, 0.0
        %v2379 = vmax.f32 %v2239, 0.0
        %v2380 = vmax.f32 %v2242, 0.0
        %v2381 = vmax.f32 %v2247, 0.0
        %v2382 = vmax.f32 %v2250, 0.0
        %v2383 = vmax.f32 %v2255, 0.0
        %v2384 = vmax.f32 %v2258, 0.0
        %v2385 = vmax.f32 %v2263, 0.0
        %v2386 = vmax.f32 %v2266, 0.0
        %v2387 = vmax.f32 %v2271, 0.0
        %v2388 = vmax.f32 %v2274, 0.0
        %v2389 = vmax.f32 %v2279, 0.0
        %v2390 = vmax.f32 %v2282, 0.0
        %v2391 = vmax.f32 %v2287, 0.0
        %v2392 = vmax.f32 %v2290, 0.0
        %v2393 = vmax.f32 %v2295, 0.0
        %v2394 = vmax.f32 %v2298, 0.0
        %v2395 = vmax.f32 %v2303, 0.0
        %v2396 = vmax.f32 %v2306, 0.0
        %v2397 = vmax.f32 %v2311, 0.0
        %v2398 = vmax.f32 %v2314, 0.0
        %v2399 = vmax.f32 %v2319, 0.0
        %v2400 = vmax.f32 %v2322, 0.0
        %v2401 = vmax.f32 %v2327, 0.0
        %v2402 = vmax.f32 %v2330, 0.0
        %v2403 = vmax.f32 %v2335, 0.0
        %v2404 = vmax.f32 %v2338, 0.0
        %v2405 = vpack.c.bf16 %v2342, %v2341
        %v2406 = vpack.c.bf16 %v2344, %v2343
        %v2407 = vpack.c.bf16 %v2346, %v2345
        %v2408 = vpack.c.bf16 %v2348, %v2347
        %v2409 = vpack.c.bf16 %v2350, %v2349
        %v2410 = vpack.c.bf16 %v2352, %v2351
        %v2411 = vpack.c.bf16 %v2354, %v2353
        %v2412 = vpack.c.bf16 %v2356, %v2355
        %v2413 = vpack.c.bf16 %v2358, %v2357
        %v2414 = vpack.c.bf16 %v2360, %v2359
        %v2415 = vpack.c.bf16 %v2362, %v2361
        %v2416 = vpack.c.bf16 %v2364, %v2363
        %v2417 = vpack.c.bf16 %v2366, %v2365
        %v2418 = vpack.c.bf16 %v2368, %v2367
        %v2419 = vpack.c.bf16 %v2370, %v2369
        %v2420 = vpack.c.bf16 %v2372, %v2371
        %v2421 = vpack.c.bf16 %v2374, %v2373
        %v2422 = vpack.c.bf16 %v2376, %v2375
        %v2423 = vpack.c.bf16 %v2378, %v2377
        %v2424 = vpack.c.bf16 %v2380, %v2379
        %v2425 = vpack.c.bf16 %v2382, %v2381
        %v2426 = vpack.c.bf16 %v2384, %v2383
        %v2427 = vpack.c.bf16 %v2386, %v2385
        %v2428 = vpack.c.bf16 %v2388, %v2387
        %v2429 = vpack.c.bf16 %v2390, %v2389
        %v2430 = vpack.c.bf16 %v2392, %v2391
        %v2431 = vpack.c.bf16 %v2394, %v2393
        %v2432 = vpack.c.bf16 %v2396, %v2395
        %v2433 = vpack.c.bf16 %v2398, %v2397
        %v2434 = vpack.c.bf16 %v2400, %v2399
        %v2435 = vpack.c.bf16 %v2402, %v2401
        %v2436 = vpack.c.bf16 %v2404, %v2403
        %v2437 = vld [vmem:[#allocation3] sm:$0xff]
        %v2438 = vld [vmem:[#allocation3 + $0x8] sm:$0xff]
        %v2439 = vld [vmem:[#allocation3 + $0x10] sm:$0xff]
        %v2440 = vld [vmem:[#allocation3 + $0x18] sm:$0xff]
        %v2441 = vld [vmem:[#allocation3 + $0x20] sm:$0xff]
        %v2442 = vld [vmem:[#allocation3 + $0x28] sm:$0xff]
        %v2443 = vld [vmem:[#allocation3 + $0x30] sm:$0xff]
        %v2444 = vld [vmem:[#allocation3 + $0x38] sm:$0xff]
        %v2445 = vld [vmem:[#allocation3 + $0x40] sm:$0xff]
        %v2446 = vld [vmem:[#allocation3 + $0x48] sm:$0xff]
        %v2447 = vld [vmem:[#allocation3 + $0x50] sm:$0xff]
        %v2448 = vld [vmem:[#allocation3 + $0x58] sm:$0xff]
        %v2449 = vld [vmem:[#allocation3 + $0x60] sm:$0xff]
        %v2450 = vld [vmem:[#allocation3 + $0x68] sm:$0xff]
        %v2451 = vld [vmem:[#allocation3 + $0x70] sm:$0xff]
        %v2452 = vld [vmem:[#allocation3 + $0x78] sm:$0xff]
        %v2453 = vld [vmem:[#allocation3 + $0x80] sm:$0xff]
        %v2454 = vld [vmem:[#allocation3 + $0x88] sm:$0xff]
        %v2455 = vld [vmem:[#allocation3 + $0x90] sm:$0xff]
        %v2456 = vld [vmem:[#allocation3 + $0x98] sm:$0xff]
        %v2457 = vld [vmem:[#allocation3 + $0xa0] sm:$0xff]
        %v2458 = vld [vmem:[#allocation3 + $0xa8] sm:$0xff]
        %v2459 = vld [vmem:[#allocation3 + $0xb0] sm:$0xff]
        %v2460 = vld [vmem:[#allocation3 + $0xb8] sm:$0xff]
        %v2461 = vld [vmem:[#allocation3 + $0xc0] sm:$0xff]
        %v2462 = vld [vmem:[#allocation3 + $0xc8] sm:$0xff]
        %v2463 = vld [vmem:[#allocation3 + $0xd0] sm:$0xff]
        %v2464 = vld [vmem:[#allocation3 + $0xd8] sm:$0xff]
        %v2465 = vld [vmem:[#allocation3 + $0xe0] sm:$0xff]
        %v2466 = vld [vmem:[#allocation3 + $0xe8] sm:$0xff]
        %v2467 = vld [vmem:[#allocation3 + $0xf0] sm:$0xff]
        %v2468 = vld [vmem:[#allocation3 + $0xf8] sm:$0xff]
        %v2469 = vld [vmem:[%s6] sm:$0xf]
        %v2471 = vlaneseq
        %v2472 = vshrl.u32 %v2471, 7
        %v2473 = vsub.s32 0, %v2472
        %v2474 = vrot.slane %v2469, %v2473
        %v2475 = vlaneseq
        %v2476 = vshrl.u32 %v2475, 7
        %v2477 = vsub.s32 1, %v2476
        %v2478 = vrot.slane %v2469, %v2477
        %v2479 = vlaneseq
        %v2480 = vshrl.u32 %v2479, 7
        %v2481 = vsub.s32 2, %v2480
        %v2482 = vrot.slane %v2469, %v2481
        %v2483 = vlaneseq
        %v2484 = vshrl.u32 %v2483, 7
        %v2485 = vsub.s32 3, %v2484
        %v2486 = vrot.slane %v2469, %v2485
        %v2523 = vunpack.c.l.b16 %v2437
        %v2524 = vunpack.c.h.b16 %v2437
        %v2525 = vunpack.c.l.b16 %v2438
        %v2526 = vunpack.c.h.b16 %v2438
        %v2527 = vunpack.c.l.b16 %v2439
        %v2528 = vunpack.c.h.b16 %v2439
        %v2529 = vunpack.c.l.b16 %v2440
        %v2530 = vunpack.c.h.b16 %v2440
        %v2531 = vunpack.c.l.b16 %v2441
        %v2532 = vunpack.c.h.b16 %v2441
        %v2533 = vunpack.c.l.b16 %v2442
        %v2534 = vunpack.c.h.b16 %v2442
        %v2535 = vunpack.c.l.b16 %v2443
        %v2536 = vunpack.c.h.b16 %v2443
        %v2537 = vunpack.c.l.b16 %v2444
        %v2538 = vunpack.c.h.b16 %v2444
        %v2539 = vunpack.c.l.b16 %v2445
        %v2540 = vunpack.c.h.b16 %v2445
        %v2541 = vunpack.c.l.b16 %v2446
        %v2542 = vunpack.c.h.b16 %v2446
        %v2543 = vunpack.c.l.b16 %v2447
        %v2544 = vunpack.c.h.b16 %v2447
        %v2545 = vunpack.c.l.b16 %v2448
        %v2546 = vunpack.c.h.b16 %v2448
        %v2547 = vunpack.c.l.b16 %v2449
        %v2548 = vunpack.c.h.b16 %v2449
        %v2549 = vunpack.c.l.b16 %v2450
        %v2550 = vunpack.c.h.b16 %v2450
        %v2551 = vunpack.c.l.b16 %v2451
        %v2552 = vunpack.c.h.b16 %v2451
        %v2553 = vunpack.c.l.b16 %v2452
        %v2554 = vunpack.c.h.b16 %v2452
        %v2555 = vunpack.c.l.b16 %v2453
        %v2556 = vunpack.c.h.b16 %v2453
        %v2557 = vunpack.c.l.b16 %v2454
        %v2558 = vunpack.c.h.b16 %v2454
        %v2559 = vunpack.c.l.b16 %v2455
        %v2560 = vunpack.c.h.b16 %v2455
        %v2561 = vunpack.c.l.b16 %v2456
        %v2562 = vunpack.c.h.b16 %v2456
        %v2563 = vunpack.c.l.b16 %v2457
        %v2564 = vunpack.c.h.b16 %v2457
        %v2565 = vunpack.c.l.b16 %v2458
        %v2566 = vunpack.c.h.b16 %v2458
        %v2567 = vunpack.c.l.b16 %v2459
        %v2568 = vunpack.c.h.b16 %v2459
        %v2569 = vunpack.c.l.b16 %v2460
        %v2570 = vunpack.c.h.b16 %v2460
        %v2571 = vunpack.c.l.b16 %v2461
        %v2572 = vunpack.c.h.b16 %v2461
        %v2573 = vunpack.c.l.b16 %v2462
        %v2574 = vunpack.c.h.b16 %v2462
        %v2575 = vunpack.c.l.b16 %v2463
        %v2576 = vunpack.c.h.b16 %v2463
        %v2577 = vunpack.c.l.b16 %v2464
        %v2578 = vunpack.c.h.b16 %v2464
        %v2579 = vunpack.c.l.b16 %v2465
        %v2580 = vunpack.c.h.b16 %v2465
        %v2581 = vunpack.c.l.b16 %v2466
        %v2582 = vunpack.c.h.b16 %v2466
        %v2583 = vunpack.c.l.b16 %v2467
        %v2584 = vunpack.c.h.b16 %v2467
        %v2585 = vunpack.c.l.b16 %v2468
        %v2586 = vunpack.c.h.b16 %v2468
        %v2587 = vpack.c.b16 %v2527, %v2523
        %v2588 = vpack.c.b16 %v2528, %v2524
        %v2589 = vpack.c.b16 %v2529, %v2525
        %v2590 = vpack.c.b16 %v2530, %v2526
        %v2591 = vpack.c.b16 %v2535, %v2531
        %v2592 = vpack.c.b16 %v2536, %v2532
        %v2593 = vpack.c.b16 %v2537, %v2533
        %v2594 = vpack.c.b16 %v2538, %v2534
        %v2595 = vpack.c.b16 %v2543, %v2539
        %v2596 = vpack.c.b16 %v2544, %v2540
        %v2597 = vpack.c.b16 %v2545, %v2541
        %v2598 = vpack.c.b16 %v2546, %v2542
        %v2599 = vpack.c.b16 %v2551, %v2547
        %v2600 = vpack.c.b16 %v2552, %v2548
        %v2601 = vpack.c.b16 %v2553, %v2549
        %v2602 = vpack.c.b16 %v2554, %v2550
        %v2603 = vpack.c.b16 %v2559, %v2555
        %v2604 = vpack.c.b16 %v2560, %v2556
        %v2605 = vpack.c.b16 %v2561, %v2557
        %v2606 = vpack.c.b16 %v2562, %v2558
        %v2607 = vpack.c.b16 %v2567, %v2563
        %v2608 = vpack.c.b16 %v2568, %v2564
        %v2609 = vpack.c.b16 %v2569, %v2565
        %v2610 = vpack.c.b16 %v2570, %v2566
        %v2611 = vpack.c.b16 %v2575, %v2571
        %v2612 = vpack.c.b16 %v2576, %v2572
        %v2613 = vpack.c.b16 %v2577, %v2573
        %v2614 = vpack.c.b16 %v2578, %v2574
        %v2615 = vpack.c.b16 %v2583, %v2579
        %v2616 = vpack.c.b16 %v2584, %v2580
        %v2617 = vpack.c.b16 %v2585, %v2581
        %v2618 = vpack.c.b16 %v2586, %v2582
        %2651 = vmatprep.subr.bf16.mxu0 %v2588
        %2652 = vmatpush1.bf16.msra.mxu0 %v2587
        %2653 = vmatprep.subr.bf16.mxu0 %v2592
        %2654 = vmatpush1.bf16.msra.mxu0 %v2591
        %2655 = vmatprep.subr.bf16.mxu0 %v2596
        %2656 = vmatpush1.bf16.msra.mxu0 %v2595
        %2657 = vmatprep.subr.bf16.mxu0 %v2600
        %2658 = vmatpush1.bf16.msra.mxu0 %v2599
        %2659 = vmatprep.subr.bf16.mxu0 %v2604
        %2660 = vmatpush1.bf16.msra.mxu0 %v2603
        %2661 = vmatprep.subr.bf16.mxu0 %v2608
        %2662 = vmatpush1.bf16.msra.mxu0 %v2607
        %2663 = vmatprep.subr.bf16.mxu0 %v2612
        %2664 = vmatpush1.bf16.msra.mxu0 %v2611
        %2665 = vmatprep.subr.bf16.mxu0 %v2616
        %2666 = vmatpush1.bf16.msra.mxu0 %v2615
        %2667 = vmatprep.subr.bf16.mxu0 0
        %2668 = vmatpush1.bf16.msra.mxu0 0
        %2669 = vmatprep.subr.bf16.mxu0 0
        %2670 = vmatpush1.bf16.msra.mxu0 0
        %2671 = vmatprep.subr.bf16.mxu0 0
        %2672 = vmatpush1.bf16.msra.mxu0 0
        %2673 = vmatprep.subr.bf16.mxu0 0
        %2674 = vmatpush1.bf16.msra.mxu0 0
        %2675 = vmatprep.subr.bf16.mxu0 0
        %2676 = vmatpush1.bf16.msra.mxu0 0
        %2677 = vmatprep.subr.bf16.mxu0 0
        %2678 = vmatpush1.bf16.msra.mxu0 0
        %2679 = vmatprep.subr.bf16.mxu0 0
        %2680 = vmatpush1.bf16.msra.mxu0 0
        %2681 = vmatprep.subr.bf16.mxu0 0
        %2682 = vmatpush1.bf16.msra.mxu0 0
        %2683 = vmatprep.mubr.bf16.mxu0 0
        %2684 = vmatmul.mubr.bf16.gmra.mrb[0].mxu0 %v2405
        %v2685 = vpop.f32.mrb[0].mxu0
        %v2686 = vadd.f32 %v2474, %v2685
        %v2687 = vpop.f32.mrb[0].mxu0
        %v2688 = vadd.f32 %v2478, %v2687
        %v2689 = vpop.f32.mrb[0].mxu0
        %v2690 = vadd.f32 %v2474, %v2689
        %v2691 = vpop.f32.mrb[0].mxu0
        %v2692 = vadd.f32 %v2478, %v2691
        %2693 = vmatprep.mubr.bf16.mxu0 0
        %2694 = vmatmul.mubr.bf16.gmra.mrb[0].mxu0 %v2406
        %v2695 = vpop.f32.mrb[0].mxu0
        %v2696 = vadd.f32 %v2474, %v2695
        %v2697 = vpop.f32.mrb[0].mxu0
        %v2698 = vadd.f32 %v2478, %v2697
        %v2699 = vpop.f32.mrb[0].mxu0
        %v2700 = vadd.f32 %v2474, %v2699
        %v2701 = vpop.f32.mrb[0].mxu0
        %v2702 = vadd.f32 %v2478, %v2701
        %2703 = vmatprep.mubr.bf16.mxu0 0
        %2704 = vmatmul.mubr.bf16.gmra.mrb[0].mxu0 %v2407
        %v2705 = vpop.f32.mrb[0].mxu0
        %v2706 = vadd.f32 %v2474, %v2705
        %v2707 = vpop.f32.mrb[0].mxu0
        %v2708 = vadd.f32 %v2478, %v2707
        %v2709 = vpop.f32.mrb[0].mxu0
        %v2710 = vadd.f32 %v2474, %v2709
        %v2711 = vpop.f32.mrb[0].mxu0
        %v2712 = vadd.f32 %v2478, %v2711
        %2713 = vmatprep.mubr.bf16.mxu0 0
        %2714 = vmatmul.mubr.bf16.gmra.mrb[0].mxu0 %v2408
        %v2715 = vpop.f32.mrb[0].mxu0
        %v2716 = vadd.f32 %v2474, %v2715
        %v2717 = vpop.f32.mrb[0].mxu0
        %v2718 = vadd.f32 %v2478, %v2717
        %v2719 = vpop.f32.mrb[0].mxu0
        %v2720 = vadd.f32 %v2474, %v2719
        %v2721 = vpop.f32.mrb[0].mxu0
        %v2722 = vadd.f32 %v2478, %v2721
        %2723 = vmatprep.mubr.bf16.mxu0 0
        %2724 = vmatmul.mubr.bf16.gmra.mrb[0].mxu0 %v2409
        %v2725 = vpop.f32.mrb[0].mxu0
        %v2726 = vadd.f32 %v2474, %v2725
        %v2727 = vpop.f32.mrb[0].mxu0
        %v2728 = vadd.f32 %v2478, %v2727
        %v2729 = vpop.f32.mrb[0].mxu0
        %v2730 = vadd.f32 %v2474, %v2729
        %v2731 = vpop.f32.mrb[0].mxu0
        %v2732 = vadd.f32 %v2478, %v2731
        %2733 = vmatprep.mubr.bf16.mxu0 0
        %2734 = vmatmul.mubr.bf16.gmra.mrb[0].mxu0 %v2410
        %v2735 = vpop.f32.mrb[0].mxu0
        %v2736 = vadd.f32 %v2474, %v2735
        %v2737 = vpop.f32.mrb[0].mxu0
        %v2738 = vadd.f32 %v2478, %v2737
        %v2739 = vpop.f32.mrb[0].mxu0
        %v2740 = vadd.f32 %v2474, %v2739
        %v2741 = vpop.f32.mrb[0].mxu0
        %v2742 = vadd.f32 %v2478, %v2741
        %2743 = vmatprep.mubr.bf16.mxu0 0
        %2744 = vmatmul.mubr.bf16.gmra.mrb[0].mxu0 %v2411
        %v2745 = vpop.f32.mrb[0].mxu0
        %v2746 = vadd.f32 %v2474, %v2745
        %v2747 = vpop.f32.mrb[0].mxu0
        %v2748 = vadd.f32 %v2478, %v2747
        %v2749 = vpop.f32.mrb[0].mxu0
        %v2750 = vadd.f32 %v2474, %v2749
        %v2751 = vpop.f32.mrb[0].mxu0
        %v2752 = vadd.f32 %v2478, %v2751
        %2753 = vmatprep.mubr.bf16.mxu0 0
        %2754 = vmatmul.mubr.bf16.gmra.mrb[0].mxu0 %v2412
        %v2755 = vpop.f32.mrb[0].mxu0
        %v2756 = vadd.f32 %v2474, %v2755
        %v2757 = vpop.f32.mrb[0].mxu0
        %v2758 = vadd.f32 %v2478, %v2757
        %v2759 = vpop.f32.mrb[0].mxu0
        %v2760 = vadd.f32 %v2474, %v2759
        %v2761 = vpop.f32.mrb[0].mxu0
        %v2762 = vadd.f32 %v2478, %v2761
        %2763 = vmatprep.mubr.bf16.mxu0 0
        %2764 = vmatmul.mubr.bf16.gmra.mrb[0].mxu0 %v2413
        %v2765 = vpop.f32.mrb[0].mxu0
        %v2766 = vadd.f32 %v2474, %v2765
        %v2767 = vpop.f32.mrb[0].mxu0
        %v2768 = vadd.f32 %v2478, %v2767
        %v2769 = vpop.f32.mrb[0].mxu0
        %v2770 = vadd.f32 %v2474, %v2769
        %v2771 = vpop.f32.mrb[0].mxu0
        %v2772 = vadd.f32 %v2478, %v2771
        %2773 = vmatprep.mubr.bf16.mxu0 0
        %2774 = vmatmul.mubr.bf16.gmra.mrb[0].mxu0 %v2414
        %v2775 = vpop.f32.mrb[0].mxu0
        %v2776 = vadd.f32 %v2474, %v2775
        %v2777 = vpop.f32.mrb[0].mxu0
        %v2778 = vadd.f32 %v2478, %v2777
        %v2779 = vpop.f32.mrb[0].mxu0
        %v2780 = vadd.f32 %v2474, %v2779
        %v2781 = vpop.f32.mrb[0].mxu0
        %v2782 = vadd.f32 %v2478, %v2781
        %2783 = vmatprep.mubr.bf16.mxu0 0
        %2784 = vmatmul.mubr.bf16.gmra.mrb[0].mxu0 %v2415
        %v2785 = vpop.f32.mrb[0].mxu0
        %v2786 = vadd.f32 %v2474, %v2785
        %v2787 = vpop.f32.mrb[0].mxu0
        %v2788 = vadd.f32 %v2478, %v2787
        %v2789 = vpop.f32.mrb[0].mxu0
        %v2790 = vadd.f32 %v2474, %v2789
        %v2791 = vpop.f32.mrb[0].mxu0
        %v2792 = vadd.f32 %v2478, %v2791
        %2793 = vmatprep.mubr.bf16.mxu0 0
        %2794 = vmatmul.mubr.bf16.gmra.mrb[0].mxu0 %v2416
        %v2795 = vpop.f32.mrb[0].mxu0
        %v2796 = vadd.f32 %v2474, %v2795
        %v2797 = vpop.f32.mrb[0].mxu0
        %v2798 = vadd.f32 %v2478, %v2797
        %v2799 = vpop.f32.mrb[0].mxu0
        %v2800 = vadd.f32 %v2474, %v2799
        %v2801 = vpop.f32.mrb[0].mxu0
        %v2802 = vadd.f32 %v2478, %v2801
        %2803 = vmatprep.mubr.bf16.mxu0 0
        %2804 = vmatmul.mubr.bf16.gmra.mrb[0].mxu0 %v2417
        %v2805 = vpop.f32.mrb[0].mxu0
        %v2806 = vadd.f32 %v2474, %v2805
        %v2807 = vpop.f32.mrb[0].mxu0
        %v2808 = vadd.f32 %v2478, %v2807
        %v2809 = vpop.f32.mrb[0].mxu0
        %v2810 = vadd.f32 %v2474, %v2809
        %v2811 = vpop.f32.mrb[0].mxu0
        %v2812 = vadd.f32 %v2478, %v2811
        %2813 = vmatprep.mubr.bf16.mxu0 0
        %2814 = vmatmul.mubr.bf16.gmra.mrb[0].mxu0 %v2418
        %v2815 = vpop.f32.mrb[0].mxu0
        %v2816 = vadd.f32 %v2474, %v2815
        %v2817 = vpop.f32.mrb[0].mxu0
        %v2818 = vadd.f32 %v2478, %v2817
        %v2819 = vpop.f32.mrb[0].mxu0
        %v2820 = vadd.f32 %v2474, %v2819
        %v2821 = vpop.f32.mrb[0].mxu0
        %v2822 = vadd.f32 %v2478, %v2821
        %2823 = vmatprep.mubr.bf16.mxu0 0
        %2824 = vmatmul.mubr.bf16.gmra.mrb[0].mxu0 %v2419
        %v2825 = vpop.f32.mrb[0].mxu0
        %v2826 = vadd.f32 %v2474, %v2825
        %v2827 = vpop.f32.mrb[0].mxu0
        %v2828 = vadd.f32 %v2478, %v2827
        %v2829 = vpop.f32.mrb[0].mxu0
        %v2830 = vadd.f32 %v2474, %v2829
        %v2831 = vpop.f32.mrb[0].mxu0
        %v2832 = vadd.f32 %v2478, %v2831
        %2833 = vmatprep.mubr.bf16.mxu0 0
        %2834 = vmatmul.mubr.bf16.gmra.mrb[0].mxu0 %v2420
        %v2835 = vpop.f32.mrb[0].mxu0
        %v2836 = vadd.f32 %v2474, %v2835
        %v2837 = vpop.f32.mrb[0].mxu0
        %v2838 = vadd.f32 %v2478, %v2837
        %v2839 = vpop.f32.mrb[0].mxu0
        %v2840 = vadd.f32 %v2474, %v2839
        %v2841 = vpop.f32.mrb[0].mxu0
        %v2842 = vadd.f32 %v2478, %v2841
        %2843 = vmatprep.mubr.bf16.mxu0 0
        %2844 = vmatmul.mubr.bf16.gmra.mrb[0].mxu0 %v2421
        %v2845 = vpop.f32.mrb[0].mxu0
        %v2846 = vadd.f32 %v2474, %v2845
        %v2847 = vpop.f32.mrb[0].mxu0
        %v2848 = vadd.f32 %v2478, %v2847
        %v2849 = vpop.f32.mrb[0].mxu0
        %v2850 = vadd.f32 %v2474, %v2849
        %v2851 = vpop.f32.mrb[0].mxu0
        %v2852 = vadd.f32 %v2478, %v2851
        %2853 = vmatprep.mubr.bf16.mxu0 0
        %2854 = vmatmul.mubr.bf16.gmra.mrb[0].mxu0 %v2422
        %v2855 = vpop.f32.mrb[0].mxu0
        %v2856 = vadd.f32 %v2474, %v2855
        %v2857 = vpop.f32.mrb[0].mxu0
        %v2858 = vadd.f32 %v2478, %v2857
        %v2859 = vpop.f32.mrb[0].mxu0
        %v2860 = vadd.f32 %v2474, %v2859
        %v2861 = vpop.f32.mrb[0].mxu0
        %v2862 = vadd.f32 %v2478, %v2861
        %2863 = vmatprep.mubr.bf16.mxu0 0
        %2864 = vmatmul.mubr.bf16.gmra.mrb[0].mxu0 %v2423
        %v2865 = vpop.f32.mrb[0].mxu0
        %v2866 = vadd.f32 %v2474, %v2865
        %v2867 = vpop.f32.mrb[0].mxu0
        %v2868 = vadd.f32 %v2478, %v2867
        %v2869 = vpop.f32.mrb[0].mxu0
        %v2870 = vadd.f32 %v2474, %v2869
        %v2871 = vpop.f32.mrb[0].mxu0
        %v2872 = vadd.f32 %v2478, %v2871
        %2873 = vmatprep.mubr.bf16.mxu0 0
        %2874 = vmatmul.mubr.bf16.gmra.mrb[0].mxu0 %v2424
        %v2875 = vpop.f32.mrb[0].mxu0
        %v2876 = vadd.f32 %v2474, %v2875
        %v2877 = vpop.f32.mrb[0].mxu0
        %v2878 = vadd.f32 %v2478, %v2877
        %v2879 = vpop.f32.mrb[0].mxu0
        %v2880 = vadd.f32 %v2474, %v2879
        %v2881 = vpop.f32.mrb[0].mxu0
        %v2882 = vadd.f32 %v2478, %v2881
        %2883 = vmatprep.mubr.bf16.mxu0 0
        %2884 = vmatmul.mubr.bf16.gmra.mrb[0].mxu0 %v2425
        %v2885 = vpop.f32.mrb[0].mxu0
        %v2886 = vadd.f32 %v2474, %v2885
        %v2887 = vpop.f32.mrb[0].mxu0
        %v2888 = vadd.f32 %v2478, %v2887
        %v2889 = vpop.f32.mrb[0].mxu0
        %v2890 = vadd.f32 %v2474, %v2889
        %v2891 = vpop.f32.mrb[0].mxu0
        %v2892 = vadd.f32 %v2478, %v2891
        %2893 = vmatprep.mubr.bf16.mxu0 0
        %2894 = vmatmul.mubr.bf16.gmra.mrb[0].mxu0 %v2426
        %v2895 = vpop.f32.mrb[0].mxu0
        %v2896 = vadd.f32 %v2474, %v2895
        %v2897 = vpop.f32.mrb[0].mxu0
        %v2898 = vadd.f32 %v2478, %v2897
        %v2899 = vpop.f32.mrb[0].mxu0
        %v2900 = vadd.f32 %v2474, %v2899
        %v2901 = vpop.f32.mrb[0].mxu0
        %v2902 = vadd.f32 %v2478, %v2901
        %2903 = vmatprep.mubr.bf16.mxu0 0
        %2904 = vmatmul.mubr.bf16.gmra.mrb[0].mxu0 %v2427
        %v2905 = vpop.f32.mrb[0].mxu0
        %v2906 = vadd.f32 %v2474, %v2905
        %v2907 = vpop.f32.mrb[0].mxu0
        %v2908 = vadd.f32 %v2478, %v2907
        %v2909 = vpop.f32.mrb[0].mxu0
        %v2910 = vadd.f32 %v2474, %v2909
        %v2911 = vpop.f32.mrb[0].mxu0
        %v2912 = vadd.f32 %v2478, %v2911
        %2913 = vmatprep.mubr.bf16.mxu0 0
        %2914 = vmatmul.mubr.bf16.gmra.mrb[0].mxu0 %v2428
        %v2915 = vpop.f32.mrb[0].mxu0
        %v2916 = vadd.f32 %v2474, %v2915
        %v2917 = vpop.f32.mrb[0].mxu0
        %v2918 = vadd.f32 %v2478, %v2917
        %v2919 = vpop.f32.mrb[0].mxu0
        %v2920 = vadd.f32 %v2474, %v2919
        %v2921 = vpop.f32.mrb[0].mxu0
        %v2922 = vadd.f32 %v2478, %v2921
        %2923 = vmatprep.mubr.bf16.mxu0 0
        %2924 = vmatmul.mubr.bf16.gmra.mrb[0].mxu0 %v2429
        %v2925 = vpop.f32.mrb[0].mxu0
        %v2926 = vadd.f32 %v2474, %v2925
        %v2927 = vpop.f32.mrb[0].mxu0
        %v2928 = vadd.f32 %v2478, %v2927
        %v2929 = vpop.f32.mrb[0].mxu0
        %v2930 = vadd.f32 %v2474, %v2929
        %v2931 = vpop.f32.mrb[0].mxu0
        %v2932 = vadd.f32 %v2478, %v2931
        %2933 = vmatprep.mubr.bf16.mxu0 0
        %2934 = vmatmul.mubr.bf16.gmra.mrb[0].mxu0 %v2430
        %v2935 = vpop.f32.mrb[0].mxu0
        %v2936 = vadd.f32 %v2474, %v2935
        %v2937 = vpop.f32.mrb[0].mxu0
        %v2938 = vadd.f32 %v2478, %v2937
        %v2939 = vpop.f32.mrb[0].mxu0
        %v2940 = vadd.f32 %v2474, %v2939
        %v2941 = vpop.f32.mrb[0].mxu0
        %v2942 = vadd.f32 %v2478, %v2941
        %2943 = vmatprep.mubr.bf16.mxu0 0
        %2944 = vmatmul.mubr.bf16.gmra.mrb[0].mxu0 %v2431
        %v2945 = vpop.f32.mrb[0].mxu0
        %v2946 = vadd.f32 %v2474, %v2945
        %v2947 = vpop.f32.mrb[0].mxu0
        %v2948 = vadd.f32 %v2478, %v2947
        %v2949 = vpop.f32.mrb[0].mxu0
        %v2950 = vadd.f32 %v2474, %v2949
        %v2951 = vpop.f32.mrb[0].mxu0
        %v2952 = vadd.f32 %v2478, %v2951
        %2953 = vmatprep.mubr.bf16.mxu0 0
        %2954 = vmatmul.mubr.bf16.gmra.mrb[0].mxu0 %v2432
        %v2955 = vpop.f32.mrb[0].mxu0
        %v2956 = vadd.f32 %v2474, %v2955
        %v2957 = vpop.f32.mrb[0].mxu0
        %v2958 = vadd.f32 %v2478, %v2957
        %v2959 = vpop.f32.mrb[0].mxu0
        %v2960 = vadd.f32 %v2474, %v2959
        %v2961 = vpop.f32.mrb[0].mxu0
        %v2962 = vadd.f32 %v2478, %v2961
        %2963 = vmatprep.mubr.bf16.mxu0 0
        %2964 = vmatmul.mubr.bf16.gmra.mrb[0].mxu0 %v2433
        %v2965 = vpop.f32.mrb[0].mxu0
        %v2966 = vadd.f32 %v2474, %v2965
        %v2967 = vpop.f32.mrb[0].mxu0
        %v2968 = vadd.f32 %v2478, %v2967
        %v2969 = vpop.f32.mrb[0].mxu0
        %v2970 = vadd.f32 %v2474, %v2969
        %v2971 = vpop.f32.mrb[0].mxu0
        %v2972 = vadd.f32 %v2478, %v2971
        %2973 = vmatprep.mubr.bf16.mxu0 0
        %2974 = vmatmul.mubr.bf16.gmra.mrb[0].mxu0 %v2434
        %v2975 = vpop.f32.mrb[0].mxu0
        %v2976 = vadd.f32 %v2474, %v2975
        %v2977 = vpop.f32.mrb[0].mxu0
        %v2978 = vadd.f32 %v2478, %v2977
        %v2979 = vpop.f32.mrb[0].mxu0
        %v2980 = vadd.f32 %v2474, %v2979
        %v2981 = vpop.f32.mrb[0].mxu0
        %v2982 = vadd.f32 %v2478, %v2981
        %2983 = vmatprep.mubr.bf16.mxu0 0
        %2984 = vmatmul.mubr.bf16.gmra.mrb[0].mxu0 %v2435
        %v2985 = vpop.f32.mrb[0].mxu0
        %v2986 = vadd.f32 %v2474, %v2985
        %v2987 = vpop.f32.mrb[0].mxu0
        %v2988 = vadd.f32 %v2478, %v2987
        %v2989 = vpop.f32.mrb[0].mxu0
        %v2990 = vadd.f32 %v2474, %v2989
        %v2991 = vpop.f32.mrb[0].mxu0
        %v2992 = vadd.f32 %v2478, %v2991
        %2993 = vmatprep.mubr.bf16.mxu0 0
        %2994 = vmatmul.mubr.bf16.gmra.mrb[0].mxu0 %v2436
        %v2995 = vpop.f32.mrb[0].mxu0
        %v2996 = vadd.f32 %v2474, %v2995
        %v2997 = vpop.f32.mrb[0].mxu0
        %v2998 = vadd.f32 %v2478, %v2997
        %v2999 = vpop.f32.mrb[0].mxu0
        %v3000 = vadd.f32 %v2474, %v2999
        %v3001 = vpop.f32.mrb[0].mxu0
        %v3002 = vadd.f32 %v2478, %v3001
        %3003 = vdwg.mxu0
        %3004 = vmatprep.subr.bf16.mxu0 %v2590
        %3005 = vmatpush1.bf16.msra.mxu0 %v2589
        %3006 = vmatprep.subr.bf16.mxu0 %v2594
        %3007 = vmatpush1.bf16.msra.mxu0 %v2593
        %3008 = vmatprep.subr.bf16.mxu0 %v2598
        %3009 = vmatpush1.bf16.msra.mxu0 %v2597
        %3010 = vmatprep.subr.bf16.mxu0 %v2602
        %3011 = vmatpush1.bf16.msra.mxu0 %v2601
        %3012 = vmatprep.subr.bf16.mxu0 %v2606
        %3013 = vmatpush1.bf16.msra.mxu0 %v2605
        %3014 = vmatprep.subr.bf16.mxu0 %v2610
        %3015 = vmatpush1.bf16.msra.mxu0 %v2609
        %3016 = vmatprep.subr.bf16.mxu0 %v2614
        %3017 = vmatpush1.bf16.msra.mxu0 %v2613
        %3018 = vmatprep.subr.bf16.mxu0 %v2618
        %3019 = vmatpush1.bf16.msra.mxu0 %v2617
        %3020 = vmatprep.subr.bf16.mxu0 0
        %3021 = vmatpush1.bf16.msra.mxu0 0
        %3022 = vmatprep.subr.bf16.mxu0 0
        %3023 = vmatpush1.bf16.msra.mxu0 0
        %3024 = vmatprep.subr.bf16.mxu0 0
        %3025 = vmatpush1.bf16.msra.mxu0 0
        %3026 = vmatprep.subr.bf16.mxu0 0
        %3027 = vmatpush1.bf16.msra.mxu0 0
        %3028 = vmatprep.subr.bf16.mxu0 0
        %3029 = vmatpush1.bf16.msra.mxu0 0
        %3030 = vmatprep.subr.bf16.mxu0 0
        %3031 = vmatpush1.bf16.msra.mxu0 0
        %3032 = vmatprep.subr.bf16.mxu0 0
        %3033 = vmatpush1.bf16.msra.mxu0 0
        %3034 = vmatprep.subr.bf16.mxu0 0
        %3035 = vmatpush1.bf16.msra.mxu0 0
        %3036 = vmatprep.mubr.bf16.mxu0 0
        %3037 = vmatmul.mubr.bf16.gmra.mrb[0].mxu0 %v2405
        %v3038 = vpop.f32.mrb[0].mxu0
        %v3039 = vadd.f32 %v2482, %v3038
        %v3040 = vpop.f32.mrb[0].mxu0
        %v3041 = vadd.f32 %v2486, %v3040
        %v3042 = vpop.f32.mrb[0].mxu0
        %v3043 = vadd.f32 %v2482, %v3042
        %v3044 = vpop.f32.mrb[0].mxu0
        %v3045 = vadd.f32 %v2486, %v3044
        %3046 = vmatprep.mubr.bf16.mxu0 0
        %3047 = vmatmul.mubr.bf16.gmra.mrb[0].mxu0 %v2406
        %v3048 = vpop.f32.mrb[0].mxu0
        %v3049 = vadd.f32 %v2482, %v3048
        %v3050 = vpop.f32.mrb[0].mxu0
        %v3051 = vadd.f32 %v2486, %v3050
        %v3052 = vpop.f32.mrb[0].mxu0
        %v3053 = vadd.f32 %v2482, %v3052
        %v3054 = vpop.f32.mrb[0].mxu0
        %v3055 = vadd.f32 %v2486, %v3054
        %3056 = vmatprep.mubr.bf16.mxu0 0
        %3057 = vmatmul.mubr.bf16.gmra.mrb[0].mxu0 %v2407
        %v3058 = vpop.f32.mrb[0].mxu0
        %v3059 = vadd.f32 %v2482, %v3058
        %v3060 = vpop.f32.mrb[0].mxu0
        %v3061 = vadd.f32 %v2486, %v3060
        %v3062 = vpop.f32.mrb[0].mxu0
        %v3063 = vadd.f32 %v2482, %v3062
        %v3064 = vpop.f32.mrb[0].mxu0
        %v3065 = vadd.f32 %v2486, %v3064
        %3066 = vmatprep.mubr.bf16.mxu0 0
        %3067 = vmatmul.mubr.bf16.gmra.mrb[0].mxu0 %v2408
        %v3068 = vpop.f32.mrb[0].mxu0
        %v3069 = vadd.f32 %v2482, %v3068
        %v3070 = vpop.f32.mrb[0].mxu0
        %v3071 = vadd.f32 %v2486, %v3070
        %v3072 = vpop.f32.mrb[0].mxu0
        %v3073 = vadd.f32 %v2482, %v3072
        %v3074 = vpop.f32.mrb[0].mxu0
        %v3075 = vadd.f32 %v2486, %v3074
        %3076 = vmatprep.mubr.bf16.mxu0 0
        %3077 = vmatmul.mubr.bf16.gmra.mrb[0].mxu0 %v2409
        %v3078 = vpop.f32.mrb[0].mxu0
        %v3079 = vadd.f32 %v2482, %v3078
        %v3080 = vpop.f32.mrb[0].mxu0
        %v3081 = vadd.f32 %v2486, %v3080
        %v3082 = vpop.f32.mrb[0].mxu0
        %v3083 = vadd.f32 %v2482, %v3082
        %v3084 = vpop.f32.mrb[0].mxu0
        %v3085 = vadd.f32 %v2486, %v3084
        %3086 = vmatprep.mubr.bf16.mxu0 0
        %3087 = vmatmul.mubr.bf16.gmra.mrb[0].mxu0 %v2410
        %v3088 = vpop.f32.mrb[0].mxu0
        %v3089 = vadd.f32 %v2482, %v3088
        %v3090 = vpop.f32.mrb[0].mxu0
        %v3091 = vadd.f32 %v2486, %v3090
        %v3092 = vpop.f32.mrb[0].mxu0
        %v3093 = vadd.f32 %v2482, %v3092
        %v3094 = vpop.f32.mrb[0].mxu0
        %v3095 = vadd.f32 %v2486, %v3094
        %3096 = vmatprep.mubr.bf16.mxu0 0
        %3097 = vmatmul.mubr.bf16.gmra.mrb[0].mxu0 %v2411
        %v3098 = vpop.f32.mrb[0].mxu0
        %v3099 = vadd.f32 %v2482, %v3098
        %v3100 = vpop.f32.mrb[0].mxu0
        %v3101 = vadd.f32 %v2486, %v3100
        %v3102 = vpop.f32.mrb[0].mxu0
        %v3103 = vadd.f32 %v2482, %v3102
        %v3104 = vpop.f32.mrb[0].mxu0
        %v3105 = vadd.f32 %v2486, %v3104
        %3106 = vmatprep.mubr.bf16.mxu0 0
        %3107 = vmatmul.mubr.bf16.gmra.mrb[0].mxu0 %v2412
        %v3108 = vpop.f32.mrb[0].mxu0
        %v3109 = vadd.f32 %v2482, %v3108
        %v3110 = vpop.f32.mrb[0].mxu0
        %v3111 = vadd.f32 %v2486, %v3110
        %v3112 = vpop.f32.mrb[0].mxu0
        %v3113 = vadd.f32 %v2482, %v3112
        %v3114 = vpop.f32.mrb[0].mxu0
        %v3115 = vadd.f32 %v2486, %v3114
        %3116 = vmatprep.mubr.bf16.mxu0 0
        %3117 = vmatmul.mubr.bf16.gmra.mrb[0].mxu0 %v2413
        %v3118 = vpop.f32.mrb[0].mxu0
        %v3119 = vadd.f32 %v2482, %v3118
        %v3120 = vpop.f32.mrb[0].mxu0
        %v3121 = vadd.f32 %v2486, %v3120
        %v3122 = vpop.f32.mrb[0].mxu0
        %v3123 = vadd.f32 %v2482, %v3122
        %v3124 = vpop.f32.mrb[0].mxu0
        %v3125 = vadd.f32 %v2486, %v3124
        %3126 = vmatprep.mubr.bf16.mxu0 0
        %3127 = vmatmul.mubr.bf16.gmra.mrb[0].mxu0 %v2414
        %v3128 = vpop.f32.mrb[0].mxu0
        %v3129 = vadd.f32 %v2482, %v3128
        %v3130 = vpop.f32.mrb[0].mxu0
        %v3131 = vadd.f32 %v2486, %v3130
        %v3132 = vpop.f32.mrb[0].mxu0
        %v3133 = vadd.f32 %v2482, %v3132
        %v3134 = vpop.f32.mrb[0].mxu0
        %v3135 = vadd.f32 %v2486, %v3134
        %3136 = vmatprep.mubr.bf16.mxu0 0
        %3137 = vmatmul.mubr.bf16.gmra.mrb[0].mxu0 %v2415
        %v3138 = vpop.f32.mrb[0].mxu0
        %v3139 = vadd.f32 %v2482, %v3138
        %v3140 = vpop.f32.mrb[0].mxu0
        %v3141 = vadd.f32 %v2486, %v3140
        %v3142 = vpop.f32.mrb[0].mxu0
        %v3143 = vadd.f32 %v2482, %v3142
        %v3144 = vpop.f32.mrb[0].mxu0
        %v3145 = vadd.f32 %v2486, %v3144
        %3146 = vmatprep.mubr.bf16.mxu0 0
        %3147 = vmatmul.mubr.bf16.gmra.mrb[0].mxu0 %v2416
        %v3148 = vpop.f32.mrb[0].mxu0
        %v3149 = vadd.f32 %v2482, %v3148
        %v3150 = vpop.f32.mrb[0].mxu0
        %v3151 = vadd.f32 %v2486, %v3150
        %v3152 = vpop.f32.mrb[0].mxu0
        %v3153 = vadd.f32 %v2482, %v3152
        %v3154 = vpop.f32.mrb[0].mxu0
        %v3155 = vadd.f32 %v2486, %v3154
        %3156 = vmatprep.mubr.bf16.mxu0 0
        %3157 = vmatmul.mubr.bf16.gmra.mrb[0].mxu0 %v2417
        %v3158 = vpop.f32.mrb[0].mxu0
        %v3159 = vadd.f32 %v2482, %v3158
        %v3160 = vpop.f32.mrb[0].mxu0
        %v3161 = vadd.f32 %v2486, %v3160
        %v3162 = vpop.f32.mrb[0].mxu0
        %v3163 = vadd.f32 %v2482, %v3162
        %v3164 = vpop.f32.mrb[0].mxu0
        %v3165 = vadd.f32 %v2486, %v3164
        %3166 = vmatprep.mubr.bf16.mxu0 0
        %3167 = vmatmul.mubr.bf16.gmra.mrb[0].mxu0 %v2418
        %v3168 = vpop.f32.mrb[0].mxu0
        %v3169 = vadd.f32 %v2482, %v3168
        %v3170 = vpop.f32.mrb[0].mxu0
        %v3171 = vadd.f32 %v2486, %v3170
        %v3172 = vpop.f32.mrb[0].mxu0
        %v3173 = vadd.f32 %v2482, %v3172
        %v3174 = vpop.f32.mrb[0].mxu0
        %v3175 = vadd.f32 %v2486, %v3174
        %3176 = vmatprep.mubr.bf16.mxu0 0
        %3177 = vmatmul.mubr.bf16.gmra.mrb[0].mxu0 %v2419
        %v3178 = vpop.f32.mrb[0].mxu0
        %v3179 = vadd.f32 %v2482, %v3178
        %v3180 = vpop.f32.mrb[0].mxu0
        %v3181 = vadd.f32 %v2486, %v3180
        %v3182 = vpop.f32.mrb[0].mxu0
        %v3183 = vadd.f32 %v2482, %v3182
        %v3184 = vpop.f32.mrb[0].mxu0
        %v3185 = vadd.f32 %v2486, %v3184
        %3186 = vmatprep.mubr.bf16.mxu0 0
        %3187 = vmatmul.mubr.bf16.gmra.mrb[0].mxu0 %v2420
        %v3188 = vpop.f32.mrb[0].mxu0
        %v3189 = vadd.f32 %v2482, %v3188
        %v3190 = vpop.f32.mrb[0].mxu0
        %v3191 = vadd.f32 %v2486, %v3190
        %v3192 = vpop.f32.mrb[0].mxu0
        %v3193 = vadd.f32 %v2482, %v3192
        %v3194 = vpop.f32.mrb[0].mxu0
        %v3195 = vadd.f32 %v2486, %v3194
        %3196 = vmatprep.mubr.bf16.mxu0 0
        %3197 = vmatmul.mubr.bf16.gmra.mrb[0].mxu0 %v2421
        %v3198 = vpop.f32.mrb[0].mxu0
        %v3199 = vadd.f32 %v2482, %v3198
        %v3200 = vpop.f32.mrb[0].mxu0
        %v3201 = vadd.f32 %v2486, %v3200
        %v3202 = vpop.f32.mrb[0].mxu0
        %v3203 = vadd.f32 %v2482, %v3202
        %v3204 = vpop.f32.mrb[0].mxu0
        %v3205 = vadd.f32 %v2486, %v3204
        %3206 = vmatprep.mubr.bf16.mxu0 0
        %3207 = vmatmul.mubr.bf16.gmra.mrb[0].mxu0 %v2422
        %v3208 = vpop.f32.mrb[0].mxu0
        %v3209 = vadd.f32 %v2482, %v3208
        %v3210 = vpop.f32.mrb[0].mxu0
        %v3211 = vadd.f32 %v2486, %v3210
        %v3212 = vpop.f32.mrb[0].mxu0
        %v3213 = vadd.f32 %v2482, %v3212
        %v3214 = vpop.f32.mrb[0].mxu0
        %v3215 = vadd.f32 %v2486, %v3214
        %3216 = vmatprep.mubr.bf16.mxu0 0
        %3217 = vmatmul.mubr.bf16.gmra.mrb[0].mxu0 %v2423
        %v3218 = vpop.f32.mrb[0].mxu0
        %v3219 = vadd.f32 %v2482, %v3218
        %v3220 = vpop.f32.mrb[0].mxu0
        %v3221 = vadd.f32 %v2486, %v3220
        %v3222 = vpop.f32.mrb[0].mxu0
        %v3223 = vadd.f32 %v2482, %v3222
        %v3224 = vpop.f32.mrb[0].mxu0
        %v3225 = vadd.f32 %v2486, %v3224
        %3226 = vmatprep.mubr.bf16.mxu0 0
        %3227 = vmatmul.mubr.bf16.gmra.mrb[0].mxu0 %v2424
        %v3228 = vpop.f32.mrb[0].mxu0
        %v3229 = vadd.f32 %v2482, %v3228
        %v3230 = vpop.f32.mrb[0].mxu0
        %v3231 = vadd.f32 %v2486, %v3230
        %v3232 = vpop.f32.mrb[0].mxu0
        %v3233 = vadd.f32 %v2482, %v3232
        %v3234 = vpop.f32.mrb[0].mxu0
        %v3235 = vadd.f32 %v2486, %v3234
        %3236 = vmatprep.mubr.bf16.mxu0 0
        %3237 = vmatmul.mubr.bf16.gmra.mrb[0].mxu0 %v2425
        %v3238 = vpop.f32.mrb[0].mxu0
        %v3239 = vadd.f32 %v2482, %v3238
        %v3240 = vpop.f32.mrb[0].mxu0
        %v3241 = vadd.f32 %v2486, %v3240
        %v3242 = vpop.f32.mrb[0].mxu0
        %v3243 = vadd.f32 %v2482, %v3242
        %v3244 = vpop.f32.mrb[0].mxu0
        %v3245 = vadd.f32 %v2486, %v3244
        %3246 = vmatprep.mubr.bf16.mxu0 0
        %3247 = vmatmul.mubr.bf16.gmra.mrb[0].mxu0 %v2426
        %v3248 = vpop.f32.mrb[0].mxu0
        %v3249 = vadd.f32 %v2482, %v3248
        %v3250 = vpop.f32.mrb[0].mxu0
        %v3251 = vadd.f32 %v2486, %v3250
        %v3252 = vpop.f32.mrb[0].mxu0
        %v3253 = vadd.f32 %v2482, %v3252
        %v3254 = vpop.f32.mrb[0].mxu0
        %v3255 = vadd.f32 %v2486, %v3254
        %3256 = vmatprep.mubr.bf16.mxu0 0
        %3257 = vmatmul.mubr.bf16.gmra.mrb[0].mxu0 %v2427
        %v3258 = vpop.f32.mrb[0].mxu0
        %v3259 = vadd.f32 %v2482, %v3258
        %v3260 = vpop.f32.mrb[0].mxu0
        %v3261 = vadd.f32 %v2486, %v3260
        %v3262 = vpop.f32.mrb[0].mxu0
        %v3263 = vadd.f32 %v2482, %v3262
        %v3264 = vpop.f32.mrb[0].mxu0
        %v3265 = vadd.f32 %v2486, %v3264
        %3266 = vmatprep.mubr.bf16.mxu0 0
        %3267 = vmatmul.mubr.bf16.gmra.mrb[0].mxu0 %v2428
        %v3268 = vpop.f32.mrb[0].mxu0
        %v3269 = vadd.f32 %v2482, %v3268
        %v3270 = vpop.f32.mrb[0].mxu0
        %v3271 = vadd.f32 %v2486, %v3270
        %v3272 = vpop.f32.mrb[0].mxu0
        %v3273 = vadd.f32 %v2482, %v3272
        %v3274 = vpop.f32.mrb[0].mxu0
        %v3275 = vadd.f32 %v2486, %v3274
        %3276 = vmatprep.mubr.bf16.mxu0 0
        %3277 = vmatmul.mubr.bf16.gmra.mrb[0].mxu0 %v2429
        %v3278 = vpop.f32.mrb[0].mxu0
        %v3279 = vadd.f32 %v2482, %v3278
        %v3280 = vpop.f32.mrb[0].mxu0
        %v3281 = vadd.f32 %v2486, %v3280
        %v3282 = vpop.f32.mrb[0].mxu0
        %v3283 = vadd.f32 %v2482, %v3282
        %v3284 = vpop.f32.mrb[0].mxu0
        %v3285 = vadd.f32 %v2486, %v3284
        %3286 = vmatprep.mubr.bf16.mxu0 0
        %3287 = vmatmul.mubr.bf16.gmra.mrb[0].mxu0 %v2430
        %v3288 = vpop.f32.mrb[0].mxu0
        %v3289 = vadd.f32 %v2482, %v3288
        %v3290 = vpop.f32.mrb[0].mxu0
        %v3291 = vadd.f32 %v2486, %v3290
        %v3292 = vpop.f32.mrb[0].mxu0
        %v3293 = vadd.f32 %v2482, %v3292
        %v3294 = vpop.f32.mrb[0].mxu0
        %v3295 = vadd.f32 %v2486, %v3294
        %3296 = vmatprep.mubr.bf16.mxu0 0
        %3297 = vmatmul.mubr.bf16.gmra.mrb[0].mxu0 %v2431
        %v3298 = vpop.f32.mrb[0].mxu0
        %v3299 = vadd.f32 %v2482, %v3298
        %v3300 = vpop.f32.mrb[0].mxu0
        %v3301 = vadd.f32 %v2486, %v3300
        %v3302 = vpop.f32.mrb[0].mxu0
        %v3303 = vadd.f32 %v2482, %v3302
        %v3304 = vpop.f32.mrb[0].mxu0
        %v3305 = vadd.f32 %v2486, %v3304
        %3306 = vmatprep.mubr.bf16.mxu0 0
        %3307 = vmatmul.mubr.bf16.gmra.mrb[0].mxu0 %v2432
        %v3308 = vpop.f32.mrb[0].mxu0
        %v3309 = vadd.f32 %v2482, %v3308
        %v3310 = vpop.f32.mrb[0].mxu0
        %v3311 = vadd.f32 %v2486, %v3310
        %v3312 = vpop.f32.mrb[0].mxu0
        %v3313 = vadd.f32 %v2482, %v3312
        %v3314 = vpop.f32.mrb[0].mxu0
        %v3315 = vadd.f32 %v2486, %v3314
        %3316 = vmatprep.mubr.bf16.mxu0 0
        %3317 = vmatmul.mubr.bf16.gmra.mrb[0].mxu0 %v2433
        %v3318 = vpop.f32.mrb[0].mxu0
        %v3319 = vadd.f32 %v2482, %v3318
        %v3320 = vpop.f32.mrb[0].mxu0
        %v3321 = vadd.f32 %v2486, %v3320
        %v3322 = vpop.f32.mrb[0].mxu0
        %v3323 = vadd.f32 %v2482, %v3322
        %v3324 = vpop.f32.mrb[0].mxu0
        %v3325 = vadd.f32 %v2486, %v3324
        %3326 = vmatprep.mubr.bf16.mxu0 0
        %3327 = vmatmul.mubr.bf16.gmra.mrb[0].mxu0 %v2434
        %v3328 = vpop.f32.mrb[0].mxu0
        %v3329 = vadd.f32 %v2482, %v3328
        %v3330 = vpop.f32.mrb[0].mxu0
        %v3331 = vadd.f32 %v2486, %v3330
        %v3332 = vpop.f32.mrb[0].mxu0
        %v3333 = vadd.f32 %v2482, %v3332
        %v3334 = vpop.f32.mrb[0].mxu0
        %v3335 = vadd.f32 %v2486, %v3334
        %3336 = vmatprep.mubr.bf16.mxu0 0
        %3337 = vmatmul.mubr.bf16.gmra.mrb[0].mxu0 %v2435
        %v3338 = vpop.f32.mrb[0].mxu0
        %v3339 = vadd.f32 %v2482, %v3338
        %v3340 = vpop.f32.mrb[0].mxu0
        %v3341 = vadd.f32 %v2486, %v3340
        %v3342 = vpop.f32.mrb[0].mxu0
        %v3343 = vadd.f32 %v2482, %v3342
        %v3344 = vpop.f32.mrb[0].mxu0
        %v3345 = vadd.f32 %v2486, %v3344
        %3346 = vmatprep.mubr.bf16.mxu0 0
        %3347 = vmatmul.mubr.bf16.gmra.mrb[0].mxu0 %v2436
        %v3348 = vpop.f32.mrb[0].mxu0
        %v3349 = vadd.f32 %v2482, %v3348
        %v3350 = vpop.f32.mrb[0].mxu0
        %v3351 = vadd.f32 %v2486, %v3350
        %v3352 = vpop.f32.mrb[0].mxu0
        %v3353 = vadd.f32 %v2482, %v3352
        %v3354 = vpop.f32.mrb[0].mxu0
        %v3355 = vadd.f32 %v2486, %v3354
        %3356 = vdwg.mxu0
        %v3357 = vmax.f32 %v2686, 0.0
        %v3358 = vmax.f32 %v2688, 0.0
        %v3359 = vmax.f32 %v3039, 0.0
        %v3360 = vmax.f32 %v3041, 0.0
        %v3361 = vmax.f32 %v2690, 0.0
        %v3362 = vmax.f32 %v2692, 0.0
        %v3363 = vmax.f32 %v3043, 0.0
        %v3364 = vmax.f32 %v3045, 0.0
        %v3365 = vmax.f32 %v2696, 0.0
        %v3366 = vmax.f32 %v2698, 0.0
        %v3367 = vmax.f32 %v3049, 0.0
        %v3368 = vmax.f32 %v3051, 0.0
        %v3369 = vmax.f32 %v2700, 0.0
        %v3370 = vmax.f32 %v2702, 0.0
        %v3371 = vmax.f32 %v3053, 0.0
        %v3372 = vmax.f32 %v3055, 0.0
        %v3373 = vmax.f32 %v2706, 0.0
        %v3374 = vmax.f32 %v2708, 0.0
        %v3375 = vmax.f32 %v3059, 0.0
        %v3376 = vmax.f32 %v3061, 0.0
        %v3377 = vmax.f32 %v2710, 0.0
        %v3378 = vmax.f32 %v2712, 0.0
        %v3379 = vmax.f32 %v3063, 0.0
        %v3380 = vmax.f32 %v3065, 0.0
        %v3381 = vmax.f32 %v2716, 0.0
        %v3382 = vmax.f32 %v2718, 0.0
        %v3383 = vmax.f32 %v3069, 0.0
        %v3384 = vmax.f32 %v3071, 0.0
        %v3385 = vmax.f32 %v2720, 0.0
        %v3386 = vmax.f32 %v2722, 0.0
        %v3387 = vmax.f32 %v3073, 0.0
        %v3388 = vmax.f32 %v3075, 0.0
        %v3389 = vmax.f32 %v2726, 0.0
        %v3390 = vmax.f32 %v2728, 0.0
        %v3391 = vmax.f32 %v3079, 0.0
        %v3392 = vmax.f32 %v3081, 0.0
        %v3393 = vmax.f32 %v2730, 0.0
        %v3394 = vmax.f32 %v2732, 0.0
        %v3395 = vmax.f32 %v3083, 0.0
        %v3396 = vmax.f32 %v3085, 0.0
        %v3397 = vmax.f32 %v2736, 0.0
        %v3398 = vmax.f32 %v2738, 0.0
        %v3399 = vmax.f32 %v3089, 0.0
        %v3400 = vmax.f32 %v3091, 0.0
        %v3401 = vmax.f32 %v2740, 0.0
        %v3402 = vmax.f32 %v2742, 0.0
        %v3403 = vmax.f32 %v3093, 0.0
        %v3404 = vmax.f32 %v3095, 0.0
        %v3405 = vmax.f32 %v2746, 0.0
        %v3406 = vmax.f32 %v2748, 0.0
        %v3407 = vmax.f32 %v3099, 0.0
        %v3408 = vmax.f32 %v3101, 0.0
        %v3409 = vmax.f32 %v2750, 0.0
        %v3410 = vmax.f32 %v2752, 0.0
        %v3411 = vmax.f32 %v3103, 0.0
        %v3412 = vmax.f32 %v3105, 0.0
        %v3413 = vmax.f32 %v2756, 0.0
        %v3414 = vmax.f32 %v2758, 0.0
        %v3415 = vmax.f32 %v3109, 0.0
        %v3416 = vmax.f32 %v3111, 0.0
        %v3417 = vmax.f32 %v2760, 0.0
        %v3418 = vmax.f32 %v2762, 0.0
        %v3419 = vmax.f32 %v3113, 0.0
        %v3420 = vmax.f32 %v3115, 0.0
        %v3421 = vmax.f32 %v2766, 0.0
        %v3422 = vmax.f32 %v2768, 0.0
        %v3423 = vmax.f32 %v3119, 0.0
        %v3424 = vmax.f32 %v3121, 0.0
        %v3425 = vmax.f32 %v2770, 0.0
        %v3426 = vmax.f32 %v2772, 0.0
        %v3427 = vmax.f32 %v3123, 0.0
        %v3428 = vmax.f32 %v3125, 0.0
        %v3429 = vmax.f32 %v2776, 0.0
        %v3430 = vmax.f32 %v2778, 0.0
        %v3431 = vmax.f32 %v3129, 0.0
        %v3432 = vmax.f32 %v3131, 0.0
        %v3433 = vmax.f32 %v2780, 0.0
        %v3434 = vmax.f32 %v2782, 0.0
        %v3435 = vmax.f32 %v3133, 0.0
        %v3436 = vmax.f32 %v3135, 0.0
        %v3437 = vmax.f32 %v2786, 0.0
        %v3438 = vmax.f32 %v2788, 0.0
        %v3439 = vmax.f32 %v3139, 0.0
        %v3440 = vmax.f32 %v3141, 0.0
        %v3441 = vmax.f32 %v2790, 0.0
        %v3442 = vmax.f32 %v2792, 0.0
        %v3443 = vmax.f32 %v3143, 0.0
        %v3444 = vmax.f32 %v3145, 0.0
        %v3445 = vmax.f32 %v2796, 0.0
        %v3446 = vmax.f32 %v2798, 0.0
        %v3447 = vmax.f32 %v3149, 0.0
        %v3448 = vmax.f32 %v3151, 0.0
        %v3449 = vmax.f32 %v2800, 0.0
        %v3450 = vmax.f32 %v2802, 0.0
        %v3451 = vmax.f32 %v3153, 0.0
        %v3452 = vmax.f32 %v3155, 0.0
        %v3453 = vmax.f32 %v2806, 0.0
        %v3454 = vmax.f32 %v2808, 0.0
        %v3455 = vmax.f32 %v3159, 0.0
        %v3456 = vmax.f32 %v3161, 0.0
        %v3457 = vmax.f32 %v2810, 0.0
        %v3458 = vmax.f32 %v2812, 0.0
        %v3459 = vmax.f32 %v3163, 0.0
        %v3460 = vmax.f32 %v3165, 0.0
        %v3461 = vmax.f32 %v2816, 0.0
        %v3462 = vmax.f32 %v2818, 0.0
        %v3463 = vmax.f32 %v3169, 0.0
        %v3464 = vmax.f32 %v3171, 0.0
        %v3465 = vmax.f32 %v2820, 0.0
        %v3466 = vmax.f32 %v2822, 0.0
        %v3467 = vmax.f32 %v3173, 0.0
        %v3468 = vmax.f32 %v3175, 0.0
        %v3469 = vmax.f32 %v2826, 0.0
        %v3470 = vmax.f32 %v2828, 0.0
        %v3471 = vmax.f32 %v3179, 0.0
        %v3472 = vmax.f32 %v3181, 0.0
        %v3473 = vmax.f32 %v2830, 0.0
        %v3474 = vmax.f32 %v2832, 0.0
        %v3475 = vmax.f32 %v3183, 0.0
        %v3476 = vmax.f32 %v3185, 0.0
        %v3477 = vmax.f32 %v2836, 0.0
        %v3478 = vmax.f32 %v2838, 0.0
        %v3479 = vmax.f32 %v3189, 0.0
        %v3480 = vmax.f32 %v3191, 0.0
        %v3481 = vmax.f32 %v2840, 0.0
        %v3482 = vmax.f32 %v2842, 0.0
        %v3483 = vmax.f32 %v3193, 0.0
        %v3484 = vmax.f32 %v3195, 0.0
        %v3485 = vmax.f32 %v2846, 0.0
        %v3486 = vmax.f32 %v2848, 0.0
        %v3487 = vmax.f32 %v3199, 0.0
        %v3488 = vmax.f32 %v3201, 0.0
        %v3489 = vmax.f32 %v2850, 0.0
        %v3490 = vmax.f32 %v2852, 0.0
        %v3491 = vmax.f32 %v3203, 0.0
        %v3492 = vmax.f32 %v3205, 0.0
        %v3493 = vmax.f32 %v2856, 0.0
        %v3494 = vmax.f32 %v2858, 0.0
        %v3495 = vmax.f32 %v3209, 0.0
        %v3496 = vmax.f32 %v3211, 0.0
        %v3497 = vmax.f32 %v2860, 0.0
        %v3498 = vmax.f32 %v2862, 0.0
        %v3499 = vmax.f32 %v3213, 0.0
        %v3500 = vmax.f32 %v3215, 0.0
        %v3501 = vmax.f32 %v2866, 0.0
        %v3502 = vmax.f32 %v2868, 0.0
        %v3503 = vmax.f32 %v3219, 0.0
        %v3504 = vmax.f32 %v3221, 0.0
        %v3505 = vmax.f32 %v2870, 0.0
        %v3506 = vmax.f32 %v2872, 0.0
        %v3507 = vmax.f32 %v3223, 0.0
        %v3508 = vmax.f32 %v3225, 0.0
        %v3509 = vmax.f32 %v2876, 0.0
        %v3510 = vmax.f32 %v2878, 0.0
        %v3511 = vmax.f32 %v3229, 0.0
        %v3512 = vmax.f32 %v3231, 0.0
        %v3513 = vmax.f32 %v2880, 0.0
        %v3514 = vmax.f32 %v2882, 0.0
        %v3515 = vmax.f32 %v3233, 0.0
        %v3516 = vmax.f32 %v3235, 0.0
        %v3517 = vmax.f32 %v2886, 0.0
        %v3518 = vmax.f32 %v2888, 0.0
        %v3519 = vmax.f32 %v3239, 0.0
        %v3520 = vmax.f32 %v3241, 0.0
        %v3521 = vmax.f32 %v2890, 0.0
        %v3522 = vmax.f32 %v2892, 0.0
        %v3523 = vmax.f32 %v3243, 0.0
        %v3524 = vmax.f32 %v3245, 0.0
        %v3525 = vmax.f32 %v2896, 0.0
        %v3526 = vmax.f32 %v2898, 0.0
        %v3527 = vmax.f32 %v3249, 0.0
        %v3528 = vmax.f32 %v3251, 0.0
        %v3529 = vmax.f32 %v2900, 0.0
        %v3530 = vmax.f32 %v2902, 0.0
        %v3531 = vmax.f32 %v3253, 0.0
        %v3532 = vmax.f32 %v3255, 0.0
        %v3533 = vmax.f32 %v2906, 0.0
        %v3534 = vmax.f32 %v2908, 0.0
        %v3535 = vmax.f32 %v3259, 0.0
        %v3536 = vmax.f32 %v3261, 0.0
        %v3537 = vmax.f32 %v2910, 0.0
        %v3538 = vmax.f32 %v2912, 0.0
        %v3539 = vmax.f32 %v3263, 0.0
        %v3540 = vmax.f32 %v3265, 0.0
        %v3541 = vmax.f32 %v2916, 0.0
        %v3542 = vmax.f32 %v2918, 0.0
        %v3543 = vmax.f32 %v3269, 0.0
        %v3544 = vmax.f32 %v3271, 0.0
        %v3545 = vmax.f32 %v2920, 0.0
        %v3546 = vmax.f32 %v2922, 0.0
        %v3547 = vmax.f32 %v3273, 0.0
        %v3548 = vmax.f32 %v3275, 0.0
        %v3549 = vmax.f32 %v2926, 0.0
        %v3550 = vmax.f32 %v2928, 0.0
        %v3551 = vmax.f32 %v3279, 0.0
        %v3552 = vmax.f32 %v3281, 0.0
        %v3553 = vmax.f32 %v2930, 0.0
        %v3554 = vmax.f32 %v2932, 0.0
        %v3555 = vmax.f32 %v3283, 0.0
        %v3556 = vmax.f32 %v3285, 0.0
        %v3557 = vmax.f32 %v2936, 0.0
        %v3558 = vmax.f32 %v2938, 0.0
        %v3559 = vmax.f32 %v3289, 0.0
        %v3560 = vmax.f32 %v3291, 0.0
        %v3561 = vmax.f32 %v2940, 0.0
        %v3562 = vmax.f32 %v2942, 0.0
        %v3563 = vmax.f32 %v3293, 0.0
        %v3564 = vmax.f32 %v3295, 0.0
        %v3565 = vmax.f32 %v2946, 0.0
        %v3566 = vmax.f32 %v2948, 0.0
        %v3567 = vmax.f32 %v3299, 0.0
        %v3568 = vmax.f32 %v3301, 0.0
        %v3569 = vmax.f32 %v2950, 0.0
        %v3570 = vmax.f32 %v2952, 0.0
        %v3571 = vmax.f32 %v3303, 0.0
        %v3572 = vmax.f32 %v3305, 0.0
        %v3573 = vmax.f32 %v2956, 0.0
        %v3574 = vmax.f32 %v2958, 0.0
        %v3575 = vmax.f32 %v3309, 0.0
        %v3576 = vmax.f32 %v3311, 0.0
        %v3577 = vmax.f32 %v2960, 0.0
        %v3578 = vmax.f32 %v2962, 0.0
        %v3579 = vmax.f32 %v3313, 0.0
        %v3580 = vmax.f32 %v3315, 0.0
        %v3581 = vmax.f32 %v2966, 0.0
        %v3582 = vmax.f32 %v2968, 0.0
        %v3583 = vmax.f32 %v3319, 0.0
        %v3584 = vmax.f32 %v3321, 0.0
        %v3585 = vmax.f32 %v2970, 0.0
        %v3586 = vmax.f32 %v2972, 0.0
        %v3587 = vmax.f32 %v3323, 0.0
        %v3588 = vmax.f32 %v3325, 0.0
        %v3589 = vmax.f32 %v2976, 0.0
        %v3590 = vmax.f32 %v2978, 0.0
        %v3591 = vmax.f32 %v3329, 0.0
        %v3592 = vmax.f32 %v3331, 0.0
        %v3593 = vmax.f32 %v2980, 0.0
        %v3594 = vmax.f32 %v2982, 0.0
        %v3595 = vmax.f32 %v3333, 0.0
        %v3596 = vmax.f32 %v3335, 0.0
        %v3597 = vmax.f32 %v2986, 0.0
        %v3598 = vmax.f32 %v2988, 0.0
        %v3599 = vmax.f32 %v3339, 0.0
        %v3600 = vmax.f32 %v3341, 0.0
        %v3601 = vmax.f32 %v2990, 0.0
        %v3602 = vmax.f32 %v2992, 0.0
        %v3603 = vmax.f32 %v3343, 0.0
        %v3604 = vmax.f32 %v3345, 0.0
        %v3605 = vmax.f32 %v2996, 0.0
        %v3606 = vmax.f32 %v2998, 0.0
        %v3607 = vmax.f32 %v3349, 0.0
        %v3608 = vmax.f32 %v3351, 0.0
        %v3609 = vmax.f32 %v3000, 0.0
        %v3610 = vmax.f32 %v3002, 0.0
        %v3611 = vmax.f32 %v3353, 0.0
        %v3612 = vmax.f32 %v3355, 0.0
        %v3613 = vld [vmem:[#allocation2] sm:$0xf]
        %v3614 = vmax.f32 %v3357, %v3361
        %v3615 = vmax.f32 %v3614, %v3365
        %v3616 = vmax.f32 %v3615, %v3369
        %v3617 = vmax.f32 %v3616, %v3373
        %v3618 = vmax.f32 %v3617, %v3377
        %v3619 = vmax.f32 %v3618, %v3381
        %v3620 = vmax.f32 %v3619, %v3385
        %v3621 = vmax.f32 %v3620, %v3389
        %v3622 = vmax.f32 %v3621, %v3393
        %v3623 = vmax.f32 %v3622, %v3397
        %v3624 = vmax.f32 %v3623, %v3401
        %v3625 = vmax.f32 %v3624, %v3405
        %v3626 = vmax.f32 %v3625, %v3409
        %v3627 = vmax.f32 %v3626, %v3413
        %v3628 = vmax.f32 %v3627, %v3417
        %v3629 = vmax.f32 %v3628, %v3421
        %v3630 = vmax.f32 %v3629, %v3425
        %v3631 = vmax.f32 %v3630, %v3429
        %v3632 = vmax.f32 %v3631, %v3433
        %v3633 = vmax.f32 %v3632, %v3437
        %v3634 = vmax.f32 %v3633, %v3441
        %v3635 = vmax.f32 %v3634, %v3445
        %v3636 = vmax.f32 %v3635, %v3449
        %v3637 = vmax.f32 %v3636, %v3453
        %v3638 = vmax.f32 %v3637, %v3457
        %v3639 = vmax.f32 %v3638, %v3461
        %v3640 = vmax.f32 %v3639, %v3465
        %v3641 = vmax.f32 %v3640, %v3469
        %v3642 = vmax.f32 %v3641, %v3473
        %v3643 = vmax.f32 %v3642, %v3477
        %v3644 = vmax.f32 %v3643, %v3481
        %v3645 = vmax.f32 %v3644, %v3485
        %v3646 = vmax.f32 %v3645, %v3489
        %v3647 = vmax.f32 %v3646, %v3493
        %v3648 = vmax.f32 %v3647, %v3497
        %v3649 = vmax.f32 %v3648, %v3501
        %v3650 = vmax.f32 %v3649, %v3505
        %v3651 = vmax.f32 %v3650, %v3509
        %v3652 = vmax.f32 %v3651, %v3513
        %v3653 = vmax.f32 %v3652, %v3517
        %v3654 = vmax.f32 %v3653, %v3521
        %v3655 = vmax.f32 %v3654, %v3525
        %v3656 = vmax.f32 %v3655, %v3529
        %v3657 = vmax.f32 %v3656, %v3533
        %v3658 = vmax.f32 %v3657, %v3537
        %v3659 = vmax.f32 %v3658, %v3541
        %v3660 = vmax.f32 %v3659, %v3545
        %v3661 = vmax.f32 %v3660, %v3549
        %v3662 = vmax.f32 %v3661, %v3553
        %v3663 = vmax.f32 %v3662, %v3557
        %v3664 = vmax.f32 %v3663, %v3561
        %v3665 = vmax.f32 %v3664, %v3565
        %v3666 = vmax.f32 %v3665, %v3569
        %v3667 = vmax.f32 %v3666, %v3573
        %v3668 = vmax.f32 %v3667, %v3577
        %v3669 = vmax.f32 %v3668, %v3581
        %v3670 = vmax.f32 %v3669, %v3585
        %v3671 = vmax.f32 %v3670, %v3589
        %v3672 = vmax.f32 %v3671, %v3593
        %v3673 = vmax.f32 %v3672, %v3597
        %v3674 = vmax.f32 %v3673, %v3601
        %v3675 = vmax.f32 %v3674, %v3605
        %v3676 = vmax.f32 %v3675, %v3609
        %v3677 = vrot.slane %v3676, 4
        %v3678 = vmax.f32 %v3676, %v3677
        %v3679 = vrot.slane %v3678, 2
        %v3680 = vmax.f32 %v3678, %v3679
        %v3681 = vrot.slane %v3680, 1
        %v3682 = vmax.f32 %v3680, %v3681
        %v3683 = vmax.f32 %v3358, %v3362
        %v3684 = vmax.f32 %v3683, %v3366
        %v3685 = vmax.f32 %v3684, %v3370
        %v3686 = vmax.f32 %v3685, %v3374
        %v3687 = vmax.f32 %v3686, %v3378
        %v3688 = vmax.f32 %v3687, %v3382
        %v3689 = vmax.f32 %v3688, %v3386
        %v3690 = vmax.f32 %v3689, %v3390
        %v3691 = vmax.f32 %v3690, %v3394
        %v3692 = vmax.f32 %v3691, %v3398
        %v3693 = vmax.f32 %v3692, %v3402
        %v3694 = vmax.f32 %v3693, %v3406
        %v3695 = vmax.f32 %v3694, %v3410
        %v3696 = vmax.f32 %v3695, %v3414
        %v3697 = vmax.f32 %v3696, %v3418
        %v3698 = vmax.f32 %v3697, %v3422
        %v3699 = vmax.f32 %v3698, %v3426
        %v3700 = vmax.f32 %v3699, %v3430
        %v3701 = vmax.f32 %v3700, %v3434
        %v3702 = vmax.f32 %v3701, %v3438
        %v3703 = vmax.f32 %v3702, %v3442
        %v3704 = vmax.f32 %v3703, %v3446
        %v3705 = vmax.f32 %v3704, %v3450
        %v3706 = vmax.f32 %v3705, %v3454
        %v3707 = vmax.f32 %v3706, %v3458
        %v3708 = vmax.f32 %v3707, %v3462
        %v3709 = vmax.f32 %v3708, %v3466
        %v3710 = vmax.f32 %v3709, %v3470
        %v3711 = vmax.f32 %v3710, %v3474
        %v3712 = vmax.f32 %v3711, %v3478
        %v3713 = vmax.f32 %v3712, %v3482
        %v3714 = vmax.f32 %v3713, %v3486
        %v3715 = vmax.f32 %v3714, %v3490
        %v3716 = vmax.f32 %v3715, %v3494
        %v3717 = vmax.f32 %v3716, %v3498
        %v3718 = vmax.f32 %v3717, %v3502
        %v3719 = vmax.f32 %v3718, %v3506
        %v3720 = vmax.f32 %v3719, %v3510
        %v3721 = vmax.f32 %v3720, %v3514
        %v3722 = vmax.f32 %v3721, %v3518
        %v3723 = vmax.f32 %v3722, %v3522
        %v3724 = vmax.f32 %v3723, %v3526
        %v3725 = vmax.f32 %v3724, %v3530
        %v3726 = vmax.f32 %v3725, %v3534
        %v3727 = vmax.f32 %v3726, %v3538
        %v3728 = vmax.f32 %v3727, %v3542
        %v3729 = vmax.f32 %v3728, %v3546
        %v3730 = vmax.f32 %v3729, %v3550
        %v3731 = vmax.f32 %v3730, %v3554
        %v3732 = vmax.f32 %v3731, %v3558
        %v3733 = vmax.f32 %v3732, %v3562
        %v3734 = vmax.f32 %v3733, %v3566
        %v3735 = vmax.f32 %v3734, %v3570
        %v3736 = vmax.f32 %v3735, %v3574
        %v3737 = vmax.f32 %v3736, %v3578
        %v3738 = vmax.f32 %v3737, %v3582
        %v3739 = vmax.f32 %v3738, %v3586
        %v3740 = vmax.f32 %v3739, %v3590
        %v3741 = vmax.f32 %v3740, %v3594
        %v3742 = vmax.f32 %v3741, %v3598
        %v3743 = vmax.f32 %v3742, %v3602
        %v3744 = vmax.f32 %v3743, %v3606
        %v3745 = vmax.f32 %v3744, %v3610
        %v3746 = vrot.slane %v3745, 4
        %v3747 = vmax.f32 %v3745, %v3746
        %v3748 = vrot.slane %v3747, 2
        %v3749 = vmax.f32 %v3747, %v3748
        %v3750 = vrot.slane %v3749, 1
        %v3751 = vmax.f32 %v3749, %v3750
        %v3752 = vmax.f32 %v3359, %v3363
        %v3753 = vmax.f32 %v3752, %v3367
        %v3754 = vmax.f32 %v3753, %v3371
        %v3755 = vmax.f32 %v3754, %v3375
        %v3756 = vmax.f32 %v3755, %v3379
        %v3757 = vmax.f32 %v3756, %v3383
        %v3758 = vmax.f32 %v3757, %v3387
        %v3759 = vmax.f32 %v3758, %v3391
        %v3760 = vmax.f32 %v3759, %v3395
        %v3761 = vmax.f32 %v3760, %v3399
        %v3762 = vmax.f32 %v3761, %v3403
        %v3763 = vmax.f32 %v3762, %v3407
        %v3764 = vmax.f32 %v3763, %v3411
        %v3765 = vmax.f32 %v3764, %v3415
        %v3766 = vmax.f32 %v3765, %v3419
        %v3767 = vmax.f32 %v3766, %v3423
        %v3768 = vmax.f32 %v3767, %v3427
        %v3769 = vmax.f32 %v3768, %v3431
        %v3770 = vmax.f32 %v3769, %v3435
        %v3771 = vmax.f32 %v3770, %v3439
        %v3772 = vmax.f32 %v3771, %v3443
        %v3773 = vmax.f32 %v3772, %v3447
        %v3774 = vmax.f32 %v3773, %v3451
        %v3775 = vmax.f32 %v3774, %v3455
        %v3776 = vmax.f32 %v3775, %v3459
        %v3777 = vmax.f32 %v3776, %v3463
        %v3778 = vmax.f32 %v3777, %v3467
        %v3779 = vmax.f32 %v3778, %v3471
        %v3780 = vmax.f32 %v3779, %v3475
        %v3781 = vmax.f32 %v3780, %v3479
        %v3782 = vmax.f32 %v3781, %v3483
        %v3783 = vmax.f32 %v3782, %v3487
        %v3784 = vmax.f32 %v3783, %v3491
        %v3785 = vmax.f32 %v3784, %v3495
        %v3786 = vmax.f32 %v3785, %v3499
        %v3787 = vmax.f32 %v3786, %v3503
        %v3788 = vmax.f32 %v3787, %v3507
        %v3789 = vmax.f32 %v3788, %v3511
        %v3790 = vmax.f32 %v3789, %v3515
        %v3791 = vmax.f32 %v3790, %v3519
        %v3792 = vmax.f32 %v3791, %v3523
        %v3793 = vmax.f32 %v3792, %v3527
        %v3794 = vmax.f32 %v3793, %v3531
        %v3795 = vmax.f32 %v3794, %v3535
        %v3796 = vmax.f32 %v3795, %v3539
        %v3797 = vmax.f32 %v3796, %v3543
        %v3798 = vmax.f32 %v3797, %v3547
        %v3799 = vmax.f32 %v3798, %v3551
        %v3800 = vmax.f32 %v3799, %v3555
        %v3801 = vmax.f32 %v3800, %v3559
        %v3802 = vmax.f32 %v3801, %v3563
        %v3803 = vmax.f32 %v3802, %v3567
        %v3804 = vmax.f32 %v3803, %v3571
        %v3805 = vmax.f32 %v3804, %v3575
        %v3806 = vmax.f32 %v3805, %v3579
        %v3807 = vmax.f32 %v3806, %v3583
        %v3808 = vmax.f32 %v3807, %v3587
        %v3809 = vmax.f32 %v3808, %v3591
        %v3810 = vmax.f32 %v3809, %v3595
        %v3811 = vmax.f32 %v3810, %v3599
        %v3812 = vmax.f32 %v3811, %v3603
        %v3813 = vmax.f32 %v3812, %v3607
        %v3814 = vmax.f32 %v3813, %v3611
        %v3815 = vrot.slane %v3814, 4
        %v3816 = vmax.f32 %v3814, %v3815
        %v3817 = vrot.slane %v3816, 2
        %v3818 = vmax.f32 %v3816, %v3817
        %v3819 = vrot.slane %v3818, 1
        %v3820 = vmax.f32 %v3818, %v3819
        %v3821 = vmax.f32 %v3360, %v3364
        %v3822 = vmax.f32 %v3821, %v3368
        %v3823 = vmax.f32 %v3822, %v3372
        %v3824 = vmax.f32 %v3823, %v3376
        %v3825 = vmax.f32 %v3824, %v3380
        %v3826 = vmax.f32 %v3825, %v3384
        %v3827 = vmax.f32 %v3826, %v3388
        %v3828 = vmax.f32 %v3827, %v3392
        %v3829 = vmax.f32 %v3828, %v3396
        %v3830 = vmax.f32 %v3829, %v3400
        %v3831 = vmax.f32 %v3830, %v3404
        %v3832 = vmax.f32 %v3831, %v3408
        %v3833 = vmax.f32 %v3832, %v3412
        %v3834 = vmax.f32 %v3833, %v3416
        %v3835 = vmax.f32 %v3834, %v3420
        %v3836 = vmax.f32 %v3835, %v3424
        %v3837 = vmax.f32 %v3836, %v3428
        %v3838 = vmax.f32 %v3837, %v3432
        %v3839 = vmax.f32 %v3838, %v3436
        %v3840 = vmax.f32 %v3839, %v3440
        %v3841 = vmax.f32 %v3840, %v3444
        %v3842 = vmax.f32 %v3841, %v3448
        %v3843 = vmax.f32 %v3842, %v3452
        %v3844 = vmax.f32 %v3843, %v3456
        %v3845 = vmax.f32 %v3844, %v3460
        %v3846 = vmax.f32 %v3845, %v3464
        %v3847 = vmax.f32 %v3846, %v3468
        %v3848 = vmax.f32 %v3847, %v3472
        %v3849 = vmax.f32 %v3848, %v3476
        %v3850 = vmax.f32 %v3849, %v3480
        %v3851 = vmax.f32 %v3850, %v3484
        %v3852 = vmax.f32 %v3851, %v3488
        %v3853 = vmax.f32 %v3852, %v3492
        %v3854 = vmax.f32 %v3853, %v3496
        %v3855 = vmax.f32 %v3854, %v3500
        %v3856 = vmax.f32 %v3855, %v3504
        %v3857 = vmax.f32 %v3856, %v3508
        %v3858 = vmax.f32 %v3857, %v3512
        %v3859 = vmax.f32 %v3858, %v3516
        %v3860 = vmax.f32 %v3859, %v3520
        %v3861 = vmax.f32 %v3860, %v3524
        %v3862 = vmax.f32 %v3861, %v3528
        %v3863 = vmax.f32 %v3862, %v3532
        %v3864 = vmax.f32 %v3863, %v3536
        %v3865 = vmax.f32 %v3864, %v3540
        %v3866 = vmax.f32 %v3865, %v3544
        %v3867 = vmax.f32 %v3866, %v3548
        %v3868 = vmax.f32 %v3867, %v3552
        %v3869 = vmax.f32 %v3868, %v3556
        %v3870 = vmax.f32 %v3869, %v3560
        %v3871 = vmax.f32 %v3870, %v3564
        %v3872 = vmax.f32 %v3871, %v3568
        %v3873 = vmax.f32 %v3872, %v3572
        %v3874 = vmax.f32 %v3873, %v3576
        %v3875 = vmax.f32 %v3874, %v3580
        %v3876 = vmax.f32 %v3875, %v3584
        %v3877 = vmax.f32 %v3876, %v3588
        %v3878 = vmax.f32 %v3877, %v3592
        %v3879 = vmax.f32 %v3878, %v3596
        %v3880 = vmax.f32 %v3879, %v3600
        %v3881 = vmax.f32 %v3880, %v3604
        %v3882 = vmax.f32 %v3881, %v3608
        %v3883 = vmax.f32 %v3882, %v3612
        %v3884 = vrot.slane %v3883, 4
        %v3885 = vmax.f32 %v3883, %v3884
        %v3886 = vrot.slane %v3885, 2
        %v3887 = vmax.f32 %v3885, %v3886
        %v3888 = vrot.slane %v3887, 1
        %v3889 = vmax.f32 %v3887, %v3888
        %v3894 = vcombine.low %v3682, %v3751
        %v3895 = vcombine.low %v3820, %v3889
        %v3897 = vunpack.c.l.s4 1966171168
        %v3898 = vunpack.c.0.s8 %v3897
        %v3899 = vlaneseq
        %v3900 = vshrl.u32 %v3899, 7
        %v3901 = vsub.s32 %v3898, %v3900
        %v3902 = vrot.slane %v3894, %v3901
        %v3904 = vunpack.c.l.s4 1966171168
        %v3905 = vunpack.c.0.s8 %v3904
        %v3906 = vlaneseq
        %v3907 = vshrl.u32 %v3906, 7
        %v3908 = vsub.s32 %v3905, %v3907
        %v3909 = vrot.slane %v3895, %v3908
        %v3910 = vcombine.low %v3902, %v3909
        %v3912 = vunpack.c.l.s4 1966171168
        %v3913 = vunpack.c.0.s8 %v3912
        %v3914 = vlaneseq
        %v3915 = vshrl.u32 %v3914, 7
        %v3916 = vsub.s32 %v3913, %v3915
        %v3917 = vrot.slane %v3910, %v3916
        %v3919 = vmax.f32 %v3613, %v3917
        %v3920 = vlaneseq
        %vm3921 = vcmp.ge.s32.totalorder %v3920, 0
        %vm3922 = vcmp.lt.s32.totalorder %v3920, 512
        %vm3923 = vmand %vm3921, %vm3922
        %3924 = vst.msk [vmem:[#allocation2] sm:$0xf] %vm3923, %v3919
        // Predicated region
        $region89: #{tpu_custom_call.1} parent=71 // pred_check
          %p3925 = pneg %p511
        $region90: #{tpu_custom_call.1} parent=71 // pred_check_branch
          %3927 = sbr.rel (%p3925) target = $region92
        $region91: #{tpu_custom_call.1} parent=71 // pred_region
          %v3928 = vld [vmem:[#allocation2] sm:$0xf]
          %v3929 = vld [vmem:[#allocation6] sm:$0xff]
          %v3930 = vld [vmem:[#allocation6 + $0x8] sm:$0xff]
          %v3931 = vld [vmem:[#allocation6 + $0x10] sm:$0xff]
          %v3932 = vld [vmem:[#allocation6 + $0x18] sm:$0xff]
          %v3933 = vld [vmem:[#allocation6 + $0x20] sm:$0xff]
          %v3934 = vld [vmem:[#allocation6 + $0x28] sm:$0xff]
          %v3935 = vld [vmem:[#allocation6 + $0x30] sm:$0xff]
          %v3936 = vld [vmem:[#allocation6 + $0x38] sm:$0xff]
          %v3937 = vld [vmem:[#allocation6 + $0x40] sm:$0xff]
          %v3938 = vld [vmem:[#allocation6 + $0x48] sm:$0xff]
          %v3939 = vld [vmem:[#allocation6 + $0x50] sm:$0xff]
          %v3940 = vld [vmem:[#allocation6 + $0x58] sm:$0xff]
          %v3941 = vld [vmem:[#allocation6 + $0x60] sm:$0xff]
          %v3942 = vld [vmem:[#allocation6 + $0x68] sm:$0xff]
          %v3943 = vld [vmem:[#allocation6 + $0x70] sm:$0xff]
          %v3944 = vld [vmem:[#allocation6 + $0x78] sm:$0xff]
          %v3945 = vld [vmem:[#allocation6 + $0x80] sm:$0xff]
          %v3946 = vld [vmem:[#allocation6 + $0x88] sm:$0xff]
          %v3947 = vld [vmem:[#allocation6 + $0x90] sm:$0xff]
          %v3948 = vld [vmem:[#allocation6 + $0x98] sm:$0xff]
          %v3949 = vld [vmem:[#allocation6 + $0xa0] sm:$0xff]
          %v3950 = vld [vmem:[#allocation6 + $0xa8] sm:$0xff]
          %v3951 = vld [vmem:[#allocation6 + $0xb0] sm:$0xff]
          %v3952 = vld [vmem:[#allocation6 + $0xb8] sm:$0xff]
          %v3953 = vld [vmem:[#allocation6 + $0xc0] sm:$0xff]
          %v3954 = vld [vmem:[#allocation6 + $0xc8] sm:$0xff]
          %v3955 = vld [vmem:[#allocation6 + $0xd0] sm:$0xff]
          %v3956 = vld [vmem:[#allocation6 + $0xd8] sm:$0xff]
          %v3957 = vld [vmem:[#allocation6 + $0xe0] sm:$0xff]
          %v3958 = vld [vmem:[#allocation6 + $0xe8] sm:$0xff]
          %v3959 = vld [vmem:[#allocation6 + $0xf0] sm:$0xff]
          %v3960 = vld [vmem:[#allocation6 + $0xf8] sm:$0xff]
          %v3961 = vld [vmem:[#allocation6 + $0x100] sm:$0xff]
          %v3962 = vld [vmem:[#allocation6 + $0x108] sm:$0xff]
          %v3963 = vld [vmem:[#allocation6 + $0x110] sm:$0xff]
          %v3964 = vld [vmem:[#allocation6 + $0x118] sm:$0xff]
          %v3965 = vld [vmem:[#allocation6 + $0x120] sm:$0xff]
          %v3966 = vld [vmem:[#allocation6 + $0x128] sm:$0xff]
          %v3967 = vld [vmem:[#allocation6 + $0x130] sm:$0xff]
          %v3968 = vld [vmem:[#allocation6 + $0x138] sm:$0xff]
          %v3969 = vld [vmem:[#allocation6 + $0x140] sm:$0xff]
          %v3970 = vld [vmem:[#allocation6 + $0x148] sm:$0xff]
          %v3971 = vld [vmem:[#allocation6 + $0x150] sm:$0xff]
          %v3972 = vld [vmem:[#allocation6 + $0x158] sm:$0xff]
          %v3973 = vld [vmem:[#allocation6 + $0x160] sm:$0xff]
          %v3974 = vld [vmem:[#allocation6 + $0x168] sm:$0xff]
          %v3975 = vld [vmem:[#allocation6 + $0x170] sm:$0xff]
          %v3976 = vld [vmem:[#allocation6 + $0x178] sm:$0xff]
          %v3977 = vld [vmem:[#allocation6 + $0x180] sm:$0xff]
          %v3978 = vld [vmem:[#allocation6 + $0x188] sm:$0xff]
          %v3979 = vld [vmem:[#allocation6 + $0x190] sm:$0xff]
          %v3980 = vld [vmem:[#allocation6 + $0x198] sm:$0xff]
          %v3981 = vld [vmem:[#allocation6 + $0x1a0] sm:$0xff]
          %v3982 = vld [vmem:[#allocation6 + $0x1a8] sm:$0xff]
          %v3983 = vld [vmem:[#allocation6 + $0x1b0] sm:$0xff]
          %v3984 = vld [vmem:[#allocation6 + $0x1b8] sm:$0xff]
          %v3985 = vld [vmem:[#allocation6 + $0x1c0] sm:$0xff]
          %v3986 = vld [vmem:[#allocation6 + $0x1c8] sm:$0xff]
          %v3987 = vld [vmem:[#allocation6 + $0x1d0] sm:$0xff]
          %v3988 = vld [vmem:[#allocation6 + $0x1d8] sm:$0xff]
          %v3989 = vld [vmem:[#allocation6 + $0x1e0] sm:$0xff]
          %v3990 = vld [vmem:[#allocation6 + $0x1e8] sm:$0xff]
          %v3991 = vld [vmem:[#allocation6 + $0x1f0] sm:$0xff]
          %v3992 = vld [vmem:[#allocation6 + $0x1f8] sm:$0xff]
          %v3993 = vld [vmem:[#allocation6 + $0x200] sm:$0xff]
          %v3994 = vld [vmem:[#allocation6 + $0x208] sm:$0xff]
          %v3995 = vld [vmem:[#allocation6 + $0x210] sm:$0xff]
          %v3996 = vld [vmem:[#allocation6 + $0x218] sm:$0xff]
          %v3997 = vld [vmem:[#allocation6 + $0x220] sm:$0xff]
          %v3998 = vld [vmem:[#allocation6 + $0x228] sm:$0xff]
          %v3999 = vld [vmem:[#allocation6 + $0x230] sm:$0xff]
          %v4000 = vld [vmem:[#allocation6 + $0x238] sm:$0xff]
          %v4001 = vld [vmem:[#allocation6 + $0x240] sm:$0xff]
          %v4002 = vld [vmem:[#allocation6 + $0x248] sm:$0xff]
          %v4003 = vld [vmem:[#allocation6 + $0x250] sm:$0xff]
          %v4004 = vld [vmem:[#allocation6 + $0x258] sm:$0xff]
          %v4005 = vld [vmem:[#allocation6 + $0x260] sm:$0xff]
          %v4006 = vld [vmem:[#allocation6 + $0x268] sm:$0xff]
          %v4007 = vld [vmem:[#allocation6 + $0x270] sm:$0xff]
          %v4008 = vld [vmem:[#allocation6 + $0x278] sm:$0xff]
          %v4009 = vld [vmem:[#allocation6 + $0x280] sm:$0xff]
          %v4010 = vld [vmem:[#allocation6 + $0x288] sm:$0xff]
          %v4011 = vld [vmem:[#allocation6 + $0x290] sm:$0xff]
          %v4012 = vld [vmem:[#allocation6 + $0x298] sm:$0xff]
          %v4013 = vld [vmem:[#allocation6 + $0x2a0] sm:$0xff]
          %v4014 = vld [vmem:[#allocation6 + $0x2a8] sm:$0xff]
          %v4015 = vld [vmem:[#allocation6 + $0x2b0] sm:$0xff]
          %v4016 = vld [vmem:[#allocation6 + $0x2b8] sm:$0xff]
          %v4017 = vld [vmem:[#allocation6 + $0x2c0] sm:$0xff]
          %v4018 = vld [vmem:[#allocation6 + $0x2c8] sm:$0xff]
          %v4019 = vld [vmem:[#allocation6 + $0x2d0] sm:$0xff]
          %v4020 = vld [vmem:[#allocation6 + $0x2d8] sm:$0xff]
          %v4021 = vld [vmem:[#allocation6 + $0x2e0] sm:$0xff]
          %v4022 = vld [vmem:[#allocation6 + $0x2e8] sm:$0xff]
          %v4023 = vld [vmem:[#allocation6 + $0x2f0] sm:$0xff]
          %v4024 = vld [vmem:[#allocation6 + $0x2f8] sm:$0xff]
          %v4025 = vld [vmem:[#allocation6 + $0x300] sm:$0xff]
          %v4026 = vld [vmem:[#allocation6 + $0x308] sm:$0xff]
          %v4027 = vld [vmem:[#allocation6 + $0x310] sm:$0xff]
          %v4028 = vld [vmem:[#allocation6 + $0x318] sm:$0xff]
          %v4029 = vld [vmem:[#allocation6 + $0x320] sm:$0xff]
          %v4030 = vld [vmem:[#allocation6 + $0x328] sm:$0xff]
          %v4031 = vld [vmem:[#allocation6 + $0x330] sm:$0xff]
          %v4032 = vld [vmem:[#allocation6 + $0x338] sm:$0xff]
          %v4033 = vld [vmem:[#allocation6 + $0x340] sm:$0xff]
          %v4034 = vld [vmem:[#allocation6 + $0x348] sm:$0xff]
          %v4035 = vld [vmem:[#allocation6 + $0x350] sm:$0xff]
          %v4036 = vld [vmem:[#allocation6 + $0x358] sm:$0xff]
          %v4037 = vld [vmem:[#allocation6 + $0x360] sm:$0xff]
          %v4038 = vld [vmem:[#allocation6 + $0x368] sm:$0xff]
          %v4039 = vld [vmem:[#allocation6 + $0x370] sm:$0xff]
          %v4040 = vld [vmem:[#allocation6 + $0x378] sm:$0xff]
          %v4041 = vld [vmem:[#allocation6 + $0x380] sm:$0xff]
          %v4042 = vld [vmem:[#allocation6 + $0x388] sm:$0xff]
          %v4043 = vld [vmem:[#allocation6 + $0x390] sm:$0xff]
          %v4044 = vld [vmem:[#allocation6 + $0x398] sm:$0xff]
          %v4045 = vld [vmem:[#allocation6 + $0x3a0] sm:$0xff]
          %v4046 = vld [vmem:[#allocation6 + $0x3a8] sm:$0xff]
          %v4047 = vld [vmem:[#allocation6 + $0x3b0] sm:$0xff]
          %v4048 = vld [vmem:[#allocation6 + $0x3b8] sm:$0xff]
          %v4049 = vld [vmem:[#allocation6 + $0x3c0] sm:$0xff]
          %v4050 = vld [vmem:[#allocation6 + $0x3c8] sm:$0xff]
          %v4051 = vld [vmem:[#allocation6 + $0x3d0] sm:$0xff]
          %v4052 = vld [vmem:[#allocation6 + $0x3d8] sm:$0xff]
          %v4053 = vld [vmem:[#allocation6 + $0x3e0] sm:$0xff]
          %v4054 = vld [vmem:[#allocation6 + $0x3e8] sm:$0xff]
          %v4055 = vld [vmem:[#allocation6 + $0x3f0] sm:$0xff]
          %v4056 = vld [vmem:[#allocation6 + $0x3f8] sm:$0xff]
          %v4057 = vld [vmem:[#allocation6 + $0x400] sm:$0xff]
          %v4058 = vld [vmem:[#allocation6 + $0x408] sm:$0xff]
          %v4059 = vld [vmem:[#allocation6 + $0x410] sm:$0xff]
          %v4060 = vld [vmem:[#allocation6 + $0x418] sm:$0xff]
          %v4061 = vld [vmem:[#allocation6 + $0x420] sm:$0xff]
          %v4062 = vld [vmem:[#allocation6 + $0x428] sm:$0xff]
          %v4063 = vld [vmem:[#allocation6 + $0x430] sm:$0xff]
          %v4064 = vld [vmem:[#allocation6 + $0x438] sm:$0xff]
          %v4065 = vld [vmem:[#allocation6 + $0x440] sm:$0xff]
          %v4066 = vld [vmem:[#allocation6 + $0x448] sm:$0xff]
          %v4067 = vld [vmem:[#allocation6 + $0x450] sm:$0xff]
          %v4068 = vld [vmem:[#allocation6 + $0x458] sm:$0xff]
          %v4069 = vld [vmem:[#allocation6 + $0x460] sm:$0xff]
          %v4070 = vld [vmem:[#allocation6 + $0x468] sm:$0xff]
          %v4071 = vld [vmem:[#allocation6 + $0x470] sm:$0xff]
          %v4072 = vld [vmem:[#allocation6 + $0x478] sm:$0xff]
          %v4073 = vld [vmem:[#allocation6 + $0x480] sm:$0xff]
          %v4074 = vld [vmem:[#allocation6 + $0x488] sm:$0xff]
          %v4075 = vld [vmem:[#allocation6 + $0x490] sm:$0xff]
          %v4076 = vld [vmem:[#allocation6 + $0x498] sm:$0xff]
          %v4077 = vld [vmem:[#allocation6 + $0x4a0] sm:$0xff]
          %v4078 = vld [vmem:[#allocation6 + $0x4a8] sm:$0xff]
          %v4079 = vld [vmem:[#allocation6 + $0x4b0] sm:$0xff]
          %v4080 = vld [vmem:[#allocation6 + $0x4b8] sm:$0xff]
          %v4081 = vld [vmem:[#allocation6 + $0x4c0] sm:$0xff]
          %v4082 = vld [vmem:[#allocation6 + $0x4c8] sm:$0xff]
          %v4083 = vld [vmem:[#allocation6 + $0x4d0] sm:$0xff]
          %v4084 = vld [vmem:[#allocation6 + $0x4d8] sm:$0xff]
          %v4085 = vld [vmem:[#allocation6 + $0x4e0] sm:$0xff]
          %v4086 = vld [vmem:[#allocation6 + $0x4e8] sm:$0xff]
          %v4087 = vld [vmem:[#allocation6 + $0x4f0] sm:$0xff]
          %v4088 = vld [vmem:[#allocation6 + $0x4f8] sm:$0xff]
          %v4089 = vld [vmem:[#allocation6 + $0x500] sm:$0xff]
          %v4090 = vld [vmem:[#allocation6 + $0x508] sm:$0xff]
          %v4091 = vld [vmem:[#allocation6 + $0x510] sm:$0xff]
          %v4092 = vld [vmem:[#allocation6 + $0x518] sm:$0xff]
          %v4093 = vld [vmem:[#allocation6 + $0x520] sm:$0xff]
          %v4094 = vld [vmem:[#allocation6 + $0x528] sm:$0xff]
          %v4095 = vld [vmem:[#allocation6 + $0x530] sm:$0xff]
          %v4096 = vld [vmem:[#allocation6 + $0x538] sm:$0xff]
          %v4097 = vld [vmem:[#allocation6 + $0x540] sm:$0xff]
          %v4098 = vld [vmem:[#allocation6 + $0x548] sm:$0xff]
          %v4099 = vld [vmem:[#allocation6 + $0x550] sm:$0xff]
          %v4100 = vld [vmem:[#allocation6 + $0x558] sm:$0xff]
          %v4101 = vld [vmem:[#allocation6 + $0x560] sm:$0xff]
          %v4102 = vld [vmem:[#allocation6 + $0x568] sm:$0xff]
          %v4103 = vld [vmem:[#allocation6 + $0x570] sm:$0xff]
          %v4104 = vld [vmem:[#allocation6 + $0x578] sm:$0xff]
          %v4105 = vld [vmem:[#allocation6 + $0x580] sm:$0xff]
          %v4106 = vld [vmem:[#allocation6 + $0x588] sm:$0xff]
          %v4107 = vld [vmem:[#allocation6 + $0x590] sm:$0xff]
          %v4108 = vld [vmem:[#allocation6 + $0x598] sm:$0xff]
          %v4109 = vld [vmem:[#allocation6 + $0x5a0] sm:$0xff]
          %v4110 = vld [vmem:[#allocation6 + $0x5a8] sm:$0xff]
          %v4111 = vld [vmem:[#allocation6 + $0x5b0] sm:$0xff]
          %v4112 = vld [vmem:[#allocation6 + $0x5b8] sm:$0xff]
          %v4113 = vld [vmem:[#allocation6 + $0x5c0] sm:$0xff]
          %v4114 = vld [vmem:[#allocation6 + $0x5c8] sm:$0xff]
          %v4115 = vld [vmem:[#allocation6 + $0x5d0] sm:$0xff]
          %v4116 = vld [vmem:[#allocation6 + $0x5d8] sm:$0xff]
          %v4117 = vld [vmem:[#allocation6 + $0x5e0] sm:$0xff]
          %v4118 = vld [vmem:[#allocation6 + $0x5e8] sm:$0xff]
          %v4119 = vld [vmem:[#allocation6 + $0x5f0] sm:$0xff]
          %v4120 = vld [vmem:[#allocation6 + $0x5f8] sm:$0xff]
          %v4121 = vld [vmem:[#allocation6 + $0x600] sm:$0xff]
          %v4122 = vld [vmem:[#allocation6 + $0x608] sm:$0xff]
          %v4123 = vld [vmem:[#allocation6 + $0x610] sm:$0xff]
          %v4124 = vld [vmem:[#allocation6 + $0x618] sm:$0xff]
          %v4125 = vld [vmem:[#allocation6 + $0x620] sm:$0xff]
          %v4126 = vld [vmem:[#allocation6 + $0x628] sm:$0xff]
          %v4127 = vld [vmem:[#allocation6 + $0x630] sm:$0xff]
          %v4128 = vld [vmem:[#allocation6 + $0x638] sm:$0xff]
          %v4129 = vld [vmem:[#allocation6 + $0x640] sm:$0xff]
          %v4130 = vld [vmem:[#allocation6 + $0x648] sm:$0xff]
          %v4131 = vld [vmem:[#allocation6 + $0x650] sm:$0xff]
          %v4132 = vld [vmem:[#allocation6 + $0x658] sm:$0xff]
          %v4133 = vld [vmem:[#allocation6 + $0x660] sm:$0xff]
          %v4134 = vld [vmem:[#allocation6 + $0x668] sm:$0xff]
          %v4135 = vld [vmem:[#allocation6 + $0x670] sm:$0xff]
          %v4136 = vld [vmem:[#allocation6 + $0x678] sm:$0xff]
          %v4137 = vld [vmem:[#allocation6 + $0x680] sm:$0xff]
          %v4138 = vld [vmem:[#allocation6 + $0x688] sm:$0xff]
          %v4139 = vld [vmem:[#allocation6 + $0x690] sm:$0xff]
          %v4140 = vld [vmem:[#allocation6 + $0x698] sm:$0xff]
          %v4141 = vld [vmem:[#allocation6 + $0x6a0] sm:$0xff]
          %v4142 = vld [vmem:[#allocation6 + $0x6a8] sm:$0xff]
          %v4143 = vld [vmem:[#allocation6 + $0x6b0] sm:$0xff]
          %v4144 = vld [vmem:[#allocation6 + $0x6b8] sm:$0xff]
          %v4145 = vld [vmem:[#allocation6 + $0x6c0] sm:$0xff]
          %v4146 = vld [vmem:[#allocation6 + $0x6c8] sm:$0xff]
          %v4147 = vld [vmem:[#allocation6 + $0x6d0] sm:$0xff]
          %v4148 = vld [vmem:[#allocation6 + $0x6d8] sm:$0xff]
          %v4149 = vld [vmem:[#allocation6 + $0x6e0] sm:$0xff]
          %v4150 = vld [vmem:[#allocation6 + $0x6e8] sm:$0xff]
          %v4151 = vld [vmem:[#allocation6 + $0x6f0] sm:$0xff]
          %v4152 = vld [vmem:[#allocation6 + $0x6f8] sm:$0xff]
          %v4153 = vld [vmem:[#allocation6 + $0x700] sm:$0xff]
          %v4154 = vld [vmem:[#allocation6 + $0x708] sm:$0xff]
          %v4155 = vld [vmem:[#allocation6 + $0x710] sm:$0xff]
          %v4156 = vld [vmem:[#allocation6 + $0x718] sm:$0xff]
          %v4157 = vld [vmem:[#allocation6 + $0x720] sm:$0xff]
          %v4158 = vld [vmem:[#allocation6 + $0x728] sm:$0xff]
          %v4159 = vld [vmem:[#allocation6 + $0x730] sm:$0xff]
          %v4160 = vld [vmem:[#allocation6 + $0x738] sm:$0xff]
          %v4161 = vld [vmem:[#allocation6 + $0x740] sm:$0xff]
          %v4162 = vld [vmem:[#allocation6 + $0x748] sm:$0xff]
          %v4163 = vld [vmem:[#allocation6 + $0x750] sm:$0xff]
          %v4164 = vld [vmem:[#allocation6 + $0x758] sm:$0xff]
          %v4165 = vld [vmem:[#allocation6 + $0x760] sm:$0xff]
          %v4166 = vld [vmem:[#allocation6 + $0x768] sm:$0xff]
          %v4167 = vld [vmem:[#allocation6 + $0x770] sm:$0xff]
          %v4168 = vld [vmem:[#allocation6 + $0x778] sm:$0xff]
          %v4169 = vld [vmem:[#allocation6 + $0x780] sm:$0xff]
          %v4170 = vld [vmem:[#allocation6 + $0x788] sm:$0xff]
          %v4171 = vld [vmem:[#allocation6 + $0x790] sm:$0xff]
          %v4172 = vld [vmem:[#allocation6 + $0x798] sm:$0xff]
          %v4173 = vld [vmem:[#allocation6 + $0x7a0] sm:$0xff]
          %v4174 = vld [vmem:[#allocation6 + $0x7a8] sm:$0xff]
          %v4175 = vld [vmem:[#allocation6 + $0x7b0] sm:$0xff]
          %v4176 = vld [vmem:[#allocation6 + $0x7b8] sm:$0xff]
          %v4177 = vld [vmem:[#allocation6 + $0x7c0] sm:$0xff]
          %v4178 = vld [vmem:[#allocation6 + $0x7c8] sm:$0xff]
          %v4179 = vld [vmem:[#allocation6 + $0x7d0] sm:$0xff]
          %v4180 = vld [vmem:[#allocation6 + $0x7d8] sm:$0xff]
          %v4181 = vld [vmem:[#allocation6 + $0x7e0] sm:$0xff]
          %v4182 = vld [vmem:[#allocation6 + $0x7e8] sm:$0xff]
          %v4183 = vld [vmem:[#allocation6 + $0x7f0] sm:$0xff]
          %v4184 = vld [vmem:[#allocation6 + $0x7f8] sm:$0xff]
          %v4185 = vld [vmem:[%s8] sm:$0xf]
          %v4187 = vlaneseq
          %v4188 = vshrl.u32 %v4187, 7
          %v4189 = vsub.s32 0, %v4188
          %v4190 = vrot.slane %v3928, %v4189
          %v4191 = vlaneseq
          %v4192 = vshrl.u32 %v4191, 7
          %v4193 = vsub.s32 1, %v4192
          %v4194 = vrot.slane %v3928, %v4193
          %v4195 = vlaneseq
          %v4196 = vshrl.u32 %v4195, 7
          %v4197 = vsub.s32 2, %v4196
          %v4198 = vrot.slane %v3928, %v4197
          %v4199 = vlaneseq
          %v4200 = vshrl.u32 %v4199, 7
          %v4201 = vsub.s32 3, %v4200
          %v4202 = vrot.slane %v3928, %v4201
          %v4208 = vlaneseq
          %v4209 = vshrl.u32 %v4208, 7
          %v4210 = vsub.s32 0, %v4209
          %v4211 = vrot.slane %v4185, %v4210
          %v4212 = vlaneseq
          %v4213 = vshrl.u32 %v4212, 7
          %v4214 = vsub.s32 1, %v4213
          %v4215 = vrot.slane %v4185, %v4214
          %v4216 = vlaneseq
          %v4217 = vshrl.u32 %v4216, 7
          %v4218 = vsub.s32 2, %v4217
          %v4219 = vrot.slane %v4185, %v4218
          %v4220 = vlaneseq
          %v4221 = vshrl.u32 %v4220, 7
          %v4222 = vsub.s32 3, %v4221
          %v4223 = vrot.slane %v4185, %v4222
          %4228 = vmatprep.subr.mxu0 %v3930
          %4229 = vmatpush1.msra.mxu0 %v3929
          %4230 = vmatprep.subr.mxu0 %v3934
          %4231 = vmatpush1.msra.mxu0 %v3933
          %4232 = vmatprep.subr.mxu0 %v3938
          %4233 = vmatpush1.msra.mxu0 %v3937
          %4234 = vmatprep.subr.mxu0 %v3942
          %4235 = vmatpush1.msra.mxu0 %v3941
          %4236 = vmatprep.subr.mxu0 %v3946
          %4237 = vmatpush1.msra.mxu0 %v3945
          %4238 = vmatprep.subr.mxu0 %v3950
          %4239 = vmatpush1.msra.mxu0 %v3949
          %4240 = vmatprep.subr.mxu0 %v3954
          %4241 = vmatpush1.msra.mxu0 %v3953
          %4242 = vmatprep.subr.mxu0 %v3958
          %4243 = vmatpush1.msra.mxu0 %v3957
          %4244 = vmatprep.subr.mxu0 %v3962
          %4245 = vmatpush1.msra.mxu0 %v3961
          %4246 = vmatprep.subr.mxu0 %v3966
          %4247 = vmatpush1.msra.mxu0 %v3965
          %4248 = vmatprep.subr.mxu0 %v3970
          %4249 = vmatpush1.msra.mxu0 %v3969
          %4250 = vmatprep.subr.mxu0 %v3974
          %4251 = vmatpush1.msra.mxu0 %v3973
          %4252 = vmatprep.subr.mxu0 %v3978
          %4253 = vmatpush1.msra.mxu0 %v3977
          %4254 = vmatprep.subr.mxu0 %v3982
          %4255 = vmatpush1.msra.mxu0 %v3981
          %4256 = vmatprep.subr.mxu0 %v3986
          %4257 = vmatpush1.msra.mxu0 %v3985
          %4258 = vmatprep.subr.mxu0 %v3990
          %4259 = vmatpush1.msra.mxu0 %v3989
          %4260 = vmatprep.subr.mxu0 %v3994
          %4261 = vmatpush1.msra.mxu0 %v3993
          %4262 = vmatprep.subr.mxu0 %v3998
          %4263 = vmatpush1.msra.mxu0 %v3997
          %4264 = vmatprep.subr.mxu0 %v4002
          %4265 = vmatpush1.msra.mxu0 %v4001
          %4266 = vmatprep.subr.mxu0 %v4006
          %4267 = vmatpush1.msra.mxu0 %v4005
          %4268 = vmatprep.subr.mxu0 %v4010
          %4269 = vmatpush1.msra.mxu0 %v4009
          %4270 = vmatprep.subr.mxu0 %v4014
          %4271 = vmatpush1.msra.mxu0 %v4013
          %4272 = vmatprep.subr.mxu0 %v4018
          %4273 = vmatpush1.msra.mxu0 %v4017
          %4274 = vmatprep.subr.mxu0 %v4022
          %4275 = vmatpush1.msra.mxu0 %v4021
          %4276 = vmatprep.subr.mxu0 %v4026
          %4277 = vmatpush1.msra.mxu0 %v4025
          %4278 = vmatprep.subr.mxu0 %v4030
          %4279 = vmatpush1.msra.mxu0 %v4029
          %4280 = vmatprep.subr.mxu0 %v4034
          %4281 = vmatpush1.msra.mxu0 %v4033
          %4282 = vmatprep.subr.mxu0 %v4038
          %4283 = vmatpush1.msra.mxu0 %v4037
          %4284 = vmatprep.subr.mxu0 %v4042
          %4285 = vmatpush1.msra.mxu0 %v4041
          %4286 = vmatprep.subr.mxu0 %v4046
          %4287 = vmatpush1.msra.mxu0 %v4045
          %4288 = vmatprep.subr.mxu0 %v4050
          %4289 = vmatpush1.msra.mxu0 %v4049
          %4290 = vmatprep.subr.mxu0 %v4054
          %4291 = vmatpush1.msra.mxu0 %v4053
          %4292 = vmatprep.mubr.f32.mxu0 %v4194
          %4293 = vmatmul.mubr.f32.gmra.mrb[0].mxu0 %v4190
          %v4294 = vpop.f32.mrb[0].mxu0
          %v4295 = vadd.f32 %v4211, %v4294
          %v4296 = vpop.f32.mrb[0].mxu0
          %v4297 = vadd.f32 %v4215, %v4296
          %4298 = vdwg.mxu0
          %4299 = vmatprep.subr.mxu0 %v4058
          %4300 = vmatpush1.msra.mxu0 %v4057
          %4301 = vmatprep.subr.mxu0 %v4062
          %4302 = vmatpush1.msra.mxu0 %v4061
          %4303 = vmatprep.subr.mxu0 %v4066
          %4304 = vmatpush1.msra.mxu0 %v4065
          %4305 = vmatprep.subr.mxu0 %v4070
          %4306 = vmatpush1.msra.mxu0 %v4069
          %4307 = vmatprep.subr.mxu0 %v4074
          %4308 = vmatpush1.msra.mxu0 %v4073
          %4309 = vmatprep.subr.mxu0 %v4078
          %4310 = vmatpush1.msra.mxu0 %v4077
          %4311 = vmatprep.subr.mxu0 %v4082
          %4312 = vmatpush1.msra.mxu0 %v4081
          %4313 = vmatprep.subr.mxu0 %v4086
          %4314 = vmatpush1.msra.mxu0 %v4085
          %4315 = vmatprep.subr.mxu0 %v4090
          %4316 = vmatpush1.msra.mxu0 %v4089
          %4317 = vmatprep.subr.mxu0 %v4094
          %4318 = vmatpush1.msra.mxu0 %v4093
          %4319 = vmatprep.subr.mxu0 %v4098
          %4320 = vmatpush1.msra.mxu0 %v4097
          %4321 = vmatprep.subr.mxu0 %v4102
          %4322 = vmatpush1.msra.mxu0 %v4101
          %4323 = vmatprep.subr.mxu0 %v4106
          %4324 = vmatpush1.msra.mxu0 %v4105
          %4325 = vmatprep.subr.mxu0 %v4110
          %4326 = vmatpush1.msra.mxu0 %v4109
          %4327 = vmatprep.subr.mxu0 %v4114
          %4328 = vmatpush1.msra.mxu0 %v4113
          %4329 = vmatprep.subr.mxu0 %v4118
          %4330 = vmatpush1.msra.mxu0 %v4117
          %4331 = vmatprep.subr.mxu0 %v4122
          %4332 = vmatpush1.msra.mxu0 %v4121
          %4333 = vmatprep.subr.mxu0 %v4126
          %4334 = vmatpush1.msra.mxu0 %v4125
          %4335 = vmatprep.subr.mxu0 %v4130
          %4336 = vmatpush1.msra.mxu0 %v4129
          %4337 = vmatprep.subr.mxu0 %v4134
          %4338 = vmatpush1.msra.mxu0 %v4133
          %4339 = vmatprep.subr.mxu0 %v4138
          %4340 = vmatpush1.msra.mxu0 %v4137
          %4341 = vmatprep.subr.mxu0 %v4142
          %4342 = vmatpush1.msra.mxu0 %v4141
          %4343 = vmatprep.subr.mxu0 %v4146
          %4344 = vmatpush1.msra.mxu0 %v4145
          %4345 = vmatprep.subr.mxu0 %v4150
          %4346 = vmatpush1.msra.mxu0 %v4149
          %4347 = vmatprep.subr.mxu0 %v4154
          %4348 = vmatpush1.msra.mxu0 %v4153
          %4349 = vmatprep.subr.mxu0 %v4158
          %4350 = vmatpush1.msra.mxu0 %v4157
          %4351 = vmatprep.subr.mxu0 %v4162
          %4352 = vmatpush1.msra.mxu0 %v4161
          %4353 = vmatprep.subr.mxu0 %v4166
          %4354 = vmatpush1.msra.mxu0 %v4165
          %4355 = vmatprep.subr.mxu0 %v4170
          %4356 = vmatpush1.msra.mxu0 %v4169
          %4357 = vmatprep.subr.mxu0 %v4174
          %4358 = vmatpush1.msra.mxu0 %v4173
          %4359 = vmatprep.subr.mxu0 %v4178
          %4360 = vmatpush1.msra.mxu0 %v4177
          %4361 = vmatprep.subr.mxu0 %v4182
          %4362 = vmatpush1.msra.mxu0 %v4181
          %4363 = vmatprep.mubr.f32.mxu0 %v4202
          %4364 = vmatmul.mubr.f32.gmra.mrb[0].mxu0 %v4198
          %v4365 = vpop.f32.mrb[0].mxu0
          %v4366 = vadd.f32 %v4295, %v4365
          %v4367 = vpop.f32.mrb[0].mxu0
          %v4368 = vadd.f32 %v4297, %v4367
          %4369 = vdwg.mxu0
          %4370 = vmatprep.subr.mxu0 %v3932
          %4371 = vmatpush1.msra.mxu0 %v3931
          %4372 = vmatprep.subr.mxu0 %v3936
          %4373 = vmatpush1.msra.mxu0 %v3935
          %4374 = vmatprep.subr.mxu0 %v3940
          %4375 = vmatpush1.msra.mxu0 %v3939
          %4376 = vmatprep.subr.mxu0 %v3944
          %4377 = vmatpush1.msra.mxu0 %v3943
          %4378 = vmatprep.subr.mxu0 %v3948
          %4379 = vmatpush1.msra.mxu0 %v3947
          %4380 = vmatprep.subr.mxu0 %v3952
          %4381 = vmatpush1.msra.mxu0 %v3951
          %4382 = vmatprep.subr.mxu0 %v3956
          %4383 = vmatpush1.msra.mxu0 %v3955
          %4384 = vmatprep.subr.mxu0 %v3960
          %4385 = vmatpush1.msra.mxu0 %v3959
          %4386 = vmatprep.subr.mxu0 %v3964
          %4387 = vmatpush1.msra.mxu0 %v3963
          %4388 = vmatprep.subr.mxu0 %v3968
          %4389 = vmatpush1.msra.mxu0 %v3967
          %4390 = vmatprep.subr.mxu0 %v3972
          %4391 = vmatpush1.msra.mxu0 %v3971
          %4392 = vmatprep.subr.mxu0 %v3976
          %4393 = vmatpush1.msra.mxu0 %v3975
          %4394 = vmatprep.subr.mxu0 %v3980
          %4395 = vmatpush1.msra.mxu0 %v3979
          %4396 = vmatprep.subr.mxu0 %v3984
          %4397 = vmatpush1.msra.mxu0 %v3983
          %4398 = vmatprep.subr.mxu0 %v3988
          %4399 = vmatpush1.msra.mxu0 %v3987
          %4400 = vmatprep.subr.mxu0 %v3992
          %4401 = vmatpush1.msra.mxu0 %v3991
          %4402 = vmatprep.subr.mxu0 %v3996
          %4403 = vmatpush1.msra.mxu0 %v3995
          %4404 = vmatprep.subr.mxu0 %v4000
          %4405 = vmatpush1.msra.mxu0 %v3999
          %4406 = vmatprep.subr.mxu0 %v4004
          %4407 = vmatpush1.msra.mxu0 %v4003
          %4408 = vmatprep.subr.mxu0 %v4008
          %4409 = vmatpush1.msra.mxu0 %v4007
          %4410 = vmatprep.subr.mxu0 %v4012
          %4411 = vmatpush1.msra.mxu0 %v4011
          %4412 = vmatprep.subr.mxu0 %v4016
          %4413 = vmatpush1.msra.mxu0 %v4015
          %4414 = vmatprep.subr.mxu0 %v4020
          %4415 = vmatpush1.msra.mxu0 %v4019
          %4416 = vmatprep.subr.mxu0 %v4024
          %4417 = vmatpush1.msra.mxu0 %v4023
          %4418 = vmatprep.subr.mxu0 %v4028
          %4419 = vmatpush1.msra.mxu0 %v4027
          %4420 = vmatprep.subr.mxu0 %v4032
          %4421 = vmatpush1.msra.mxu0 %v4031
          %4422 = vmatprep.subr.mxu0 %v4036
          %4423 = vmatpush1.msra.mxu0 %v4035
          %4424 = vmatprep.subr.mxu0 %v4040
          %4425 = vmatpush1.msra.mxu0 %v4039
          %4426 = vmatprep.subr.mxu0 %v4044
          %4427 = vmatpush1.msra.mxu0 %v4043
          %4428 = vmatprep.subr.mxu0 %v4048
          %4429 = vmatpush1.msra.mxu0 %v4047
          %4430 = vmatprep.subr.mxu0 %v4052
          %4431 = vmatpush1.msra.mxu0 %v4051
          %4432 = vmatprep.subr.mxu0 %v4056
          %4433 = vmatpush1.msra.mxu0 %v4055
          %4434 = vmatprep.mubr.f32.mxu0 %v4194
          %4435 = vmatmul.mubr.f32.gmra.mrb[0].mxu0 %v4190
          %v4436 = vpop.f32.mrb[0].mxu0
          %v4437 = vadd.f32 %v4219, %v4436
          %v4438 = vpop.f32.mrb[0].mxu0
          %v4439 = vadd.f32 %v4223, %v4438
          %4440 = vdwg.mxu0
          %4441 = vmatprep.subr.mxu0 %v4060
          %4442 = vmatpush1.msra.mxu0 %v4059
          %4443 = vmatprep.subr.mxu0 %v4064
          %4444 = vmatpush1.msra.mxu0 %v4063
          %4445 = vmatprep.subr.mxu0 %v4068
          %4446 = vmatpush1.msra.mxu0 %v4067
          %4447 = vmatprep.subr.mxu0 %v4072
          %4448 = vmatpush1.msra.mxu0 %v4071
          %4449 = vmatprep.subr.mxu0 %v4076
          %4450 = vmatpush1.msra.mxu0 %v4075
          %4451 = vmatprep.subr.mxu0 %v4080
          %4452 = vmatpush1.msra.mxu0 %v4079
          %4453 = vmatprep.subr.mxu0 %v4084
          %4454 = vmatpush1.msra.mxu0 %v4083
          %4455 = vmatprep.subr.mxu0 %v4088
          %4456 = vmatpush1.msra.mxu0 %v4087
          %4457 = vmatprep.subr.mxu0 %v4092
          %4458 = vmatpush1.msra.mxu0 %v4091
          %4459 = vmatprep.subr.mxu0 %v4096
          %4460 = vmatpush1.msra.mxu0 %v4095
          %4461 = vmatprep.subr.mxu0 %v4100
          %4462 = vmatpush1.msra.mxu0 %v4099
          %4463 = vmatprep.subr.mxu0 %v4104
          %4464 = vmatpush1.msra.mxu0 %v4103
          %4465 = vmatprep.subr.mxu0 %v4108
          %4466 = vmatpush1.msra.mxu0 %v4107
          %4467 = vmatprep.subr.mxu0 %v4112
          %4468 = vmatpush1.msra.mxu0 %v4111
          %4469 = vmatprep.subr.mxu0 %v4116
          %4470 = vmatpush1.msra.mxu0 %v4115
          %4471 = vmatprep.subr.mxu0 %v4120
          %4472 = vmatpush1.msra.mxu0 %v4119
          %4473 = vmatprep.subr.mxu0 %v4124
          %4474 = vmatpush1.msra.mxu0 %v4123
          %4475 = vmatprep.subr.mxu0 %v4128
          %4476 = vmatpush1.msra.mxu0 %v4127
          %4477 = vmatprep.subr.mxu0 %v4132
          %4478 = vmatpush1.msra.mxu0 %v4131
          %4479 = vmatprep.subr.mxu0 %v4136
          %4480 = vmatpush1.msra.mxu0 %v4135
          %4481 = vmatprep.subr.mxu0 %v4140
          %4482 = vmatpush1.msra.mxu0 %v4139
          %4483 = vmatprep.subr.mxu0 %v4144
          %4484 = vmatpush1.msra.mxu0 %v4143
          %4485 = vmatprep.subr.mxu0 %v4148
          %4486 = vmatpush1.msra.mxu0 %v4147
          %4487 = vmatprep.subr.mxu0 %v4152
          %4488 = vmatpush1.msra.mxu0 %v4151
          %4489 = vmatprep.subr.mxu0 %v4156
          %4490 = vmatpush1.msra.mxu0 %v4155
          %4491 = vmatprep.subr.mxu0 %v4160
          %4492 = vmatpush1.msra.mxu0 %v4159
          %4493 = vmatprep.subr.mxu0 %v4164
          %4494 = vmatpush1.msra.mxu0 %v4163
          %4495 = vmatprep.subr.mxu0 %v4168
          %4496 = vmatpush1.msra.mxu0 %v4167
          %4497 = vmatprep.subr.mxu0 %v4172
          %4498 = vmatpush1.msra.mxu0 %v4171
          %4499 = vmatprep.subr.mxu0 %v4176
          %4500 = vmatpush1.msra.mxu0 %v4175
          %4501 = vmatprep.subr.mxu0 %v4180
          %4502 = vmatpush1.msra.mxu0 %v4179
          %4503 = vmatprep.subr.mxu0 %v4184
          %4504 = vmatpush1.msra.mxu0 %v4183
          %4505 = vmatprep.mubr.f32.mxu0 %v4202
          %4506 = vmatmul.mubr.f32.gmra.mrb[0].mxu0 %v4198
          %v4507 = vpop.f32.mrb[0].mxu0
          %v4508 = vadd.f32 %v4437, %v4507
          %v4509 = vpop.f32.mrb[0].mxu0
          %v4510 = vadd.f32 %v4439, %v4509
          %4511 = vdwg.mxu0
          %v4512 = vmax.f32 %v4366, 0.0
          %v4513 = vmax.f32 %v4368, 0.0
          %v4514 = vmax.f32 %v4508, 0.0
          %v4515 = vmax.f32 %v4510, 0.0
          %v4516 = vld [vmem:[%s9] sm:$0xff]
          %v4517 = vld [vmem:[%s9 + $0x8] sm:$0xff]
          %v4518 = vld [vmem:[%s9 + $0x10] sm:$0xff]
          %v4519 = vld [vmem:[%s9 + $0x18] sm:$0xff]
          %v4520 = vld [vmem:[%s9 + $0x20] sm:$0xff]
          %v4521 = vld [vmem:[%s9 + $0x28] sm:$0xff]
          %v4522 = vld [vmem:[%s9 + $0x30] sm:$0xff]
          %v4523 = vld [vmem:[%s9 + $0x38] sm:$0xff]
          %v4524 = vld [vmem:[%s9 + $0x40] sm:$0xff]
          %v4525 = vld [vmem:[%s9 + $0x48] sm:$0xff]
          %v4526 = vld [vmem:[%s9 + $0x50] sm:$0xff]
          %v4527 = vld [vmem:[%s9 + $0x58] sm:$0xff]
          %v4528 = vld [vmem:[%s9 + $0x60] sm:$0xff]
          %v4529 = vld [vmem:[%s9 + $0x68] sm:$0xff]
          %v4530 = vld [vmem:[%s9 + $0x70] sm:$0xff]
          %v4531 = vld [vmem:[%s9 + $0x78] sm:$0xff]
          %v4532 = vld [vmem:[%s9 + $0x80] sm:$0xff]
          %v4533 = vld [vmem:[%s9 + $0x88] sm:$0xff]
          %v4534 = vld [vmem:[%s9 + $0x90] sm:$0xff]
          %v4535 = vld [vmem:[%s9 + $0x98] sm:$0xff]
          %v4536 = vld [vmem:[%s9 + $0xa0] sm:$0xff]
          %v4537 = vld [vmem:[%s9 + $0xa8] sm:$0xff]
          %v4538 = vld [vmem:[%s9 + $0xb0] sm:$0xff]
          %v4539 = vld [vmem:[%s9 + $0xb8] sm:$0xff]
          %v4540 = vld [vmem:[%s9 + $0xc0] sm:$0xff]
          %v4541 = vld [vmem:[%s9 + $0xc8] sm:$0xff]
          %v4542 = vld [vmem:[%s9 + $0xd0] sm:$0xff]
          %v4543 = vld [vmem:[%s9 + $0xd8] sm:$0xff]
          %v4544 = vld [vmem:[%s9 + $0xe0] sm:$0xff]
          %v4545 = vld [vmem:[%s9 + $0xe8] sm:$0xff]
          %v4546 = vld [vmem:[%s9 + $0xf0] sm:$0xff]
          %v4547 = vld [vmem:[%s9 + $0xf8] sm:$0xff]
          %v4548 = vld [vmem:[%s9 + $0x100] sm:$0xff]
          %v4549 = vld [vmem:[%s9 + $0x108] sm:$0xff]
          %v4550 = vld [vmem:[%s9 + $0x110] sm:$0xff]
          %v4551 = vld [vmem:[%s9 + $0x118] sm:$0xff]
          %v4552 = vld [vmem:[%s9 + $0x120] sm:$0xff]
          %v4553 = vld [vmem:[%s9 + $0x128] sm:$0xff]
          %v4554 = vld [vmem:[%s9 + $0x130] sm:$0xff]
          %v4555 = vld [vmem:[%s9 + $0x138] sm:$0xff]
          %v4556 = vld [vmem:[%s9 + $0x140] sm:$0xff]
          %v4557 = vld [vmem:[%s9 + $0x148] sm:$0xff]
          %v4558 = vld [vmem:[%s9 + $0x150] sm:$0xff]
          %v4559 = vld [vmem:[%s9 + $0x158] sm:$0xff]
          %v4560 = vld [vmem:[%s9 + $0x160] sm:$0xff]
          %v4561 = vld [vmem:[%s9 + $0x168] sm:$0xff]
          %v4562 = vld [vmem:[%s9 + $0x170] sm:$0xff]
          %v4563 = vld [vmem:[%s9 + $0x178] sm:$0xff]
          %v4564 = vld [vmem:[%s9 + $0x180] sm:$0xff]
          %v4565 = vld [vmem:[%s9 + $0x188] sm:$0xff]
          %v4566 = vld [vmem:[%s9 + $0x190] sm:$0xff]
          %v4567 = vld [vmem:[%s9 + $0x198] sm:$0xff]
          %v4568 = vld [vmem:[%s9 + $0x1a0] sm:$0xff]
          %v4569 = vld [vmem:[%s9 + $0x1a8] sm:$0xff]
          %v4570 = vld [vmem:[%s9 + $0x1b0] sm:$0xff]
          %v4571 = vld [vmem:[%s9 + $0x1b8] sm:$0xff]
          %v4572 = vld [vmem:[%s9 + $0x1c0] sm:$0xff]
          %v4573 = vld [vmem:[%s9 + $0x1c8] sm:$0xff]
          %v4574 = vld [vmem:[%s9 + $0x1d0] sm:$0xff]
          %v4575 = vld [vmem:[%s9 + $0x1d8] sm:$0xff]
          %v4576 = vld [vmem:[%s9 + $0x1e0] sm:$0xff]
          %v4577 = vld [vmem:[%s9 + $0x1e8] sm:$0xff]
          %v4578 = vld [vmem:[%s9 + $0x1f0] sm:$0xff]
          %v4579 = vld [vmem:[%s9 + $0x1f8] sm:$0xff]
          %v4580 = vld [vmem:[%s9 + $0x200] sm:$0xff]
          %v4581 = vld [vmem:[%s9 + $0x208] sm:$0xff]
          %v4582 = vld [vmem:[%s9 + $0x210] sm:$0xff]
          %v4583 = vld [vmem:[%s9 + $0x218] sm:$0xff]
          %v4584 = vld [vmem:[%s9 + $0x220] sm:$0xff]
          %v4585 = vld [vmem:[%s9 + $0x228] sm:$0xff]
          %v4586 = vld [vmem:[%s9 + $0x230] sm:$0xff]
          %v4587 = vld [vmem:[%s9 + $0x238] sm:$0xff]
          %v4588 = vld [vmem:[%s9 + $0x240] sm:$0xff]
          %v4589 = vld [vmem:[%s9 + $0x248] sm:$0xff]
          %v4590 = vld [vmem:[%s9 + $0x250] sm:$0xff]
          %v4591 = vld [vmem:[%s9 + $0x258] sm:$0xff]
          %v4592 = vld [vmem:[%s9 + $0x260] sm:$0xff]
          %v4593 = vld [vmem:[%s9 + $0x268] sm:$0xff]
          %v4594 = vld [vmem:[%s9 + $0x270] sm:$0xff]
          %v4595 = vld [vmem:[%s9 + $0x278] sm:$0xff]
          %v4596 = vld [vmem:[%s9 + $0x280] sm:$0xff]
          %v4597 = vld [vmem:[%s9 + $0x288] sm:$0xff]
          %v4598 = vld [vmem:[%s9 + $0x290] sm:$0xff]
          %v4599 = vld [vmem:[%s9 + $0x298] sm:$0xff]
          %v4600 = vld [vmem:[%s9 + $0x2a0] sm:$0xff]
          %v4601 = vld [vmem:[%s9 + $0x2a8] sm:$0xff]
          %v4602 = vld [vmem:[%s9 + $0x2b0] sm:$0xff]
          %v4603 = vld [vmem:[%s9 + $0x2b8] sm:$0xff]
          %v4604 = vld [vmem:[%s9 + $0x2c0] sm:$0xff]
          %v4605 = vld [vmem:[%s9 + $0x2c8] sm:$0xff]
          %v4606 = vld [vmem:[%s9 + $0x2d0] sm:$0xff]
          %v4607 = vld [vmem:[%s9 + $0x2d8] sm:$0xff]
          %v4608 = vld [vmem:[%s9 + $0x2e0] sm:$0xff]
          %v4609 = vld [vmem:[%s9 + $0x2e8] sm:$0xff]
          %v4610 = vld [vmem:[%s9 + $0x2f0] sm:$0xff]
          %v4611 = vld [vmem:[%s9 + $0x2f8] sm:$0xff]
          %v4612 = vld [vmem:[%s9 + $0x300] sm:$0xff]
          %v4613 = vld [vmem:[%s9 + $0x308] sm:$0xff]
          %v4614 = vld [vmem:[%s9 + $0x310] sm:$0xff]
          %v4615 = vld [vmem:[%s9 + $0x318] sm:$0xff]
          %v4616 = vld [vmem:[%s9 + $0x320] sm:$0xff]
          %v4617 = vld [vmem:[%s9 + $0x328] sm:$0xff]
          %v4618 = vld [vmem:[%s9 + $0x330] sm:$0xff]
          %v4619 = vld [vmem:[%s9 + $0x338] sm:$0xff]
          %v4620 = vld [vmem:[%s9 + $0x340] sm:$0xff]
          %v4621 = vld [vmem:[%s9 + $0x348] sm:$0xff]
          %v4622 = vld [vmem:[%s9 + $0x350] sm:$0xff]
          %v4623 = vld [vmem:[%s9 + $0x358] sm:$0xff]
          %v4624 = vld [vmem:[%s9 + $0x360] sm:$0xff]
          %v4625 = vld [vmem:[%s9 + $0x368] sm:$0xff]
          %v4626 = vld [vmem:[%s9 + $0x370] sm:$0xff]
          %v4627 = vld [vmem:[%s9 + $0x378] sm:$0xff]
          %v4628 = vld [vmem:[%s9 + $0x380] sm:$0xff]
          %v4629 = vld [vmem:[%s9 + $0x388] sm:$0xff]
          %v4630 = vld [vmem:[%s9 + $0x390] sm:$0xff]
          %v4631 = vld [vmem:[%s9 + $0x398] sm:$0xff]
          %v4632 = vld [vmem:[%s9 + $0x3a0] sm:$0xff]
          %v4633 = vld [vmem:[%s9 + $0x3a8] sm:$0xff]
          %v4634 = vld [vmem:[%s9 + $0x3b0] sm:$0xff]
          %v4635 = vld [vmem:[%s9 + $0x3b8] sm:$0xff]
          %v4636 = vld [vmem:[%s9 + $0x3c0] sm:$0xff]
          %v4637 = vld [vmem:[%s9 + $0x3c8] sm:$0xff]
          %v4638 = vld [vmem:[%s9 + $0x3d0] sm:$0xff]
          %v4639 = vld [vmem:[%s9 + $0x3d8] sm:$0xff]
          %v4640 = vld [vmem:[%s9 + $0x3e0] sm:$0xff]
          %v4641 = vld [vmem:[%s9 + $0x3e8] sm:$0xff]
          %v4642 = vld [vmem:[%s9 + $0x3f0] sm:$0xff]
          %v4643 = vld [vmem:[%s9 + $0x3f8] sm:$0xff]
          %v4644 = vld [vmem:[%s10] sm:$0x3]
          %v4646 = vlaneseq
          %v4647 = vshrl.u32 %v4646, 7
          %v4648 = vsub.s32 0, %v4647
          %v4649 = vrot.slane %v4644, %v4648
          %v4650 = vlaneseq
          %v4651 = vshrl.u32 %v4650, 7
          %v4652 = vsub.s32 1, %v4651
          %v4653 = vrot.slane %v4644, %v4652
          %4656 = vmatprep.subr.mxu0 %v4517
          %4657 = vmatpush1.msra.mxu0 %v4516
          %4658 = vmatprep.subr.mxu0 %v4519
          %4659 = vmatpush1.msra.mxu0 %v4518
          %4660 = vmatprep.subr.mxu0 %v4521
          %4661 = vmatpush1.msra.mxu0 %v4520
          %4662 = vmatprep.subr.mxu0 %v4523
          %4663 = vmatpush1.msra.mxu0 %v4522
          %4664 = vmatprep.subr.mxu0 %v4525
          %4665 = vmatpush1.msra.mxu0 %v4524
          %4666 = vmatprep.subr.mxu0 %v4527
          %4667 = vmatpush1.msra.mxu0 %v4526
          %4668 = vmatprep.subr.mxu0 %v4529
          %4669 = vmatpush1.msra.mxu0 %v4528
          %4670 = vmatprep.subr.mxu0 %v4531
          %4671 = vmatpush1.msra.mxu0 %v4530
          %4672 = vmatprep.subr.mxu0 %v4533
          %4673 = vmatpush1.msra.mxu0 %v4532
          %4674 = vmatprep.subr.mxu0 %v4535
          %4675 = vmatpush1.msra.mxu0 %v4534
          %4676 = vmatprep.subr.mxu0 %v4537
          %4677 = vmatpush1.msra.mxu0 %v4536
          %4678 = vmatprep.subr.mxu0 %v4539
          %4679 = vmatpush1.msra.mxu0 %v4538
          %4680 = vmatprep.subr.mxu0 %v4541
          %4681 = vmatpush1.msra.mxu0 %v4540
          %4682 = vmatprep.subr.mxu0 %v4543
          %4683 = vmatpush1.msra.mxu0 %v4542
          %4684 = vmatprep.subr.mxu0 %v4545
          %4685 = vmatpush1.msra.mxu0 %v4544
          %4686 = vmatprep.subr.mxu0 %v4547
          %4687 = vmatpush1.msra.mxu0 %v4546
          %4688 = vmatprep.subr.mxu0 %v4549
          %4689 = vmatpush1.msra.mxu0 %v4548
          %4690 = vmatprep.subr.mxu0 %v4551
          %4691 = vmatpush1.msra.mxu0 %v4550
          %4692 = vmatprep.subr.mxu0 %v4553
          %4693 = vmatpush1.msra.mxu0 %v4552
          %4694 = vmatprep.subr.mxu0 %v4555
          %4695 = vmatpush1.msra.mxu0 %v4554
          %4696 = vmatprep.subr.mxu0 %v4557
          %4697 = vmatpush1.msra.mxu0 %v4556
          %4698 = vmatprep.subr.mxu0 %v4559
          %4699 = vmatpush1.msra.mxu0 %v4558
          %4700 = vmatprep.subr.mxu0 %v4561
          %4701 = vmatpush1.msra.mxu0 %v4560
          %4702 = vmatprep.subr.mxu0 %v4563
          %4703 = vmatpush1.msra.mxu0 %v4562
          %4704 = vmatprep.subr.mxu0 %v4565
          %4705 = vmatpush1.msra.mxu0 %v4564
          %4706 = vmatprep.subr.mxu0 %v4567
          %4707 = vmatpush1.msra.mxu0 %v4566
          %4708 = vmatprep.subr.mxu0 %v4569
          %4709 = vmatpush1.msra.mxu0 %v4568
          %4710 = vmatprep.subr.mxu0 %v4571
          %4711 = vmatpush1.msra.mxu0 %v4570
          %4712 = vmatprep.subr.mxu0 %v4573
          %4713 = vmatpush1.msra.mxu0 %v4572
          %4714 = vmatprep.subr.mxu0 %v4575
          %4715 = vmatpush1.msra.mxu0 %v4574
          %4716 = vmatprep.subr.mxu0 %v4577
          %4717 = vmatpush1.msra.mxu0 %v4576
          %4718 = vmatprep.subr.mxu0 %v4579
          %4719 = vmatpush1.msra.mxu0 %v4578
          %4720 = vmatprep.mubr.f32.mxu0 %v4513
          %4721 = vmatmul.mubr.f32.gmra.mrb[0].mxu0 %v4512
          %v4722 = vpop.f32.mrb[0].mxu0
          %v4723 = vadd.f32 %v4649, %v4722
          %v4724 = vpop.f32.mrb[0].mxu0
          %v4725 = vadd.f32 %v4653, %v4724
          %4726 = vdwg.mxu0
          %4727 = vmatprep.subr.mxu0 %v4581
          %4728 = vmatpush1.msra.mxu0 %v4580
          %4729 = vmatprep.subr.mxu0 %v4583
          %4730 = vmatpush1.msra.mxu0 %v4582
          %4731 = vmatprep.subr.mxu0 %v4585
          %4732 = vmatpush1.msra.mxu0 %v4584
          %4733 = vmatprep.subr.mxu0 %v4587
          %4734 = vmatpush1.msra.mxu0 %v4586
          %4735 = vmatprep.subr.mxu0 %v4589
          %4736 = vmatpush1.msra.mxu0 %v4588
          %4737 = vmatprep.subr.mxu0 %v4591
          %4738 = vmatpush1.msra.mxu0 %v4590
          %4739 = vmatprep.subr.mxu0 %v4593
          %4740 = vmatpush1.msra.mxu0 %v4592
          %4741 = vmatprep.subr.mxu0 %v4595
          %4742 = vmatpush1.msra.mxu0 %v4594
          %4743 = vmatprep.subr.mxu0 %v4597
          %4744 = vmatpush1.msra.mxu0 %v4596
          %4745 = vmatprep.subr.mxu0 %v4599
          %4746 = vmatpush1.msra.mxu0 %v4598
          %4747 = vmatprep.subr.mxu0 %v4601
          %4748 = vmatpush1.msra.mxu0 %v4600
          %4749 = vmatprep.subr.mxu0 %v4603
          %4750 = vmatpush1.msra.mxu0 %v4602
          %4751 = vmatprep.subr.mxu0 %v4605
          %4752 = vmatpush1.msra.mxu0 %v4604
          %4753 = vmatprep.subr.mxu0 %v4607
          %4754 = vmatpush1.msra.mxu0 %v4606
          %4755 = vmatprep.subr.mxu0 %v4609
          %4756 = vmatpush1.msra.mxu0 %v4608
          %4757 = vmatprep.subr.mxu0 %v4611
          %4758 = vmatpush1.msra.mxu0 %v4610
          %4759 = vmatprep.subr.mxu0 %v4613
          %4760 = vmatpush1.msra.mxu0 %v4612
          %4761 = vmatprep.subr.mxu0 %v4615
          %4762 = vmatpush1.msra.mxu0 %v4614
          %4763 = vmatprep.subr.mxu0 %v4617
          %4764 = vmatpush1.msra.mxu0 %v4616
          %4765 = vmatprep.subr.mxu0 %v4619
          %4766 = vmatpush1.msra.mxu0 %v4618
          %4767 = vmatprep.subr.mxu0 %v4621
          %4768 = vmatpush1.msra.mxu0 %v4620
          %4769 = vmatprep.subr.mxu0 %v4623
          %4770 = vmatpush1.msra.mxu0 %v4622
          %4771 = vmatprep.subr.mxu0 %v4625
          %4772 = vmatpush1.msra.mxu0 %v4624
          %4773 = vmatprep.subr.mxu0 %v4627
          %4774 = vmatpush1.msra.mxu0 %v4626
          %4775 = vmatprep.subr.mxu0 %v4629
          %4776 = vmatpush1.msra.mxu0 %v4628
          %4777 = vmatprep.subr.mxu0 %v4631
          %4778 = vmatpush1.msra.mxu0 %v4630
          %4779 = vmatprep.subr.mxu0 %v4633
          %4780 = vmatpush1.msra.mxu0 %v4632
          %4781 = vmatprep.subr.mxu0 %v4635
          %4782 = vmatpush1.msra.mxu0 %v4634
          %4783 = vmatprep.subr.mxu0 %v4637
          %4784 = vmatpush1.msra.mxu0 %v4636
          %4785 = vmatprep.subr.mxu0 %v4639
          %4786 = vmatpush1.msra.mxu0 %v4638
          %4787 = vmatprep.subr.mxu0 %v4641
          %4788 = vmatpush1.msra.mxu0 %v4640
          %4789 = vmatprep.subr.mxu0 %v4643
          %4790 = vmatpush1.msra.mxu0 %v4642
          %4791 = vmatprep.mubr.f32.mxu0 %v4515
          %4792 = vmatmul.mubr.f32.gmra.mrb[0].mxu0 %v4514
          %v4793 = vpop.f32.mrb[0].mxu0
          %v4794 = vadd.f32 %v4723, %v4793
          %v4795 = vpop.f32.mrb[0].mxu0
          %v4796 = vadd.f32 %v4725, %v4795
          %4797 = vdwg.mxu0
          %v4798 = vmax.f32 %v4794, 0.0
          %v4799 = vmax.f32 %v4796, 0.0
          %v4800 = vld [vmem:[#allocation8] sm:$0xff]
          %v4801 = vld [vmem:[#allocation8 + $0x8] sm:$0xff]
          %v4802 = vld [vmem:[#allocation8 + $0x10] sm:$0xff]
          %v4803 = vld [vmem:[#allocation8 + $0x18] sm:$0xff]
          %v4804 = vld [vmem:[#allocation8 + $0x20] sm:$0xff]
          %v4805 = vld [vmem:[#allocation8 + $0x28] sm:$0xff]
          %v4806 = vld [vmem:[#allocation8 + $0x30] sm:$0xff]
          %v4807 = vld [vmem:[#allocation8 + $0x38] sm:$0xff]
          %v4808 = vld [vmem:[#allocation8 + $0x40] sm:$0xff]
          %v4809 = vld [vmem:[#allocation8 + $0x48] sm:$0xff]
          %v4810 = vld [vmem:[#allocation8 + $0x50] sm:$0xff]
          %v4811 = vld [vmem:[#allocation8 + $0x58] sm:$0xff]
          %v4812 = vld [vmem:[#allocation8 + $0x60] sm:$0xff]
          %v4813 = vld [vmem:[#allocation8 + $0x68] sm:$0xff]
          %v4814 = vld [vmem:[#allocation8 + $0x70] sm:$0xff]
          %v4815 = vld [vmem:[#allocation8 + $0x78] sm:$0xff]
          %v4816 = vld [vmem:[#allocation8 + $0x80] sm:$0xff]
          %v4817 = vld [vmem:[#allocation8 + $0x88] sm:$0xff]
          %v4818 = vld [vmem:[#allocation8 + $0x90] sm:$0xff]
          %v4819 = vld [vmem:[#allocation8 + $0x98] sm:$0xff]
          %v4820 = vld [vmem:[#allocation8 + $0xa0] sm:$0xff]
          %v4821 = vld [vmem:[#allocation8 + $0xa8] sm:$0xff]
          %v4822 = vld [vmem:[#allocation8 + $0xb0] sm:$0xff]
          %v4823 = vld [vmem:[#allocation8 + $0xb8] sm:$0xff]
          %v4824 = vld [vmem:[#allocation8 + $0xc0] sm:$0xff]
          %v4825 = vld [vmem:[#allocation8 + $0xc8] sm:$0xff]
          %v4826 = vld [vmem:[#allocation8 + $0xd0] sm:$0xff]
          %v4827 = vld [vmem:[#allocation8 + $0xd8] sm:$0xff]
          %v4828 = vld [vmem:[#allocation8 + $0xe0] sm:$0xff]
          %v4829 = vld [vmem:[#allocation8 + $0xe8] sm:$0xff]
          %v4830 = vld [vmem:[#allocation8 + $0xf0] sm:$0xff]
          %v4831 = vld [vmem:[#allocation8 + $0xf8] sm:$0xff]
          %v4832 = vld [vmem:[%s12] sm:$0x1]
          %4833 = vmatprep.subr.mxu0 0.0
          %4834 = vmatpush1.msra.mxu0 %v4800
          %4835 = vmatprep.subr.mxu0 0.0
          %4836 = vmatpush1.msra.mxu0 %v4801
          %4837 = vmatprep.subr.mxu0 0.0
          %4838 = vmatpush1.msra.mxu0 %v4802
          %4839 = vmatprep.subr.mxu0 0.0
          %4840 = vmatpush1.msra.mxu0 %v4803
          %4841 = vmatprep.subr.mxu0 0.0
          %4842 = vmatpush1.msra.mxu0 %v4804
          %4843 = vmatprep.subr.mxu0 0.0
          %4844 = vmatpush1.msra.mxu0 %v4805
          %4845 = vmatprep.subr.mxu0 0.0
          %4846 = vmatpush1.msra.mxu0 %v4806
          %4847 = vmatprep.subr.mxu0 0.0
          %4848 = vmatpush1.msra.mxu0 %v4807
          %4849 = vmatprep.subr.mxu0 0.0
          %4850 = vmatpush1.msra.mxu0 %v4808
          %4851 = vmatprep.subr.mxu0 0.0
          %4852 = vmatpush1.msra.mxu0 %v4809
          %4853 = vmatprep.subr.mxu0 0.0
          %4854 = vmatpush1.msra.mxu0 %v4810
          %4855 = vmatprep.subr.mxu0 0.0
          %4856 = vmatpush1.msra.mxu0 %v4811
          %4857 = vmatprep.subr.mxu0 0.0
          %4858 = vmatpush1.msra.mxu0 %v4812
          %4859 = vmatprep.subr.mxu0 0.0
          %4860 = vmatpush1.msra.mxu0 %v4813
          %4861 = vmatprep.subr.mxu0 0.0
          %4862 = vmatpush1.msra.mxu0 %v4814
          %4863 = vmatprep.subr.mxu0 0.0
          %4864 = vmatpush1.msra.mxu0 %v4815
          %4865 = vmatprep.subr.mxu0 0.0
          %4866 = vmatpush1.msra.mxu0 %v4816
          %4867 = vmatprep.subr.mxu0 0.0
          %4868 = vmatpush1.msra.mxu0 %v4817
          %4869 = vmatprep.subr.mxu0 0.0
          %4870 = vmatpush1.msra.mxu0 %v4818
          %4871 = vmatprep.subr.mxu0 0.0
          %4872 = vmatpush1.msra.mxu0 %v4819
          %4873 = vmatprep.subr.mxu0 0.0
          %4874 = vmatpush1.msra.mxu0 %v4820
          %4875 = vmatprep.subr.mxu0 0.0
          %4876 = vmatpush1.msra.mxu0 %v4821
          %4877 = vmatprep.subr.mxu0 0.0
          %4878 = vmatpush1.msra.mxu0 %v4822
          %4879 = vmatprep.subr.mxu0 0.0
          %4880 = vmatpush1.msra.mxu0 %v4823
          %4881 = vmatprep.subr.mxu0 0.0
          %4882 = vmatpush1.msra.mxu0 %v4824
          %4883 = vmatprep.subr.mxu0 0.0
          %4884 = vmatpush1.msra.mxu0 %v4825
          %4885 = vmatprep.subr.mxu0 0.0
          %4886 = vmatpush1.msra.mxu0 %v4826
          %4887 = vmatprep.subr.mxu0 0.0
          %4888 = vmatpush1.msra.mxu0 %v4827
          %4889 = vmatprep.subr.mxu0 0.0
          %4890 = vmatpush1.msra.mxu0 %v4828
          %4891 = vmatprep.subr.mxu0 0.0
          %4892 = vmatpush1.msra.mxu0 %v4829
          %4893 = vmatprep.subr.mxu0 0.0
          %4894 = vmatpush1.msra.mxu0 %v4830
          %4895 = vmatprep.subr.mxu0 0.0
          %4896 = vmatpush1.msra.mxu0 %v4831
          %4897 = vmatprep.mubr.f32.mxu0 %v4799
          %4898 = vmatmul.mubr.f32.gmra.mrb[0].mxu0 %v4798
          %v4899 = vpop.f32.mrb[0].mxu0
          %v4900 = vadd.f32 %v4832, %v4899
          %v4901 = vpop.f32.mrb[0].mxu0
          %4902 = vdwg.mxu0
          %4903 = vst [vmem:[%s499] sm:$0x1] %v4900
        $region92: #{tpu_custom_call.1} parent=71 // pred_fallthru
          _
        %s4904 = sand.u32 %s329, 1
        %s4905 = scalar_lea.sflag [#allocation5], %s4904
        %s4906 = sand.u32 %s329, 1
        %s4907 = scalar_lea.vmem [#allocation9], %s4906
        // Predicated region
        $region93: #{tpu_custom_call.1} parent=71 // pred_check
          %p4908 = pneg %p339
        $region94: #{tpu_custom_call.1} parent=71 // pred_check_branch
          %4910 = sbr.rel (%p4908) target = $region96
        $region95: #{tpu_custom_call.1} parent=71 // pred_region
          %s4912 = ssub.s32 16, 16
          %4913 = vsyncadd %s4905, %s4912
          %s4914 = smul.addr %s33, 16
          %s4915 = scalar_lea.hbm %s13, %s4914
          %s4917 = sshll.u32 %s4907, 4
          %s4918 = int_to_ptr.vmem [resolvable:$true] %s4917
          %4920 = dma.vmem_to_hbm [thread:$0]  %s4918, 16, %s4915, %s4905
        $region96: #{tpu_custom_call.1} parent=71 // pred_fallthru
          _
      $region72: #{tpu_custom_call.1} parent=5 // pred_fallthru
        _
      %p4921 = scmp.le.s32.totalorder 2, %s24
      // Predicated region
      $region97: #{tpu_custom_call.1} parent=5 // pred_check
        %p4922 = pneg %p4921
      $region98: #{tpu_custom_call.1} parent=5 // pred_check_branch
        %4924 = sbr.rel (%p4922) target = $region100
      $region99: #{tpu_custom_call.1} parent=5 // pred_region
        %s4925 = ssub.s32 %s24, 2
        // Predicated region
        $region101: #{tpu_custom_call.1} parent=99 // pred_check
          %p4926 = pneg %p345
        $region102: #{tpu_custom_call.1} parent=99 // pred_check_branch
          %4928 = sbr.rel (%p4926) target = $region104
        $region103: #{tpu_custom_call.1} parent=99 // pred_region
          %s4929 = sand.u32 %s330, 1
          %s4930 = scalar_lea.sflag [#allocation5], %s4929
          %s4931 = sand.u32 %s330, 1
          %s4932 = scalar_lea.vmem [#allocation9], %s4931
          %4933 = dma.done %s4930, 16
        $region104: #{tpu_custom_call.1} parent=99 // pred_fallthru
          _
      $region100: #{tpu_custom_call.1} parent=5 // pred_fallthru
        _
    $region6: #{tpu_custom_call.1} parent=1 // loop_footer
      %s28 = sadd.s32 1, %s24
    $region7: #{tpu_custom_call.1} parent=1 // loop_footer_branch
      %23 = sbr.rel target = $region3
    $region8: #{tpu_custom_call.1} parent=1 // loop_exit
      _
    %4934 = vsyncpa [#allocation4], 1
    %s4935 = scalar_lea.sflag [#allocation4], 1
    %4936 = vsyncpa %s4935, 1
    %4937 = vsyncpa [#allocation7], 1
    %4938 = vsyncpa [#allocation5], 1
    %s4939 = scalar_lea.sflag [#allocation5], 1
    %4940 = vsyncpa %s4939, 1

</llo_original>
